<compile_context>
chip_gen: v7x
topology: tpu7x:2x2x1
jax: 0.10.0
libtpu: 0.0.40
codegen_flags: <defaults>
</compile_context>

<pallas_src>
import math

import jax
import jax.numpy as jnp
from jax import lax
from jax.experimental import pallas as pl
from jax.experimental.pallas import tpu as pltpu

# ----------------------------- config (small) -----------------------------
B = 2
S = 16
N_CAT = 3                 # number of categorical features / embedding tables
VOCAB = 10                # num_embeddings per table
EMB_DIM = 4               # embedding_dim per table
NUM_DIM = 4               # numeric feature dim
INPUT_DIM = NUM_DIM + N_CAT * EMB_DIM        # 16 == config.input_dim (conv in_channels)
KERNEL_SIZES = (2, 3, 5, 7, 11, 15)
CONV_OUT = 16
D_MODEL = CONV_OUT * len(KERNEL_SIZES)       # 96 == transformer d_model
NHEAD = 4
HEAD_DIM = D_MODEL // NHEAD                  # 24
DIM_FF = 256
NUM_LAYERS = 2
FC_HIDDEN = 512
OUTPUT_DIM = 5
OUT_PAD = 128                                # lane-dense padded output width
K_MAX = max(KERNEL_SIZES)                    # 15
MAXPAD = (K_MAX - 1) // 2                    # 7
IM2COL = K_MAX * INPUT_DIM                   # 240
LN_EPS = 1e-5
BS = B * S                                   # 32 flattened rows
ATTN_SCALE = 1.0 / math.sqrt(HEAD_DIM)


# ------------------------------- kernel helpers ----------------------------
def _layer_norm(x, w, b):
    # f32 elementwise math (biased variance, matching torch LayerNorm).
    mu = jnp.mean(x, axis=-1, keepdims=True)
    var = jnp.mean((x - mu) ** 2, axis=-1, keepdims=True)
    return (x - mu) * lax.rsqrt(var + LN_EPS) * w + b


def _mha(x, wqkv, bqkv, wo, bo):
    # x: (BS, D) f32.  Weights are bf16 stored (in, out) == torch W^T; biases f32 (1, out).
    qkv = jnp.dot(x.astype(jnp.bfloat16), wqkv,
                  preferred_element_type=jnp.float32) + bqkv             # (BS, 3D)
    outs = []
    for b in range(B):                                                   # static, B=2
        r0 = b * S
        q = qkv[r0:r0 + S, 0:D_MODEL]
        k = qkv[r0:r0 + S, D_MODEL:2 * D_MODEL]
        v = qkv[r0:r0 + S, 2 * D_MODEL:3 * D_MODEL]

        def split(a):
            return jnp.stack(
                [a[:, h * HEAD_DIM:(h + 1) * HEAD_DIM] for h in range(NHEAD)],
                axis=0)                                                  # (H, S, hd)

        qh = split(q).astype(jnp.bfloat16)
        kh = split(k).astype(jnp.bfloat16)
        vh = split(v).astype(jnp.bfloat16)
        s = jnp.einsum('hqd,hkd->hqk', qh, kh,
                       preferred_element_type=jnp.float32) * ATTN_SCALE  # (H, S, S) f32
        s = s - jnp.max(s, axis=-1, keepdims=True)
        p = jnp.exp(s)
        p = p * pl.reciprocal(jnp.sum(p, axis=-1, keepdims=True), approx=True)
        oh = jnp.einsum('hqk,hkd->hqd', p.astype(jnp.bfloat16), vh,
                        preferred_element_type=jnp.float32)              # (H, S, hd)
        outs.append(jnp.concatenate([oh[h] for h in range(NHEAD)], axis=-1))  # (S, D)
    attn = jnp.concatenate(outs, axis=0)                                 # (BS, D)
    return jnp.dot(attn.astype(jnp.bfloat16), wo,
                   preferred_element_type=jnp.float32) + bo


# ------------------------------- fused kernel ------------------------------
def _fused_kernel(x_ref, conv_w_ref, conv_b_ref,
                  wqkv_ref, bqkv_ref, wo_ref, bo_ref,
                  ln1w_ref, ln1b_ref, w1_ref, b1_ref, w2_ref, b2_ref,
                  ln2w_ref, ln2b_ref,
                  fc1w_ref, fc1b_ref, fc2w_ref, fc2b_ref, o_ref):
    # ---- conv bank as one im2col matmul; zero padding built in VMEM ----
    zp = jnp.zeros((MAXPAD, INPUT_DIM), jnp.float32)
    rows = []
    for b in range(B):                                        # static, B=2
        xb = x_ref[b]                                         # (S, INPUT_DIM)
        xp = jnp.concatenate([zp, xb, zp], axis=0)            # (S + 2*MAXPAD, C_in)
        rows.append(jnp.concatenate(
            [xp[t:t + S, :] for t in range(K_MAX)], axis=-1))  # (S, IM2COL)
    im2col = jnp.concatenate(rows, axis=0).astype(jnp.bfloat16)    # (BS, 240)
    y = jnp.dot(im2col, conv_w_ref[...],
                preferred_element_type=jnp.float32) + conv_b_ref[...]  # (BS, D_MODEL)
    x = jnp.maximum(y, 0.0)                                   # ReLU

    # ---- transformer encoder (post-norm, relu FFN, batch_first), 2 layers ----
    for l in range(NUM_LAYERS):                               # static unroll
        attn = _mha(x, wqkv_ref[l], bqkv_ref[l], wo_ref[l], bo_ref[l])
        x = _layer_norm(x + attn, ln1w_ref[l], ln1b_ref[l])
        h1 = jnp.maximum(
            jnp.dot(x.astype(jnp.bfloat16), w1_ref[l],
                    preferred_element_type=jnp.float32) + b1_ref[l], 0.0)
        ff = jnp.dot(h1.astype(jnp.bfloat16), w2_ref[l],
                     preferred_element_type=jnp.float32) + b2_ref[l]
        x = _layer_norm(x + ff, ln2w_ref[l], ln2b_ref[l])

    # ---- fc head: Linear(96,512)+ReLU -> Linear(512,128-padded) ----
    h = jnp.maximum(
        jnp.dot(x.astype(jnp.bfloat16), fc1w_ref[...],
                preferred_element_type=jnp.float32) + fc1b_ref[...], 0.0)
    o_ref[...] = jnp.dot(h.astype(jnp.bfloat16), fc2w_ref[...],
                         preferred_element_type=jnp.float32) + fc2b_ref[...]


# ------------------------------- parameters --------------------------------
def init_params(key):
    keys = iter(jax.random.split(key, 64))

    def nrm(shape, scale=0.05):
        return scale * jax.random.normal(next(keys), shape, dtype=jnp.float32)

    p = {}
    # embeddings
    p["emb"] = [nrm((VOCAB, EMB_DIM), 1.0) for _ in range(N_CAT)]

    # conv bank assembled into one im2col weight (K_MAX*C_in, D_MODEL):
    # branch ci's taps occupy rows [ (MAXPAD - pad_left + t)*C_in , +C_in ) of its
    # 16-column block; everywhere else zero. Biases concatenated to (1, D_MODEL).
    blocks, biases = [], []
    for k in KERNEL_SIZES:
        w = nrm((k, INPUT_DIM, CONV_OUT))            # per-tap (C_in, C_out) == torch W^T
        pad_left = 0 if k == 2 else (k - 1) // 2     # k=2: asymmetric "same" pad (TODO above)
        off = MAXPAD - pad_left
        col = jnp.zeros((K_MAX, INPUT_DIM, CONV_OUT), jnp.float32).at[off:off + k].set(w)
        blocks.append(col.reshape(IM2COL, CONV_OUT))
        biases.append(nrm((CONV_OUT,)))
    p["conv_w"] = jnp.concatenate(blocks, axis=-1).astype(jnp.bfloat16)   # (240, 96)
    p["conv_b"] = jnp.concatenate(biases)[None, :]                        # (1, 96) f32

    # transformer layers, stacked along a leading layer axis.
    def stack(make):
        return jnp.stack([make() for _ in range(NUM_LAYERS)], axis=0)

    p["wqkv"] = stack(lambda: nrm((D_MODEL, 3 * D_MODEL))).astype(jnp.bfloat16)
    p["bqkv"] = stack(lambda: nrm((1, 3 * D_MODEL)))
    p["wo"] = stack(lambda: nrm((D_MODEL, D_MODEL))).astype(jnp.bfloat16)
    p["bo"] = stack(lambda: nrm((1, D_MODEL)))
    p["ln1w"] = jnp.ones((NUM_LAYERS, 1, D_MODEL), jnp.float32)
    p["ln1b"] = jnp.zeros((NUM_LAYERS, 1, D_MODEL), jnp.float32)
    p["w1"] = stack(lambda: nrm((D_MODEL, DIM_FF))).astype(jnp.bfloat16)
    p["b1"] = stack(lambda: nrm((1, DIM_FF)))
    p["w2"] = stack(lambda: nrm((DIM_FF, D_MODEL))).astype(jnp.bfloat16)
    p["b2"] = stack(lambda: nrm((1, D_MODEL)))
    p["ln2w"] = jnp.ones((NUM_LAYERS, 1, D_MODEL), jnp.float32)
    p["ln2b"] = jnp.zeros((NUM_LAYERS, 1, D_MODEL), jnp.float32)

    # fc head; final layer zero-padded to 128 output lanes for unmasked stores.
    p["fc1_w"] = nrm((D_MODEL, FC_HIDDEN)).astype(jnp.bfloat16)
    p["fc1_b"] = nrm((1, FC_HIDDEN))
    fc2_w = nrm((FC_HIDDEN, OUTPUT_DIM))
    fc2_b = nrm((1, OUTPUT_DIM))
    p["fc2_w"] = jnp.pad(fc2_w, ((0, 0), (0, OUT_PAD - OUTPUT_DIM))).astype(jnp.bfloat16)
    p["fc2_b"] = jnp.pad(fc2_b, ((0, 0), (0, OUT_PAD - OUTPUT_DIM)))
    return p


# ------------------------------- forward -----------------------------------
def forward(params, x_cat, x_num):
    # embedding lookup + concat (glue, plain JAX)
    embs = [jnp.take(params["emb"][i], x_cat[:, :, i], axis=0) for i in range(N_CAT)]
    x = jnp.concatenate([x_num] + embs, axis=-1)              # (B, S, INPUT_DIM)

    out_padded = pl.pallas_call(
        _fused_kernel,
        out_shape=jax.ShapeDtypeStruct((BS, OUT_PAD), jnp.float32),
        compiler_params=pltpu.CompilerParams(vmem_limit_bytes=32 * 1024 * 1024),
    )(x,
      params["conv_w"], params["conv_b"],
      params["wqkv"], params["bqkv"], params["wo"], params["bo"],
      params["ln1w"], params["ln1b"], params["w1"], params["b1"],
      params["w2"], params["b2"], params["ln2w"], params["ln2b"],
      params["fc1_w"], params["fc1_b"], params["fc2_w"], params["fc2_b"])

    return out_padded.reshape(B, S, OUT_PAD)[:, :, :OUTPUT_DIM]


if __name__ == "__main__":
    root = jax.random.PRNGKey(0)
    k_param, k_cat, k_num = jax.random.split(root, 3)
    params = init_params(k_param)
    x_cat = jax.random.randint(k_cat, (B, S, N_CAT), 0, VOCAB, dtype=jnp.int32)
    x_num = jax.random.normal(k_num, (B, S, NUM_DIM), dtype=jnp.float32)

    out = jax.jit(forward)(params, x_cat, x_num)
    out = jax.block_until_ready(out)
    assert out.shape == (B, S, OUTPUT_DIM), out.shape
    assert jnp.all(jnp.isfinite(out))
    print("KERNEL_OK")
</pallas_src>

<mosaic_0001>
module attributes {stable_mosaic.version = 11 : i64} {
  func.func @_fused_kernel(%arg0: memref<2x16x16xf32, #tpu.memory_space<vmem>>, %arg1: memref<240x96xbf16, #tpu.memory_space<vmem>>, %arg2: memref<1x96xf32, #tpu.memory_space<vmem>>, %arg3: memref<2x96x288xbf16, #tpu.memory_space<vmem>>, %arg4: memref<2x1x288xf32, #tpu.memory_space<vmem>>, %arg5: memref<2x96x96xbf16, #tpu.memory_space<vmem>>, %arg6: memref<2x1x96xf32, #tpu.memory_space<vmem>>, %arg7: memref<2x1x96xf32, #tpu.memory_space<vmem>>, %arg8: memref<2x1x96xf32, #tpu.memory_space<vmem>>, %arg9: memref<2x96x256xbf16, #tpu.memory_space<vmem>>, %arg10: memref<2x1x256xf32, #tpu.memory_space<vmem>>, %arg11: memref<2x256x96xbf16, #tpu.memory_space<vmem>>, %arg12: memref<2x1x96xf32, #tpu.memory_space<vmem>>, %arg13: memref<2x1x96xf32, #tpu.memory_space<vmem>>, %arg14: memref<2x1x96xf32, #tpu.memory_space<vmem>>, %arg15: memref<96x512xbf16, #tpu.memory_space<vmem>>, %arg16: memref<1x512xf32, #tpu.memory_space<vmem>>, %arg17: memref<512x128xbf16, #tpu.memory_space<vmem>>, %arg18: memref<1x128xf32, #tpu.memory_space<vmem>>, %arg19: memref<32x128xf32, #tpu.memory_space<vmem>>) attributes {dimension_semantics = [], scalar_prefetch = 0 : i64, scratch_operands = 0 : i64, tpu.core_type = #tpu.core_type<tc>} {
    %cst = arith.constant 0.000000e+00 : f32
    %0 = vector.broadcast %cst : f32 to vector<7x16xf32>
    %c0 = arith.constant 0 : index
    %c0_0 = arith.constant 0 : index
    %c0_1 = arith.constant 0 : index
    %1 = vector.load %arg0[%c0, %c0_0, %c0_1] : memref<2x16x16xf32, #tpu.memory_space<vmem>>, vector<1x16x16xf32>
    %2 = vector.shape_cast %1 : vector<1x16x16xf32> to vector<16x16xf32>
    %3 = tpu.concatenate %0, %2, %0 in 0 : vector<7x16xf32>, vector<16x16xf32>, vector<7x16xf32> -> vector<30x16xf32>
    %4 = vector.extract_strided_slice %3 {offsets = [0, 0], sizes = [16, 16], strides = [1, 1]} : vector<30x16xf32> to vector<16x16xf32>
    %5 = vector.extract_strided_slice %3 {offsets = [1, 0], sizes = [16, 16], strides = [1, 1]} : vector<30x16xf32> to vector<16x16xf32>
    %6 = vector.extract_strided_slice %3 {offsets = [2, 0], sizes = [16, 16], strides = [1, 1]} : vector<30x16xf32> to vector<16x16xf32>
    %7 = vector.extract_strided_slice %3 {offsets = [3, 0], sizes = [16, 16], strides = [1, 1]} : vector<30x16xf32> to vector<16x16xf32>
    %8 = vector.extract_strided_slice %3 {offsets = [4, 0], sizes = [16, 16], strides = [1, 1]} : vector<30x16xf32> to vector<16x16xf32>
    %9 = vector.extract_strided_slice %3 {offsets = [5, 0], sizes = [16, 16], strides = [1, 1]} : vector<30x16xf32> to vector<16x16xf32>
    %10 = vector.extract_strided_slice %3 {offsets = [6, 0], sizes = [16, 16], strides = [1, 1]} : vector<30x16xf32> to vector<16x16xf32>
    %11 = vector.extract_strided_slice %3 {offsets = [7, 0], sizes = [16, 16], strides = [1, 1]} : vector<30x16xf32> to vector<16x16xf32>
    %12 = vector.extract_strided_slice %3 {offsets = [8, 0], sizes = [16, 16], strides = [1, 1]} : vector<30x16xf32> to vector<16x16xf32>
    %13 = vector.extract_strided_slice %3 {offsets = [9, 0], sizes = [16, 16], strides = [1, 1]} : vector<30x16xf32> to vector<16x16xf32>
    %14 = vector.extract_strided_slice %3 {offsets = [10, 0], sizes = [16, 16], strides = [1, 1]} : vector<30x16xf32> to vector<16x16xf32>
    %15 = vector.extract_strided_slice %3 {offsets = [11, 0], sizes = [16, 16], strides = [1, 1]} : vector<30x16xf32> to vector<16x16xf32>
    %16 = vector.extract_strided_slice %3 {offsets = [12, 0], sizes = [16, 16], strides = [1, 1]} : vector<30x16xf32> to vector<16x16xf32>
    %17 = vector.extract_strided_slice %3 {offsets = [13, 0], sizes = [16, 16], strides = [1, 1]} : vector<30x16xf32> to vector<16x16xf32>
    %18 = vector.extract_strided_slice %3 {offsets = [14, 0], sizes = [16, 16], strides = [1, 1]} : vector<30x16xf32> to vector<16x16xf32>
    %19 = tpu.concatenate %4, %5, %6, %7, %8, %9, %10, %11, %12, %13, %14, %15, %16, %17, %18 in 1 : vector<16x16xf32>, vector<16x16xf32>, vector<16x16xf32>, vector<16x16xf32>, vector<16x16xf32>, vector<16x16xf32>, vector<16x16xf32>, vector<16x16xf32>, vector<16x16xf32>, vector<16x16xf32>, vector<16x16xf32>, vector<16x16xf32>, vector<16x16xf32>, vector<16x16xf32>, vector<16x16xf32> -> vector<16x240xf32>
    %c1 = arith.constant 1 : index
    %c0_2 = arith.constant 0 : index
    %c0_3 = arith.constant 0 : index
    %20 = vector.load %arg0[%c1, %c0_2, %c0_3] : memref<2x16x16xf32, #tpu.memory_space<vmem>>, vector<1x16x16xf32>
    %21 = vector.shape_cast %20 : vector<1x16x16xf32> to vector<16x16xf32>
    %22 = tpu.concatenate %0, %21, %0 in 0 : vector<7x16xf32>, vector<16x16xf32>, vector<7x16xf32> -> vector<30x16xf32>
    %23 = vector.extract_strided_slice %22 {offsets = [0, 0], sizes = [16, 16], strides = [1, 1]} : vector<30x16xf32> to vector<16x16xf32>
    %24 = vector.extract_strided_slice %22 {offsets = [1, 0], sizes = [16, 16], strides = [1, 1]} : vector<30x16xf32> to vector<16x16xf32>
    %25 = vector.extract_strided_slice %22 {offsets = [2, 0], sizes = [16, 16], strides = [1, 1]} : vector<30x16xf32> to vector<16x16xf32>
    %26 = vector.extract_strided_slice %22 {offsets = [3, 0], sizes = [16, 16], strides = [1, 1]} : vector<30x16xf32> to vector<16x16xf32>
    %27 = vector.extract_strided_slice %22 {offsets = [4, 0], sizes = [16, 16], strides = [1, 1]} : vector<30x16xf32> to vector<16x16xf32>
    %28 = vector.extract_strided_slice %22 {offsets = [5, 0], sizes = [16, 16], strides = [1, 1]} : vector<30x16xf32> to vector<16x16xf32>
    %29 = vector.extract_strided_slice %22 {offsets = [6, 0], sizes = [16, 16], strides = [1, 1]} : vector<30x16xf32> to vector<16x16xf32>
    %30 = vector.extract_strided_slice %22 {offsets = [7, 0], sizes = [16, 16], strides = [1, 1]} : vector<30x16xf32> to vector<16x16xf32>
    %31 = vector.extract_strided_slice %22 {offsets = [8, 0], sizes = [16, 16], strides = [1, 1]} : vector<30x16xf32> to vector<16x16xf32>
    %32 = vector.extract_strided_slice %22 {offsets = [9, 0], sizes = [16, 16], strides = [1, 1]} : vector<30x16xf32> to vector<16x16xf32>
    %33 = vector.extract_strided_slice %22 {offsets = [10, 0], sizes = [16, 16], strides = [1, 1]} : vector<30x16xf32> to vector<16x16xf32>
    %34 = vector.extract_strided_slice %22 {offsets = [11, 0], sizes = [16, 16], strides = [1, 1]} : vector<30x16xf32> to vector<16x16xf32>
    %35 = vector.extract_strided_slice %22 {offsets = [12, 0], sizes = [16, 16], strides = [1, 1]} : vector<30x16xf32> to vector<16x16xf32>
    %36 = vector.extract_strided_slice %22 {offsets = [13, 0], sizes = [16, 16], strides = [1, 1]} : vector<30x16xf32> to vector<16x16xf32>
    %37 = vector.extract_strided_slice %22 {offsets = [14, 0], sizes = [16, 16], strides = [1, 1]} : vector<30x16xf32> to vector<16x16xf32>
    %38 = tpu.concatenate %23, %24, %25, %26, %27, %28, %29, %30, %31, %32, %33, %34, %35, %36, %37 in 1 : vector<16x16xf32>, vector<16x16xf32>, vector<16x16xf32>, vector<16x16xf32>, vector<16x16xf32>, vector<16x16xf32>, vector<16x16xf32>, vector<16x16xf32>, vector<16x16xf32>, vector<16x16xf32>, vector<16x16xf32>, vector<16x16xf32>, vector<16x16xf32>, vector<16x16xf32>, vector<16x16xf32> -> vector<16x240xf32>
    %39 = tpu.concatenate %19, %38 in 0 : vector<16x240xf32>, vector<16x240xf32> -> vector<32x240xf32>
    %40 = arith.truncf %39 : vector<32x240xf32> to vector<32x240xbf16>
    %c0_4 = arith.constant 0 : index
    %c0_5 = arith.constant 0 : index
    %41 = vector.load %arg1[%c0_4, %c0_5] : memref<240x96xbf16, #tpu.memory_space<vmem>>, vector<240x96xbf16>
    %cst_6 = arith.constant dense<0.000000e+00> : vector<32x96xf32>
    %42 = tpu.matmul %40, %41, %cst_6 {dimension_numbers = #tpu.dot_dimension_numbers<[1], [0], [0], [1], [0, 0, 1, 1], [], []>} : vector<32x240xbf16>, vector<240x96xbf16>, vector<32x96xf32> -> vector<32x96xf32>
    %c0_7 = arith.constant 0 : index
    %c0_8 = arith.constant 0 : index
    %43 = vector.load %arg2[%c0_7, %c0_8] : memref<1x96xf32, #tpu.memory_space<vmem>>, vector<1x96xf32>
    %44 = vector.broadcast %43 : vector<1x96xf32> to vector<32x96xf32>
    %45 = arith.addf %42, %44 : vector<32x96xf32>
    %cst_9 = arith.constant 0.000000e+00 : f32
    %46 = vector.broadcast %cst_9 : f32 to vector<32x96xf32>
    %47 = arith.maximumf %45, %46 : vector<32x96xf32>
    %c0_10 = arith.constant 0 : index
    %c0_11 = arith.constant 0 : index
    %c0_12 = arith.constant 0 : index
    %48 = vector.load %arg3[%c0_10, %c0_11, %c0_12] : memref<2x96x288xbf16, #tpu.memory_space<vmem>>, vector<1x96x288xbf16>
    %49 = vector.shape_cast %48 : vector<1x96x288xbf16> to vector<96x288xbf16>
    %c0_13 = arith.constant 0 : index
    %c0_14 = arith.constant 0 : index
    %c0_15 = arith.constant 0 : index
    %50 = vector.load %arg4[%c0_13, %c0_14, %c0_15] : memref<2x1x288xf32, #tpu.memory_space<vmem>>, vector<1x1x288xf32>
    %51 = vector.shape_cast %50 : vector<1x1x288xf32> to vector<1x288xf32>
    %c0_16 = arith.constant 0 : index
    %c0_17 = arith.constant 0 : index
    %c0_18 = arith.constant 0 : index
    %52 = vector.load %arg5[%c0_16, %c0_17, %c0_18] : memref<2x96x96xbf16, #tpu.memory_space<vmem>>, vector<1x96x96xbf16>
    %53 = vector.shape_cast %52 : vector<1x96x96xbf16> to vector<96x96xbf16>
    %c0_19 = arith.constant 0 : index
    %c0_20 = arith.constant 0 : index
    %c0_21 = arith.constant 0 : index
    %54 = vector.load %arg6[%c0_19, %c0_20, %c0_21] : memref<2x1x96xf32, #tpu.memory_space<vmem>>, vector<1x1x96xf32>
    %55 = vector.shape_cast %54 : vector<1x1x96xf32> to vector<1x96xf32>
    %56 = arith.truncf %47 : vector<32x96xf32> to vector<32x96xbf16>
    %cst_22 = arith.constant dense<0.000000e+00> : vector<32x288xf32>
    %57 = tpu.matmul %56, %49, %cst_22 {dimension_numbers = #tpu.dot_dimension_numbers<[1], [0], [0], [1], [0, 0, 1, 1], [], []>} : vector<32x96xbf16>, vector<96x288xbf16>, vector<32x288xf32> -> vector<32x288xf32>
    %58 = vector.broadcast %51 : vector<1x288xf32> to vector<32x288xf32>
    %59 = arith.addf %57, %58 : vector<32x288xf32>
    %60 = vector.extract_strided_slice %59 {offsets = [0, 0], sizes = [16, 96], strides = [1, 1]} : vector<32x288xf32> to vector<16x96xf32>
    %61 = vector.extract_strided_slice %59 {offsets = [0, 96], sizes = [16, 96], strides = [1, 1]} : vector<32x288xf32> to vector<16x96xf32>
    %62 = vector.extract_strided_slice %59 {offsets = [0, 192], sizes = [16, 96], strides = [1, 1]} : vector<32x288xf32> to vector<16x96xf32>
    %63 = vector.extract_strided_slice %60 {offsets = [0, 0], sizes = [16, 24], strides = [1, 1]} : vector<16x96xf32> to vector<16x24xf32>
    %64 = vector.extract_strided_slice %60 {offsets = [0, 24], sizes = [16, 24], strides = [1, 1]} : vector<16x96xf32> to vector<16x24xf32>
    %65 = vector.extract_strided_slice %60 {offsets = [0, 48], sizes = [16, 24], strides = [1, 1]} : vector<16x96xf32> to vector<16x24xf32>
    %66 = vector.extract_strided_slice %60 {offsets = [0, 72], sizes = [16, 24], strides = [1, 1]} : vector<16x96xf32> to vector<16x24xf32>
    %67 = vector.shape_cast %63 : vector<16x24xf32> to vector<1x16x24xf32>
    %68 = vector.shape_cast %64 : vector<16x24xf32> to vector<1x16x24xf32>
    %69 = vector.shape_cast %65 : vector<16x24xf32> to vector<1x16x24xf32>
    %70 = vector.shape_cast %66 : vector<16x24xf32> to vector<1x16x24xf32>
    %71 = tpu.concatenate %67, %68, %69, %70 in 0 : vector<1x16x24xf32>, vector<1x16x24xf32>, vector<1x16x24xf32>, vector<1x16x24xf32> -> vector<4x16x24xf32>
    %72 = arith.truncf %71 : vector<4x16x24xf32> to vector<4x16x24xbf16>
    %73 = vector.extract_strided_slice %61 {offsets = [0, 0], sizes = [16, 24], strides = [1, 1]} : vector<16x96xf32> to vector<16x24xf32>
    %74 = vector.extract_strided_slice %61 {offsets = [0, 24], sizes = [16, 24], strides = [1, 1]} : vector<16x96xf32> to vector<16x24xf32>
    %75 = vector.extract_strided_slice %61 {offsets = [0, 48], sizes = [16, 24], strides = [1, 1]} : vector<16x96xf32> to vector<16x24xf32>
    %76 = vector.extract_strided_slice %61 {offsets = [0, 72], sizes = [16, 24], strides = [1, 1]} : vector<16x96xf32> to vector<16x24xf32>
    %77 = vector.shape_cast %73 : vector<16x24xf32> to vector<1x16x24xf32>
    %78 = vector.shape_cast %74 : vector<16x24xf32> to vector<1x16x24xf32>
    %79 = vector.shape_cast %75 : vector<16x24xf32> to vector<1x16x24xf32>
    %80 = vector.shape_cast %76 : vector<16x24xf32> to vector<1x16x24xf32>
    %81 = tpu.concatenate %77, %78, %79, %80 in 0 : vector<1x16x24xf32>, vector<1x16x24xf32>, vector<1x16x24xf32>, vector<1x16x24xf32> -> vector<4x16x24xf32>
    %82 = arith.truncf %81 : vector<4x16x24xf32> to vector<4x16x24xbf16>
    %83 = vector.extract_strided_slice %62 {offsets = [0, 0], sizes = [16, 24], strides = [1, 1]} : vector<16x96xf32> to vector<16x24xf32>
    %84 = vector.extract_strided_slice %62 {offsets = [0, 24], sizes = [16, 24], strides = [1, 1]} : vector<16x96xf32> to vector<16x24xf32>
    %85 = vector.extract_strided_slice %62 {offsets = [0, 48], sizes = [16, 24], strides = [1, 1]} : vector<16x96xf32> to vector<16x24xf32>
    %86 = vector.extract_strided_slice %62 {offsets = [0, 72], sizes = [16, 24], strides = [1, 1]} : vector<16x96xf32> to vector<16x24xf32>
    %87 = vector.shape_cast %83 : vector<16x24xf32> to vector<1x16x24xf32>
    %88 = vector.shape_cast %84 : vector<16x24xf32> to vector<1x16x24xf32>
    %89 = vector.shape_cast %85 : vector<16x24xf32> to vector<1x16x24xf32>
    %90 = vector.shape_cast %86 : vector<16x24xf32> to vector<1x16x24xf32>
    %91 = tpu.concatenate %87, %88, %89, %90 in 0 : vector<1x16x24xf32>, vector<1x16x24xf32>, vector<1x16x24xf32>, vector<1x16x24xf32> -> vector<4x16x24xf32>
    %92 = arith.truncf %91 : vector<4x16x24xf32> to vector<4x16x24xbf16>
    "tpu.trace_start"() <{level = 10 : i32, message = "hqd,hkd->hqk"}> : () -> ()
    %cst_23 = arith.constant dense<0.000000e+00> : vector<4x16x16xf32>
    %93 = tpu.matmul %72, %82, %cst_23 {dimension_numbers = #tpu.dot_dimension_numbers<[2], [2], [1], [1], [0, 0, 0, 1, 1, 1], [0], [0]>} : vector<4x16x24xbf16>, vector<4x16x24xbf16>, vector<4x16x16xf32> -> vector<4x16x16xf32>
    "tpu.trace_stop"() : () -> ()
    %cst_24 = arith.constant 0.204124153 : f32
    %94 = vector.broadcast %cst_24 : f32 to vector<4x16x16xf32>
    %95 = arith.mulf %93, %94 : vector<4x16x16xf32>
    %cst_25 = arith.constant dense<0xFF800000> : vector<4x16xf32>
    %96 = vector.multi_reduction <maximumf>, %95, %cst_25 [2] : vector<4x16x16xf32> to vector<4x16xf32>
    %97 = vector.shape_cast %96 : vector<4x16xf32> to vector<4x16x1xf32>
    %98 = vector.broadcast %97 : vector<4x16x1xf32> to vector<4x16x16xf32>
    %99 = arith.subf %95, %98 : vector<4x16x16xf32>
    %100 = math.exp %99 : vector<4x16x16xf32>
    %cst_26 = arith.constant dense<0.000000e+00> : vector<4x16xf32>
    %101 = vector.multi_reduction <add>, %100, %cst_26 [2] : vector<4x16x16xf32> to vector<4x16xf32>
    %102 = vector.shape_cast %101 : vector<4x16xf32> to vector<4x16x1xf32>
    %103 = tpu.reciprocal %102 {approx = true} : vector<4x16x1xf32> -> vector<4x16x1xf32>
    %104 = vector.broadcast %103 : vector<4x16x1xf32> to vector<4x16x16xf32>
    %105 = arith.mulf %100, %104 : vector<4x16x16xf32>
    %106 = arith.truncf %105 : vector<4x16x16xf32> to vector<4x16x16xbf16>
    "tpu.trace_start"() <{level = 10 : i32, message = "hqk,hkd->hqd"}> : () -> ()
    %cst_27 = arith.constant dense<0.000000e+00> : vector<4x16x24xf32>
    %107 = tpu.matmul %106, %92, %cst_27 {dimension_numbers = #tpu.dot_dimension_numbers<[2], [1], [1], [2], [0, 0, 0, 1, 1, 2], [0], [0]>} : vector<4x16x16xbf16>, vector<4x16x24xbf16>, vector<4x16x24xf32> -> vector<4x16x24xf32>
    "tpu.trace_stop"() : () -> ()
    %108 = vector.extract_strided_slice %107 {offsets = [0, 0, 0], sizes = [1, 16, 24], strides = [1, 1, 1]} : vector<4x16x24xf32> to vector<1x16x24xf32>
    %109 = vector.shape_cast %108 : vector<1x16x24xf32> to vector<16x24xf32>
    %110 = vector.extract_strided_slice %107 {offsets = [1, 0, 0], sizes = [1, 16, 24], strides = [1, 1, 1]} : vector<4x16x24xf32> to vector<1x16x24xf32>
    %111 = vector.shape_cast %110 : vector<1x16x24xf32> to vector<16x24xf32>
    %112 = vector.extract_strided_slice %107 {offsets = [2, 0, 0], sizes = [1, 16, 24], strides = [1, 1, 1]} : vector<4x16x24xf32> to vector<1x16x24xf32>
    %113 = vector.shape_cast %112 : vector<1x16x24xf32> to vector<16x24xf32>
    %114 = vector.extract_strided_slice %107 {offsets = [3, 0, 0], sizes = [1, 16, 24], strides = [1, 1, 1]} : vector<4x16x24xf32> to vector<1x16x24xf32>
    %115 = vector.shape_cast %114 : vector<1x16x24xf32> to vector<16x24xf32>
    %116 = tpu.concatenate %109, %111, %113, %115 in 1 : vector<16x24xf32>, vector<16x24xf32>, vector<16x24xf32>, vector<16x24xf32> -> vector<16x96xf32>
    %117 = vector.extract_strided_slice %59 {offsets = [16, 0], sizes = [16, 96], strides = [1, 1]} : vector<32x288xf32> to vector<16x96xf32>
    %118 = vector.extract_strided_slice %59 {offsets = [16, 96], sizes = [16, 96], strides = [1, 1]} : vector<32x288xf32> to vector<16x96xf32>
    %119 = vector.extract_strided_slice %59 {offsets = [16, 192], sizes = [16, 96], strides = [1, 1]} : vector<32x288xf32> to vector<16x96xf32>
    %120 = vector.extract_strided_slice %117 {offsets = [0, 0], sizes = [16, 24], strides = [1, 1]} : vector<16x96xf32> to vector<16x24xf32>
    %121 = vector.extract_strided_slice %117 {offsets = [0, 24], sizes = [16, 24], strides = [1, 1]} : vector<16x96xf32> to vector<16x24xf32>
    %122 = vector.extract_strided_slice %117 {offsets = [0, 48], sizes = [16, 24], strides = [1, 1]} : vector<16x96xf32> to vector<16x24xf32>
    %123 = vector.extract_strided_slice %117 {offsets = [0, 72], sizes = [16, 24], strides = [1, 1]} : vector<16x96xf32> to vector<16x24xf32>
    %124 = vector.shape_cast %120 : vector<16x24xf32> to vector<1x16x24xf32>
    %125 = vector.shape_cast %121 : vector<16x24xf32> to vector<1x16x24xf32>
    %126 = vector.shape_cast %122 : vector<16x24xf32> to vector<1x16x24xf32>
    %127 = vector.shape_cast %123 : vector<16x24xf32> to vector<1x16x24xf32>
    %128 = tpu.concatenate %124, %125, %126, %127 in 0 : vector<1x16x24xf32>, vector<1x16x24xf32>, vector<1x16x24xf32>, vector<1x16x24xf32> -> vector<4x16x24xf32>
    %129 = arith.truncf %128 : vector<4x16x24xf32> to vector<4x16x24xbf16>
    %130 = vector.extract_strided_slice %118 {offsets = [0, 0], sizes = [16, 24], strides = [1, 1]} : vector<16x96xf32> to vector<16x24xf32>
    %131 = vector.extract_strided_slice %118 {offsets = [0, 24], sizes = [16, 24], strides = [1, 1]} : vector<16x96xf32> to vector<16x24xf32>
    %132 = vector.extract_strided_slice %118 {offsets = [0, 48], sizes = [16, 24], strides = [1, 1]} : vector<16x96xf32> to vector<16x24xf32>
    %133 = vector.extract_strided_slice %118 {offsets = [0, 72], sizes = [16, 24], strides = [1, 1]} : vector<16x96xf32> to vector<16x24xf32>
    %134 = vector.shape_cast %130 : vector<16x24xf32> to vector<1x16x24xf32>
    %135 = vector.shape_cast %131 : vector<16x24xf32> to vector<1x16x24xf32>
    %136 = vector.shape_cast %132 : vector<16x24xf32> to vector<1x16x24xf32>
    %137 = vector.shape_cast %133 : vector<16x24xf32> to vector<1x16x24xf32>
    %138 = tpu.concatenate %134, %135, %136, %137 in 0 : vector<1x16x24xf32>, vector<1x16x24xf32>, vector<1x16x24xf32>, vector<1x16x24xf32> -> vector<4x16x24xf32>
    %139 = arith.truncf %138 : vector<4x16x24xf32> to vector<4x16x24xbf16>
    %140 = vector.extract_strided_slice %119 {offsets = [0, 0], sizes = [16, 24], strides = [1, 1]} : vector<16x96xf32> to vector<16x24xf32>
    %141 = vector.extract_strided_slice %119 {offsets = [0, 24], sizes = [16, 24], strides = [1, 1]} : vector<16x96xf32> to vector<16x24xf32>
    %142 = vector.extract_strided_slice %119 {offsets = [0, 48], sizes = [16, 24], strides = [1, 1]} : vector<16x96xf32> to vector<16x24xf32>
    %143 = vector.extract_strided_slice %119 {offsets = [0, 72], sizes = [16, 24], strides = [1, 1]} : vector<16x96xf32> to vector<16x24xf32>
    %144 = vector.shape_cast %140 : vector<16x24xf32> to vector<1x16x24xf32>
    %145 = vector.shape_cast %141 : vector<16x24xf32> to vector<1x16x24xf32>
    %146 = vector.shape_cast %142 : vector<16x24xf32> to vector<1x16x24xf32>
    %147 = vector.shape_cast %143 : vector<16x24xf32> to vector<1x16x24xf32>
    %148 = tpu.concatenate %144, %145, %146, %147 in 0 : vector<1x16x24xf32>, vector<1x16x24xf32>, vector<1x16x24xf32>, vector<1x16x24xf32> -> vector<4x16x24xf32>
    %149 = arith.truncf %148 : vector<4x16x24xf32> to vector<4x16x24xbf16>
    "tpu.trace_start"() <{level = 10 : i32, message = "hqd,hkd->hqk"}> : () -> ()
    %cst_28 = arith.constant dense<0.000000e+00> : vector<4x16x16xf32>
    %150 = tpu.matmul %129, %139, %cst_28 {dimension_numbers = #tpu.dot_dimension_numbers<[2], [2], [1], [1], [0, 0, 0, 1, 1, 1], [0], [0]>} : vector<4x16x24xbf16>, vector<4x16x24xbf16>, vector<4x16x16xf32> -> vector<4x16x16xf32>
    "tpu.trace_stop"() : () -> ()
    %cst_29 = arith.constant 0.204124153 : f32
    %151 = vector.broadcast %cst_29 : f32 to vector<4x16x16xf32>
    %152 = arith.mulf %150, %151 : vector<4x16x16xf32>
    %cst_30 = arith.constant dense<0xFF800000> : vector<4x16xf32>
    %153 = vector.multi_reduction <maximumf>, %152, %cst_30 [2] : vector<4x16x16xf32> to vector<4x16xf32>
    %154 = vector.shape_cast %153 : vector<4x16xf32> to vector<4x16x1xf32>
    %155 = vector.broadcast %154 : vector<4x16x1xf32> to vector<4x16x16xf32>
    %156 = arith.subf %152, %155 : vector<4x16x16xf32>
    %157 = math.exp %156 : vector<4x16x16xf32>
    %cst_31 = arith.constant dense<0.000000e+00> : vector<4x16xf32>
    %158 = vector.multi_reduction <add>, %157, %cst_31 [2] : vector<4x16x16xf32> to vector<4x16xf32>
    %159 = vector.shape_cast %158 : vector<4x16xf32> to vector<4x16x1xf32>
    %160 = tpu.reciprocal %159 {approx = true} : vector<4x16x1xf32> -> vector<4x16x1xf32>
    %161 = vector.broadcast %160 : vector<4x16x1xf32> to vector<4x16x16xf32>
    %162 = arith.mulf %157, %161 : vector<4x16x16xf32>
    %163 = arith.truncf %162 : vector<4x16x16xf32> to vector<4x16x16xbf16>
    "tpu.trace_start"() <{level = 10 : i32, message = "hqk,hkd->hqd"}> : () -> ()
    %cst_32 = arith.constant dense<0.000000e+00> : vector<4x16x24xf32>
    %164 = tpu.matmul %163, %149, %cst_32 {dimension_numbers = #tpu.dot_dimension_numbers<[2], [1], [1], [2], [0, 0, 0, 1, 1, 2], [0], [0]>} : vector<4x16x16xbf16>, vector<4x16x24xbf16>, vector<4x16x24xf32> -> vector<4x16x24xf32>
    "tpu.trace_stop"() : () -> ()
    %165 = vector.extract_strided_slice %164 {offsets = [0, 0, 0], sizes = [1, 16, 24], strides = [1, 1, 1]} : vector<4x16x24xf32> to vector<1x16x24xf32>
    %166 = vector.shape_cast %165 : vector<1x16x24xf32> to vector<16x24xf32>
    %167 = vector.extract_strided_slice %164 {offsets = [1, 0, 0], sizes = [1, 16, 24], strides = [1, 1, 1]} : vector<4x16x24xf32> to vector<1x16x24xf32>
    %168 = vector.shape_cast %167 : vector<1x16x24xf32> to vector<16x24xf32>
    %169 = vector.extract_strided_slice %164 {offsets = [2, 0, 0], sizes = [1, 16, 24], strides = [1, 1, 1]} : vector<4x16x24xf32> to vector<1x16x24xf32>
    %170 = vector.shape_cast %169 : vector<1x16x24xf32> to vector<16x24xf32>
    %171 = vector.extract_strided_slice %164 {offsets = [3, 0, 0], sizes = [1, 16, 24], strides = [1, 1, 1]} : vector<4x16x24xf32> to vector<1x16x24xf32>
    %172 = vector.shape_cast %171 : vector<1x16x24xf32> to vector<16x24xf32>
    %173 = tpu.concatenate %166, %168, %170, %172 in 1 : vector<16x24xf32>, vector<16x24xf32>, vector<16x24xf32>, vector<16x24xf32> -> vector<16x96xf32>
    %174 = tpu.concatenate %116, %173 in 0 : vector<16x96xf32>, vector<16x96xf32> -> vector<32x96xf32>
    %175 = arith.truncf %174 : vector<32x96xf32> to vector<32x96xbf16>
    %cst_33 = arith.constant dense<0.000000e+00> : vector<32x96xf32>
    %176 = tpu.matmul %175, %53, %cst_33 {dimension_numbers = #tpu.dot_dimension_numbers<[1], [0], [0], [1], [0, 0, 1, 1], [], []>} : vector<32x96xbf16>, vector<96x96xbf16>, vector<32x96xf32> -> vector<32x96xf32>
    %177 = vector.broadcast %55 : vector<1x96xf32> to vector<32x96xf32>
    %178 = arith.addf %176, %177 : vector<32x96xf32>
    %179 = arith.addf %47, %178 : vector<32x96xf32>
    %c0_34 = arith.constant 0 : index
    %c0_35 = arith.constant 0 : index
    %c0_36 = arith.constant 0 : index
    %180 = vector.load %arg7[%c0_34, %c0_35, %c0_36] : memref<2x1x96xf32, #tpu.memory_space<vmem>>, vector<1x1x96xf32>
    %181 = vector.shape_cast %180 : vector<1x1x96xf32> to vector<1x96xf32>
    %c0_37 = arith.constant 0 : index
    %c0_38 = arith.constant 0 : index
    %c0_39 = arith.constant 0 : index
    %182 = vector.load %arg8[%c0_37, %c0_38, %c0_39] : memref<2x1x96xf32, #tpu.memory_space<vmem>>, vector<1x1x96xf32>
    %183 = vector.shape_cast %182 : vector<1x1x96xf32> to vector<1x96xf32>
    %cst_40 = arith.constant dense<0.000000e+00> : vector<32xf32>
    %184 = vector.multi_reduction <add>, %179, %cst_40 [1] : vector<32x96xf32> to vector<32xf32>
    %185 = vector.shape_cast %184 : vector<32xf32> to vector<32x1xf32>
    %cst_41 = arith.constant 9.600000e+01 : f32
    %186 = vector.broadcast %cst_41 : f32 to vector<32x1xf32>
    %187 = arith.divf %185, %186 : vector<32x1xf32>
    %188 = vector.broadcast %187 : vector<32x1xf32> to vector<32x96xf32>
    %189 = arith.subf %179, %188 : vector<32x96xf32>
    %190 = arith.mulf %189, %189 : vector<32x96xf32>
    %cst_42 = arith.constant dense<0.000000e+00> : vector<32xf32>
    %191 = vector.multi_reduction <add>, %190, %cst_42 [1] : vector<32x96xf32> to vector<32xf32>
    %192 = vector.shape_cast %191 : vector<32xf32> to vector<32x1xf32>
    %cst_43 = arith.constant 9.600000e+01 : f32
    %193 = vector.broadcast %cst_43 : f32 to vector<32x1xf32>
    %194 = arith.divf %192, %193 : vector<32x1xf32>
    %195 = vector.broadcast %187 : vector<32x1xf32> to vector<32x96xf32>
    %196 = arith.subf %179, %195 : vector<32x96xf32>
    %cst_44 = arith.constant 9.99999974E-6 : f32
    %197 = vector.broadcast %cst_44 : f32 to vector<32x1xf32>
    %198 = arith.addf %194, %197 : vector<32x1xf32>
    %199 = math.rsqrt %198 : vector<32x1xf32>
    %200 = vector.broadcast %199 : vector<32x1xf32> to vector<32x96xf32>
    %201 = arith.mulf %196, %200 : vector<32x96xf32>
    %202 = vector.broadcast %181 : vector<1x96xf32> to vector<32x96xf32>
    %203 = arith.mulf %201, %202 : vector<32x96xf32>
    %204 = vector.broadcast %183 : vector<1x96xf32> to vector<32x96xf32>
    %205 = arith.addf %203, %204 : vector<32x96xf32>
    %206 = arith.truncf %205 : vector<32x96xf32> to vector<32x96xbf16>
    %c0_45 = arith.constant 0 : index
    %c0_46 = arith.constant 0 : index
    %c0_47 = arith.constant 0 : index
    %207 = vector.load %arg9[%c0_45, %c0_46, %c0_47] : memref<2x96x256xbf16, #tpu.memory_space<vmem>>, vector<1x96x256xbf16>
    %208 = vector.shape_cast %207 : vector<1x96x256xbf16> to vector<96x256xbf16>
    %cst_48 = arith.constant dense<0.000000e+00> : vector<32x256xf32>
    %209 = tpu.matmul %206, %208, %cst_48 {dimension_numbers = #tpu.dot_dimension_numbers<[1], [0], [0], [1], [0, 0, 1, 1], [], []>} : vector<32x96xbf16>, vector<96x256xbf16>, vector<32x256xf32> -> vector<32x256xf32>
    %c0_49 = arith.constant 0 : index
    %c0_50 = arith.constant 0 : index
    %c0_51 = arith.constant 0 : index
    %210 = vector.load %arg10[%c0_49, %c0_50, %c0_51] : memref<2x1x256xf32, #tpu.memory_space<vmem>>, vector<1x1x256xf32>
    %211 = vector.shape_cast %210 : vector<1x1x256xf32> to vector<1x256xf32>
    %212 = vector.broadcast %211 : vector<1x256xf32> to vector<32x256xf32>
    %213 = arith.addf %209, %212 : vector<32x256xf32>
    %cst_52 = arith.constant 0.000000e+00 : f32
    %214 = vector.broadcast %cst_52 : f32 to vector<32x256xf32>
    %215 = arith.maximumf %213, %214 : vector<32x256xf32>
    %216 = arith.truncf %215 : vector<32x256xf32> to vector<32x256xbf16>
    %c0_53 = arith.constant 0 : index
    %c0_54 = arith.constant 0 : index
    %c0_55 = arith.constant 0 : index
    %217 = vector.load %arg11[%c0_53, %c0_54, %c0_55] : memref<2x256x96xbf16, #tpu.memory_space<vmem>>, vector<1x256x96xbf16>
    %218 = vector.shape_cast %217 : vector<1x256x96xbf16> to vector<256x96xbf16>
    %cst_56 = arith.constant dense<0.000000e+00> : vector<32x96xf32>
    %219 = tpu.matmul %216, %218, %cst_56 {dimension_numbers = #tpu.dot_dimension_numbers<[1], [0], [0], [1], [0, 0, 1, 1], [], []>} : vector<32x256xbf16>, vector<256x96xbf16>, vector<32x96xf32> -> vector<32x96xf32>
    %c0_57 = arith.constant 0 : index
    %c0_58 = arith.constant 0 : index
    %c0_59 = arith.constant 0 : index
    %220 = vector.load %arg12[%c0_57, %c0_58, %c0_59] : memref<2x1x96xf32, #tpu.memory_space<vmem>>, vector<1x1x96xf32>
    %221 = vector.shape_cast %220 : vector<1x1x96xf32> to vector<1x96xf32>
    %222 = vector.broadcast %221 : vector<1x96xf32> to vector<32x96xf32>
    %223 = arith.addf %219, %222 : vector<32x96xf32>
    %224 = arith.addf %205, %223 : vector<32x96xf32>
    %c0_60 = arith.constant 0 : index
    %c0_61 = arith.constant 0 : index
    %c0_62 = arith.constant 0 : index
    %225 = vector.load %arg13[%c0_60, %c0_61, %c0_62] : memref<2x1x96xf32, #tpu.memory_space<vmem>>, vector<1x1x96xf32>
    %226 = vector.shape_cast %225 : vector<1x1x96xf32> to vector<1x96xf32>
    %c0_63 = arith.constant 0 : index
    %c0_64 = arith.constant 0 : index
    %c0_65 = arith.constant 0 : index
    %227 = vector.load %arg14[%c0_63, %c0_64, %c0_65] : memref<2x1x96xf32, #tpu.memory_space<vmem>>, vector<1x1x96xf32>
    %228 = vector.shape_cast %227 : vector<1x1x96xf32> to vector<1x96xf32>
    %cst_66 = arith.constant dense<0.000000e+00> : vector<32xf32>
    %229 = vector.multi_reduction <add>, %224, %cst_66 [1] : vector<32x96xf32> to vector<32xf32>
    %230 = vector.shape_cast %229 : vector<32xf32> to vector<32x1xf32>
    %cst_67 = arith.constant 9.600000e+01 : f32
    %231 = vector.broadcast %cst_67 : f32 to vector<32x1xf32>
    %232 = arith.divf %230, %231 : vector<32x1xf32>
    %233 = vector.broadcast %232 : vector<32x1xf32> to vector<32x96xf32>
    %234 = arith.subf %224, %233 : vector<32x96xf32>
    %235 = arith.mulf %234, %234 : vector<32x96xf32>
    %cst_68 = arith.constant dense<0.000000e+00> : vector<32xf32>
    %236 = vector.multi_reduction <add>, %235, %cst_68 [1] : vector<32x96xf32> to vector<32xf32>
    %237 = vector.shape_cast %236 : vector<32xf32> to vector<32x1xf32>
    %cst_69 = arith.constant 9.600000e+01 : f32
    %238 = vector.broadcast %cst_69 : f32 to vector<32x1xf32>
    %239 = arith.divf %237, %238 : vector<32x1xf32>
    %240 = vector.broadcast %232 : vector<32x1xf32> to vector<32x96xf32>
    %241 = arith.subf %224, %240 : vector<32x96xf32>
    %cst_70 = arith.constant 9.99999974E-6 : f32
    %242 = vector.broadcast %cst_70 : f32 to vector<32x1xf32>
    %243 = arith.addf %239, %242 : vector<32x1xf32>
    %244 = math.rsqrt %243 : vector<32x1xf32>
    %245 = vector.broadcast %244 : vector<32x1xf32> to vector<32x96xf32>
    %246 = arith.mulf %241, %245 : vector<32x96xf32>
    %247 = vector.broadcast %226 : vector<1x96xf32> to vector<32x96xf32>
    %248 = arith.mulf %246, %247 : vector<32x96xf32>
    %249 = vector.broadcast %228 : vector<1x96xf32> to vector<32x96xf32>
    %250 = arith.addf %248, %249 : vector<32x96xf32>
    %c1_71 = arith.constant 1 : index
    %c0_72 = arith.constant 0 : index
    %c0_73 = arith.constant 0 : index
    %251 = vector.load %arg3[%c1_71, %c0_72, %c0_73] : memref<2x96x288xbf16, #tpu.memory_space<vmem>>, vector<1x96x288xbf16>
    %252 = vector.shape_cast %251 : vector<1x96x288xbf16> to vector<96x288xbf16>
    %c1_74 = arith.constant 1 : index
    %c0_75 = arith.constant 0 : index
    %c0_76 = arith.constant 0 : index
    %253 = vector.load %arg4[%c1_74, %c0_75, %c0_76] : memref<2x1x288xf32, #tpu.memory_space<vmem>>, vector<1x1x288xf32>
    %254 = vector.shape_cast %253 : vector<1x1x288xf32> to vector<1x288xf32>
    %c1_77 = arith.constant 1 : index
    %c0_78 = arith.constant 0 : index
    %c0_79 = arith.constant 0 : index
    %255 = vector.load %arg5[%c1_77, %c0_78, %c0_79] : memref<2x96x96xbf16, #tpu.memory_space<vmem>>, vector<1x96x96xbf16>
    %256 = vector.shape_cast %255 : vector<1x96x96xbf16> to vector<96x96xbf16>
    %c1_80 = arith.constant 1 : index
    %c0_81 = arith.constant 0 : index
    %c0_82 = arith.constant 0 : index
    %257 = vector.load %arg6[%c1_80, %c0_81, %c0_82] : memref<2x1x96xf32, #tpu.memory_space<vmem>>, vector<1x1x96xf32>
    %258 = vector.shape_cast %257 : vector<1x1x96xf32> to vector<1x96xf32>
    %259 = arith.truncf %250 : vector<32x96xf32> to vector<32x96xbf16>
    %cst_83 = arith.constant dense<0.000000e+00> : vector<32x288xf32>
    %260 = tpu.matmul %259, %252, %cst_83 {dimension_numbers = #tpu.dot_dimension_numbers<[1], [0], [0], [1], [0, 0, 1, 1], [], []>} : vector<32x96xbf16>, vector<96x288xbf16>, vector<32x288xf32> -> vector<32x288xf32>
    %261 = vector.broadcast %254 : vector<1x288xf32> to vector<32x288xf32>
    %262 = arith.addf %260, %261 : vector<32x288xf32>
    %263 = vector.extract_strided_slice %262 {offsets = [0, 0], sizes = [16, 96], strides = [1, 1]} : vector<32x288xf32> to vector<16x96xf32>
    %264 = vector.extract_strided_slice %262 {offsets = [0, 96], sizes = [16, 96], strides = [1, 1]} : vector<32x288xf32> to vector<16x96xf32>
    %265 = vector.extract_strided_slice %262 {offsets = [0, 192], sizes = [16, 96], strides = [1, 1]} : vector<32x288xf32> to vector<16x96xf32>
    %266 = vector.extract_strided_slice %263 {offsets = [0, 0], sizes = [16, 24], strides = [1, 1]} : vector<16x96xf32> to vector<16x24xf32>
    %267 = vector.extract_strided_slice %263 {offsets = [0, 24], sizes = [16, 24], strides = [1, 1]} : vector<16x96xf32> to vector<16x24xf32>
    %268 = vector.extract_strided_slice %263 {offsets = [0, 48], sizes = [16, 24], strides = [1, 1]} : vector<16x96xf32> to vector<16x24xf32>
    %269 = vector.extract_strided_slice %263 {offsets = [0, 72], sizes = [16, 24], strides = [1, 1]} : vector<16x96xf32> to vector<16x24xf32>
    %270 = vector.shape_cast %266 : vector<16x24xf32> to vector<1x16x24xf32>
    %271 = vector.shape_cast %267 : vector<16x24xf32> to vector<1x16x24xf32>
    %272 = vector.shape_cast %268 : vector<16x24xf32> to vector<1x16x24xf32>
    %273 = vector.shape_cast %269 : vector<16x24xf32> to vector<1x16x24xf32>
    %274 = tpu.concatenate %270, %271, %272, %273 in 0 : vector<1x16x24xf32>, vector<1x16x24xf32>, vector<1x16x24xf32>, vector<1x16x24xf32> -> vector<4x16x24xf32>
    %275 = arith.truncf %274 : vector<4x16x24xf32> to vector<4x16x24xbf16>
    %276 = vector.extract_strided_slice %264 {offsets = [0, 0], sizes = [16, 24], strides = [1, 1]} : vector<16x96xf32> to vector<16x24xf32>
    %277 = vector.extract_strided_slice %264 {offsets = [0, 24], sizes = [16, 24], strides = [1, 1]} : vector<16x96xf32> to vector<16x24xf32>
    %278 = vector.extract_strided_slice %264 {offsets = [0, 48], sizes = [16, 24], strides = [1, 1]} : vector<16x96xf32> to vector<16x24xf32>
    %279 = vector.extract_strided_slice %264 {offsets = [0, 72], sizes = [16, 24], strides = [1, 1]} : vector<16x96xf32> to vector<16x24xf32>
    %280 = vector.shape_cast %276 : vector<16x24xf32> to vector<1x16x24xf32>
    %281 = vector.shape_cast %277 : vector<16x24xf32> to vector<1x16x24xf32>
    %282 = vector.shape_cast %278 : vector<16x24xf32> to vector<1x16x24xf32>
    %283 = vector.shape_cast %279 : vector<16x24xf32> to vector<1x16x24xf32>
    %284 = tpu.concatenate %280, %281, %282, %283 in 0 : vector<1x16x24xf32>, vector<1x16x24xf32>, vector<1x16x24xf32>, vector<1x16x24xf32> -> vector<4x16x24xf32>
    %285 = arith.truncf %284 : vector<4x16x24xf32> to vector<4x16x24xbf16>
    %286 = vector.extract_strided_slice %265 {offsets = [0, 0], sizes = [16, 24], strides = [1, 1]} : vector<16x96xf32> to vector<16x24xf32>
    %287 = vector.extract_strided_slice %265 {offsets = [0, 24], sizes = [16, 24], strides = [1, 1]} : vector<16x96xf32> to vector<16x24xf32>
    %288 = vector.extract_strided_slice %265 {offsets = [0, 48], sizes = [16, 24], strides = [1, 1]} : vector<16x96xf32> to vector<16x24xf32>
    %289 = vector.extract_strided_slice %265 {offsets = [0, 72], sizes = [16, 24], strides = [1, 1]} : vector<16x96xf32> to vector<16x24xf32>
    %290 = vector.shape_cast %286 : vector<16x24xf32> to vector<1x16x24xf32>
    %291 = vector.shape_cast %287 : vector<16x24xf32> to vector<1x16x24xf32>
    %292 = vector.shape_cast %288 : vector<16x24xf32> to vector<1x16x24xf32>
    %293 = vector.shape_cast %289 : vector<16x24xf32> to vector<1x16x24xf32>
    %294 = tpu.concatenate %290, %291, %292, %293 in 0 : vector<1x16x24xf32>, vector<1x16x24xf32>, vector<1x16x24xf32>, vector<1x16x24xf32> -> vector<4x16x24xf32>
    %295 = arith.truncf %294 : vector<4x16x24xf32> to vector<4x16x24xbf16>
    "tpu.trace_start"() <{level = 10 : i32, message = "hqd,hkd->hqk"}> : () -> ()
    %cst_84 = arith.constant dense<0.000000e+00> : vector<4x16x16xf32>
    %296 = tpu.matmul %275, %285, %cst_84 {dimension_numbers = #tpu.dot_dimension_numbers<[2], [2], [1], [1], [0, 0, 0, 1, 1, 1], [0], [0]>} : vector<4x16x24xbf16>, vector<4x16x24xbf16>, vector<4x16x16xf32> -> vector<4x16x16xf32>
    "tpu.trace_stop"() : () -> ()
    %cst_85 = arith.constant 0.204124153 : f32
    %297 = vector.broadcast %cst_85 : f32 to vector<4x16x16xf32>
    %298 = arith.mulf %296, %297 : vector<4x16x16xf32>
    %cst_86 = arith.constant dense<0xFF800000> : vector<4x16xf32>
    %299 = vector.multi_reduction <maximumf>, %298, %cst_86 [2] : vector<4x16x16xf32> to vector<4x16xf32>
    %300 = vector.shape_cast %299 : vector<4x16xf32> to vector<4x16x1xf32>
    %301 = vector.broadcast %300 : vector<4x16x1xf32> to vector<4x16x16xf32>
    %302 = arith.subf %298, %301 : vector<4x16x16xf32>
    %303 = math.exp %302 : vector<4x16x16xf32>
    %cst_87 = arith.constant dense<0.000000e+00> : vector<4x16xf32>
    %304 = vector.multi_reduction <add>, %303, %cst_87 [2] : vector<4x16x16xf32> to vector<4x16xf32>
    %305 = vector.shape_cast %304 : vector<4x16xf32> to vector<4x16x1xf32>
    %306 = tpu.reciprocal %305 {approx = true} : vector<4x16x1xf32> -> vector<4x16x1xf32>
    %307 = vector.broadcast %306 : vector<4x16x1xf32> to vector<4x16x16xf32>
    %308 = arith.mulf %303, %307 : vector<4x16x16xf32>
    %309 = arith.truncf %308 : vector<4x16x16xf32> to vector<4x16x16xbf16>
    "tpu.trace_start"() <{level = 10 : i32, message = "hqk,hkd->hqd"}> : () -> ()
    %cst_88 = arith.constant dense<0.000000e+00> : vector<4x16x24xf32>
    %310 = tpu.matmul %309, %295, %cst_88 {dimension_numbers = #tpu.dot_dimension_numbers<[2], [1], [1], [2], [0, 0, 0, 1, 1, 2], [0], [0]>} : vector<4x16x16xbf16>, vector<4x16x24xbf16>, vector<4x16x24xf32> -> vector<4x16x24xf32>
    "tpu.trace_stop"() : () -> ()
    %311 = vector.extract_strided_slice %310 {offsets = [0, 0, 0], sizes = [1, 16, 24], strides = [1, 1, 1]} : vector<4x16x24xf32> to vector<1x16x24xf32>
    %312 = vector.shape_cast %311 : vector<1x16x24xf32> to vector<16x24xf32>
    %313 = vector.extract_strided_slice %310 {offsets = [1, 0, 0], sizes = [1, 16, 24], strides = [1, 1, 1]} : vector<4x16x24xf32> to vector<1x16x24xf32>
    %314 = vector.shape_cast %313 : vector<1x16x24xf32> to vector<16x24xf32>
    %315 = vector.extract_strided_slice %310 {offsets = [2, 0, 0], sizes = [1, 16, 24], strides = [1, 1, 1]} : vector<4x16x24xf32> to vector<1x16x24xf32>
    %316 = vector.shape_cast %315 : vector<1x16x24xf32> to vector<16x24xf32>
    %317 = vector.extract_strided_slice %310 {offsets = [3, 0, 0], sizes = [1, 16, 24], strides = [1, 1, 1]} : vector<4x16x24xf32> to vector<1x16x24xf32>
    %318 = vector.shape_cast %317 : vector<1x16x24xf32> to vector<16x24xf32>
    %319 = tpu.concatenate %312, %314, %316, %318 in 1 : vector<16x24xf32>, vector<16x24xf32>, vector<16x24xf32>, vector<16x24xf32> -> vector<16x96xf32>
    %320 = vector.extract_strided_slice %262 {offsets = [16, 0], sizes = [16, 96], strides = [1, 1]} : vector<32x288xf32> to vector<16x96xf32>
    %321 = vector.extract_strided_slice %262 {offsets = [16, 96], sizes = [16, 96], strides = [1, 1]} : vector<32x288xf32> to vector<16x96xf32>
    %322 = vector.extract_strided_slice %262 {offsets = [16, 192], sizes = [16, 96], strides = [1, 1]} : vector<32x288xf32> to vector<16x96xf32>
    %323 = vector.extract_strided_slice %320 {offsets = [0, 0], sizes = [16, 24], strides = [1, 1]} : vector<16x96xf32> to vector<16x24xf32>
    %324 = vector.extract_strided_slice %320 {offsets = [0, 24], sizes = [16, 24], strides = [1, 1]} : vector<16x96xf32> to vector<16x24xf32>
    %325 = vector.extract_strided_slice %320 {offsets = [0, 48], sizes = [16, 24], strides = [1, 1]} : vector<16x96xf32> to vector<16x24xf32>
    %326 = vector.extract_strided_slice %320 {offsets = [0, 72], sizes = [16, 24], strides = [1, 1]} : vector<16x96xf32> to vector<16x24xf32>
    %327 = vector.shape_cast %323 : vector<16x24xf32> to vector<1x16x24xf32>
    %328 = vector.shape_cast %324 : vector<16x24xf32> to vector<1x16x24xf32>
    %329 = vector.shape_cast %325 : vector<16x24xf32> to vector<1x16x24xf32>
    %330 = vector.shape_cast %326 : vector<16x24xf32> to vector<1x16x24xf32>
    %331 = tpu.concatenate %327, %328, %329, %330 in 0 : vector<1x16x24xf32>, vector<1x16x24xf32>, vector<1x16x24xf32>, vector<1x16x24xf32> -> vector<4x16x24xf32>
    %332 = arith.truncf %331 : vector<4x16x24xf32> to vector<4x16x24xbf16>
    %333 = vector.extract_strided_slice %321 {offsets = [0, 0], sizes = [16, 24], strides = [1, 1]} : vector<16x96xf32> to vector<16x24xf32>
    %334 = vector.extract_strided_slice %321 {offsets = [0, 24], sizes = [16, 24], strides = [1, 1]} : vector<16x96xf32> to vector<16x24xf32>
    %335 = vector.extract_strided_slice %321 {offsets = [0, 48], sizes = [16, 24], strides = [1, 1]} : vector<16x96xf32> to vector<16x24xf32>
    %336 = vector.extract_strided_slice %321 {offsets = [0, 72], sizes = [16, 24], strides = [1, 1]} : vector<16x96xf32> to vector<16x24xf32>
    %337 = vector.shape_cast %333 : vector<16x24xf32> to vector<1x16x24xf32>
    %338 = vector.shape_cast %334 : vector<16x24xf32> to vector<1x16x24xf32>
    %339 = vector.shape_cast %335 : vector<16x24xf32> to vector<1x16x24xf32>
    %340 = vector.shape_cast %336 : vector<16x24xf32> to vector<1x16x24xf32>
    %341 = tpu.concatenate %337, %338, %339, %340 in 0 : vector<1x16x24xf32>, vector<1x16x24xf32>, vector<1x16x24xf32>, vector<1x16x24xf32> -> vector<4x16x24xf32>
    %342 = arith.truncf %341 : vector<4x16x24xf32> to vector<4x16x24xbf16>
    %343 = vector.extract_strided_slice %322 {offsets = [0, 0], sizes = [16, 24], strides = [1, 1]} : vector<16x96xf32> to vector<16x24xf32>
    %344 = vector.extract_strided_slice %322 {offsets = [0, 24], sizes = [16, 24], strides = [1, 1]} : vector<16x96xf32> to vector<16x24xf32>
    %345 = vector.extract_strided_slice %322 {offsets = [0, 48], sizes = [16, 24], strides = [1, 1]} : vector<16x96xf32> to vector<16x24xf32>
    %346 = vector.extract_strided_slice %322 {offsets = [0, 72], sizes = [16, 24], strides = [1, 1]} : vector<16x96xf32> to vector<16x24xf32>
    %347 = vector.shape_cast %343 : vector<16x24xf32> to vector<1x16x24xf32>
    %348 = vector.shape_cast %344 : vector<16x24xf32> to vector<1x16x24xf32>
    %349 = vector.shape_cast %345 : vector<16x24xf32> to vector<1x16x24xf32>
    %350 = vector.shape_cast %346 : vector<16x24xf32> to vector<1x16x24xf32>
    %351 = tpu.concatenate %347, %348, %349, %350 in 0 : vector<1x16x24xf32>, vector<1x16x24xf32>, vector<1x16x24xf32>, vector<1x16x24xf32> -> vector<4x16x24xf32>
    %352 = arith.truncf %351 : vector<4x16x24xf32> to vector<4x16x24xbf16>
    "tpu.trace_start"() <{level = 10 : i32, message = "hqd,hkd->hqk"}> : () -> ()
    %cst_89 = arith.constant dense<0.000000e+00> : vector<4x16x16xf32>
    %353 = tpu.matmul %332, %342, %cst_89 {dimension_numbers = #tpu.dot_dimension_numbers<[2], [2], [1], [1], [0, 0, 0, 1, 1, 1], [0], [0]>} : vector<4x16x24xbf16>, vector<4x16x24xbf16>, vector<4x16x16xf32> -> vector<4x16x16xf32>
    "tpu.trace_stop"() : () -> ()
    %cst_90 = arith.constant 0.204124153 : f32
    %354 = vector.broadcast %cst_90 : f32 to vector<4x16x16xf32>
    %355 = arith.mulf %353, %354 : vector<4x16x16xf32>
    %cst_91 = arith.constant dense<0xFF800000> : vector<4x16xf32>
    %356 = vector.multi_reduction <maximumf>, %355, %cst_91 [2] : vector<4x16x16xf32> to vector<4x16xf32>
    %357 = vector.shape_cast %356 : vector<4x16xf32> to vector<4x16x1xf32>
    %358 = vector.broadcast %357 : vector<4x16x1xf32> to vector<4x16x16xf32>
    %359 = arith.subf %355, %358 : vector<4x16x16xf32>
    %360 = math.exp %359 : vector<4x16x16xf32>
    %cst_92 = arith.constant dense<0.000000e+00> : vector<4x16xf32>
    %361 = vector.multi_reduction <add>, %360, %cst_92 [2] : vector<4x16x16xf32> to vector<4x16xf32>
    %362 = vector.shape_cast %361 : vector<4x16xf32> to vector<4x16x1xf32>
    %363 = tpu.reciprocal %362 {approx = true} : vector<4x16x1xf32> -> vector<4x16x1xf32>
    %364 = vector.broadcast %363 : vector<4x16x1xf32> to vector<4x16x16xf32>
    %365 = arith.mulf %360, %364 : vector<4x16x16xf32>
    %366 = arith.truncf %365 : vector<4x16x16xf32> to vector<4x16x16xbf16>
    "tpu.trace_start"() <{level = 10 : i32, message = "hqk,hkd->hqd"}> : () -> ()
    %cst_93 = arith.constant dense<0.000000e+00> : vector<4x16x24xf32>
    %367 = tpu.matmul %366, %352, %cst_93 {dimension_numbers = #tpu.dot_dimension_numbers<[2], [1], [1], [2], [0, 0, 0, 1, 1, 2], [0], [0]>} : vector<4x16x16xbf16>, vector<4x16x24xbf16>, vector<4x16x24xf32> -> vector<4x16x24xf32>
    "tpu.trace_stop"() : () -> ()
    %368 = vector.extract_strided_slice %367 {offsets = [0, 0, 0], sizes = [1, 16, 24], strides = [1, 1, 1]} : vector<4x16x24xf32> to vector<1x16x24xf32>
    %369 = vector.shape_cast %368 : vector<1x16x24xf32> to vector<16x24xf32>
    %370 = vector.extract_strided_slice %367 {offsets = [1, 0, 0], sizes = [1, 16, 24], strides = [1, 1, 1]} : vector<4x16x24xf32> to vector<1x16x24xf32>
    %371 = vector.shape_cast %370 : vector<1x16x24xf32> to vector<16x24xf32>
    %372 = vector.extract_strided_slice %367 {offsets = [2, 0, 0], sizes = [1, 16, 24], strides = [1, 1, 1]} : vector<4x16x24xf32> to vector<1x16x24xf32>
    %373 = vector.shape_cast %372 : vector<1x16x24xf32> to vector<16x24xf32>
    %374 = vector.extract_strided_slice %367 {offsets = [3, 0, 0], sizes = [1, 16, 24], strides = [1, 1, 1]} : vector<4x16x24xf32> to vector<1x16x24xf32>
    %375 = vector.shape_cast %374 : vector<1x16x24xf32> to vector<16x24xf32>
    %376 = tpu.concatenate %369, %371, %373, %375 in 1 : vector<16x24xf32>, vector<16x24xf32>, vector<16x24xf32>, vector<16x24xf32> -> vector<16x96xf32>
    %377 = tpu.concatenate %319, %376 in 0 : vector<16x96xf32>, vector<16x96xf32> -> vector<32x96xf32>
    %378 = arith.truncf %377 : vector<32x96xf32> to vector<32x96xbf16>
    %cst_94 = arith.constant dense<0.000000e+00> : vector<32x96xf32>
    %379 = tpu.matmul %378, %256, %cst_94 {dimension_numbers = #tpu.dot_dimension_numbers<[1], [0], [0], [1], [0, 0, 1, 1], [], []>} : vector<32x96xbf16>, vector<96x96xbf16>, vector<32x96xf32> -> vector<32x96xf32>
    %380 = vector.broadcast %258 : vector<1x96xf32> to vector<32x96xf32>
    %381 = arith.addf %379, %380 : vector<32x96xf32>
    %382 = arith.addf %250, %381 : vector<32x96xf32>
    %c1_95 = arith.constant 1 : index
    %c0_96 = arith.constant 0 : index
    %c0_97 = arith.constant 0 : index
    %383 = vector.load %arg7[%c1_95, %c0_96, %c0_97] : memref<2x1x96xf32, #tpu.memory_space<vmem>>, vector<1x1x96xf32>
    %384 = vector.shape_cast %383 : vector<1x1x96xf32> to vector<1x96xf32>
    %c1_98 = arith.constant 1 : index
    %c0_99 = arith.constant 0 : index
    %c0_100 = arith.constant 0 : index
    %385 = vector.load %arg8[%c1_98, %c0_99, %c0_100] : memref<2x1x96xf32, #tpu.memory_space<vmem>>, vector<1x1x96xf32>
    %386 = vector.shape_cast %385 : vector<1x1x96xf32> to vector<1x96xf32>
    %cst_101 = arith.constant dense<0.000000e+00> : vector<32xf32>
    %387 = vector.multi_reduction <add>, %382, %cst_101 [1] : vector<32x96xf32> to vector<32xf32>
    %388 = vector.shape_cast %387 : vector<32xf32> to vector<32x1xf32>
    %cst_102 = arith.constant 9.600000e+01 : f32
    %389 = vector.broadcast %cst_102 : f32 to vector<32x1xf32>
    %390 = arith.divf %388, %389 : vector<32x1xf32>
    %391 = vector.broadcast %390 : vector<32x1xf32> to vector<32x96xf32>
    %392 = arith.subf %382, %391 : vector<32x96xf32>
    %393 = arith.mulf %392, %392 : vector<32x96xf32>
    %cst_103 = arith.constant dense<0.000000e+00> : vector<32xf32>
    %394 = vector.multi_reduction <add>, %393, %cst_103 [1] : vector<32x96xf32> to vector<32xf32>
    %395 = vector.shape_cast %394 : vector<32xf32> to vector<32x1xf32>
    %cst_104 = arith.constant 9.600000e+01 : f32
    %396 = vector.broadcast %cst_104 : f32 to vector<32x1xf32>
    %397 = arith.divf %395, %396 : vector<32x1xf32>
    %398 = vector.broadcast %390 : vector<32x1xf32> to vector<32x96xf32>
    %399 = arith.subf %382, %398 : vector<32x96xf32>
    %cst_105 = arith.constant 9.99999974E-6 : f32
    %400 = vector.broadcast %cst_105 : f32 to vector<32x1xf32>
    %401 = arith.addf %397, %400 : vector<32x1xf32>
    %402 = math.rsqrt %401 : vector<32x1xf32>
    %403 = vector.broadcast %402 : vector<32x1xf32> to vector<32x96xf32>
    %404 = arith.mulf %399, %403 : vector<32x96xf32>
    %405 = vector.broadcast %384 : vector<1x96xf32> to vector<32x96xf32>
    %406 = arith.mulf %404, %405 : vector<32x96xf32>
    %407 = vector.broadcast %386 : vector<1x96xf32> to vector<32x96xf32>
    %408 = arith.addf %406, %407 : vector<32x96xf32>
    %409 = arith.truncf %408 : vector<32x96xf32> to vector<32x96xbf16>
    %c1_106 = arith.constant 1 : index
    %c0_107 = arith.constant 0 : index
    %c0_108 = arith.constant 0 : index
    %410 = vector.load %arg9[%c1_106, %c0_107, %c0_108] : memref<2x96x256xbf16, #tpu.memory_space<vmem>>, vector<1x96x256xbf16>
    %411 = vector.shape_cast %410 : vector<1x96x256xbf16> to vector<96x256xbf16>
    %cst_109 = arith.constant dense<0.000000e+00> : vector<32x256xf32>
    %412 = tpu.matmul %409, %411, %cst_109 {dimension_numbers = #tpu.dot_dimension_numbers<[1], [0], [0], [1], [0, 0, 1, 1], [], []>} : vector<32x96xbf16>, vector<96x256xbf16>, vector<32x256xf32> -> vector<32x256xf32>
    %c1_110 = arith.constant 1 : index
    %c0_111 = arith.constant 0 : index
    %c0_112 = arith.constant 0 : index
    %413 = vector.load %arg10[%c1_110, %c0_111, %c0_112] : memref<2x1x256xf32, #tpu.memory_space<vmem>>, vector<1x1x256xf32>
    %414 = vector.shape_cast %413 : vector<1x1x256xf32> to vector<1x256xf32>
    %415 = vector.broadcast %414 : vector<1x256xf32> to vector<32x256xf32>
    %416 = arith.addf %412, %415 : vector<32x256xf32>
    %cst_113 = arith.constant 0.000000e+00 : f32
    %417 = vector.broadcast %cst_113 : f32 to vector<32x256xf32>
    %418 = arith.maximumf %416, %417 : vector<32x256xf32>
    %419 = arith.truncf %418 : vector<32x256xf32> to vector<32x256xbf16>
    %c1_114 = arith.constant 1 : index
    %c0_115 = arith.constant 0 : index
    %c0_116 = arith.constant 0 : index
    %420 = vector.load %arg11[%c1_114, %c0_115, %c0_116] : memref<2x256x96xbf16, #tpu.memory_space<vmem>>, vector<1x256x96xbf16>
    %421 = vector.shape_cast %420 : vector<1x256x96xbf16> to vector<256x96xbf16>
    %cst_117 = arith.constant dense<0.000000e+00> : vector<32x96xf32>
    %422 = tpu.matmul %419, %421, %cst_117 {dimension_numbers = #tpu.dot_dimension_numbers<[1], [0], [0], [1], [0, 0, 1, 1], [], []>} : vector<32x256xbf16>, vector<256x96xbf16>, vector<32x96xf32> -> vector<32x96xf32>
    %c1_118 = arith.constant 1 : index
    %c0_119 = arith.constant 0 : index
    %c0_120 = arith.constant 0 : index
    %423 = vector.load %arg12[%c1_118, %c0_119, %c0_120] : memref<2x1x96xf32, #tpu.memory_space<vmem>>, vector<1x1x96xf32>
    %424 = vector.shape_cast %423 : vector<1x1x96xf32> to vector<1x96xf32>
    %425 = vector.broadcast %424 : vector<1x96xf32> to vector<32x96xf32>
    %426 = arith.addf %422, %425 : vector<32x96xf32>
    %427 = arith.addf %408, %426 : vector<32x96xf32>
    %c1_121 = arith.constant 1 : index
    %c0_122 = arith.constant 0 : index
    %c0_123 = arith.constant 0 : index
    %428 = vector.load %arg13[%c1_121, %c0_122, %c0_123] : memref<2x1x96xf32, #tpu.memory_space<vmem>>, vector<1x1x96xf32>
    %429 = vector.shape_cast %428 : vector<1x1x96xf32> to vector<1x96xf32>
    %c1_124 = arith.constant 1 : index
    %c0_125 = arith.constant 0 : index
    %c0_126 = arith.constant 0 : index
    %430 = vector.load %arg14[%c1_124, %c0_125, %c0_126] : memref<2x1x96xf32, #tpu.memory_space<vmem>>, vector<1x1x96xf32>
    %431 = vector.shape_cast %430 : vector<1x1x96xf32> to vector<1x96xf32>
    %cst_127 = arith.constant dense<0.000000e+00> : vector<32xf32>
    %432 = vector.multi_reduction <add>, %427, %cst_127 [1] : vector<32x96xf32> to vector<32xf32>
    %433 = vector.shape_cast %432 : vector<32xf32> to vector<32x1xf32>
    %cst_128 = arith.constant 9.600000e+01 : f32
    %434 = vector.broadcast %cst_128 : f32 to vector<32x1xf32>
    %435 = arith.divf %433, %434 : vector<32x1xf32>
    %436 = vector.broadcast %435 : vector<32x1xf32> to vector<32x96xf32>
    %437 = arith.subf %427, %436 : vector<32x96xf32>
    %438 = arith.mulf %437, %437 : vector<32x96xf32>
    %cst_129 = arith.constant dense<0.000000e+00> : vector<32xf32>
    %439 = vector.multi_reduction <add>, %438, %cst_129 [1] : vector<32x96xf32> to vector<32xf32>
    %440 = vector.shape_cast %439 : vector<32xf32> to vector<32x1xf32>
    %cst_130 = arith.constant 9.600000e+01 : f32
    %441 = vector.broadcast %cst_130 : f32 to vector<32x1xf32>
    %442 = arith.divf %440, %441 : vector<32x1xf32>
    %443 = vector.broadcast %435 : vector<32x1xf32> to vector<32x96xf32>
    %444 = arith.subf %427, %443 : vector<32x96xf32>
    %cst_131 = arith.constant 9.99999974E-6 : f32
    %445 = vector.broadcast %cst_131 : f32 to vector<32x1xf32>
    %446 = arith.addf %442, %445 : vector<32x1xf32>
    %447 = math.rsqrt %446 : vector<32x1xf32>
    %448 = vector.broadcast %447 : vector<32x1xf32> to vector<32x96xf32>
    %449 = arith.mulf %444, %448 : vector<32x96xf32>
    %450 = vector.broadcast %429 : vector<1x96xf32> to vector<32x96xf32>
    %451 = arith.mulf %449, %450 : vector<32x96xf32>
    %452 = vector.broadcast %431 : vector<1x96xf32> to vector<32x96xf32>
    %453 = arith.addf %451, %452 : vector<32x96xf32>
    %454 = arith.truncf %453 : vector<32x96xf32> to vector<32x96xbf16>
    %c0_132 = arith.constant 0 : index
    %c0_133 = arith.constant 0 : index
    %455 = vector.load %arg15[%c0_132, %c0_133] : memref<96x512xbf16, #tpu.memory_space<vmem>>, vector<96x512xbf16>
    %cst_134 = arith.constant dense<0.000000e+00> : vector<32x512xf32>
    %456 = tpu.matmul %454, %455, %cst_134 {dimension_numbers = #tpu.dot_dimension_numbers<[1], [0], [0], [1], [0, 0, 1, 1], [], []>} : vector<32x96xbf16>, vector<96x512xbf16>, vector<32x512xf32> -> vector<32x512xf32>
    %c0_135 = arith.constant 0 : index
    %c0_136 = arith.constant 0 : index
    %457 = vector.load %arg16[%c0_135, %c0_136] : memref<1x512xf32, #tpu.memory_space<vmem>>, vector<1x512xf32>
    %458 = vector.broadcast %457 : vector<1x512xf32> to vector<32x512xf32>
    %459 = arith.addf %456, %458 : vector<32x512xf32>
    %cst_137 = arith.constant 0.000000e+00 : f32
    %460 = vector.broadcast %cst_137 : f32 to vector<32x512xf32>
    %461 = arith.maximumf %459, %460 : vector<32x512xf32>
    %462 = arith.truncf %461 : vector<32x512xf32> to vector<32x512xbf16>
    %c0_138 = arith.constant 0 : index
    %c0_139 = arith.constant 0 : index
    %463 = vector.load %arg17[%c0_138, %c0_139] : memref<512x128xbf16, #tpu.memory_space<vmem>>, vector<512x128xbf16>
    %cst_140 = arith.constant dense<0.000000e+00> : vector<32x128xf32>
    %464 = tpu.matmul %462, %463, %cst_140 {dimension_numbers = #tpu.dot_dimension_numbers<[1], [0], [0], [1], [0, 0, 1, 1], [], []>} : vector<32x512xbf16>, vector<512x128xbf16>, vector<32x128xf32> -> vector<32x128xf32>
    %c0_141 = arith.constant 0 : index
    %c0_142 = arith.constant 0 : index
    %465 = vector.load %arg18[%c0_141, %c0_142] : memref<1x128xf32, #tpu.memory_space<vmem>>, vector<1x128xf32>
    %466 = vector.broadcast %465 : vector<1x128xf32> to vector<32x128xf32>
    %467 = arith.addf %464, %466 : vector<32x128xf32>
    %c0_143 = arith.constant 0 : index
    %c0_144 = arith.constant 0 : index
    %468 = vector.load %arg19[%c0_143, %c0_144] : memref<32x128xf32, #tpu.memory_space<vmem>>, vector<32x128xf32>
    tpu.vector_store %arg19[%c0_143, %c0_144], %467 {strides = array<i32>} : memref<32x128xf32, #tpu.memory_space<vmem>>, vector<32x128xf32>,
    return
  }
}

</mosaic_0001>

<llo_original>
// kernel: forward.1
$region0: #{forward.1}
  #allocation0 [shape = 'u32[]', space=smem, size = 0x4, offset = 0x4, fixed_abs, tag = 'smem constant byte address 0x4 - core index']
  #allocation1 [shape = 'u32[144,128]{1,0:T(1,128)}', space=vmem, size = 0x12000, scoped, tag = 'internal scratch']
  %s0 = inlined_call_operand.vmem [shape: f32[2,16,16], index: 0, kind: input, shape index: {}]
  %s1 = inlined_call_operand.vmem [shape: bf16[240,96], index: 1, kind: input, shape index: {}]
  %s2 = inlined_call_operand.vmem [shape: f32[1,96], index: 2, kind: input, shape index: {}]
  %s3 = inlined_call_operand.vmem [shape: bf16[2,96,288], index: 3, kind: input, shape index: {}]
  %s4 = inlined_call_operand.vmem [shape: f32[2,1,288], index: 4, kind: input, shape index: {}]
  %s5 = inlined_call_operand.vmem [shape: bf16[2,96,96], index: 5, kind: input, shape index: {}]
  %s6 = inlined_call_operand.vmem [shape: f32[2,1,96], index: 6, kind: input, shape index: {}]
  %s7 = inlined_call_operand.vmem [shape: f32[2,1,96], index: 7, kind: input, shape index: {}]
  %s8 = inlined_call_operand.vmem [shape: f32[2,1,96], index: 8, kind: input, shape index: {}]
  %s9 = inlined_call_operand.vmem [shape: bf16[2,96,256], index: 9, kind: input, shape index: {}]
  %s10 = inlined_call_operand.vmem [shape: f32[2,1,256], index: 10, kind: input, shape index: {}]
  %s11 = inlined_call_operand.vmem [shape: bf16[2,256,96], index: 11, kind: input, shape index: {}]
  %s12 = inlined_call_operand.vmem [shape: f32[2,1,96], index: 12, kind: input, shape index: {}]
  %s13 = inlined_call_operand.vmem [shape: f32[2,1,96], index: 13, kind: input, shape index: {}]
  %s14 = inlined_call_operand.vmem [shape: f32[2,1,96], index: 14, kind: input, shape index: {}]
  %s15 = inlined_call_operand.vmem [shape: bf16[96,512], index: 15, kind: input, shape index: {}]
  %s16 = inlined_call_operand.vmem [shape: f32[1,512], index: 16, kind: input, shape index: {}]
  %s17 = inlined_call_operand.vmem [shape: bf16[512,128], index: 17, kind: input, shape index: {}]
  %s18 = inlined_call_operand.vmem [shape: f32[1,128], index: 18, kind: input, shape index: {}]
  %s19 = inlined_call_operand.vmem [shape: f32[32,128], index: 19, kind: output, shape index: {}]
  %s20 = sld [smem:[#allocation0]]
  $region86: #{forward.1} parent=0
    _
  %s22 = ssub.s32 1, %s20
  %s23 = scalar_select 0, %s22, %s20
  // Predicated region
  $region2: #{forward.1} parent=0 // pred_check
    _
  $region3: #{forward.1} parent=0 // pred_check_branch
    %25 = sbr.rel (0) target = $region5
  $region4: #{forward.1} parent=0 // pred_region
    _
  $region5: #{forward.1} parent=0 // pred_fallthru
    _
  // Predicated region
  $region6: #{forward.1} parent=0 // pred_check
    _
  $region7: #{forward.1} parent=0 // pred_check_branch
    %27 = sbr.rel (0) target = $region9
  $region8: #{forward.1} parent=0 // pred_region
    _
  $region9: #{forward.1} parent=0 // pred_fallthru
    _
  // Predicated region
  $region10: #{forward.1} parent=0 // pred_check
    _
  $region11: #{forward.1} parent=0 // pred_check_branch
    %29 = sbr.rel (0) target = $region13
  $region12: #{forward.1} parent=0 // pred_region
    _
  $region13: #{forward.1} parent=0 // pred_fallthru
    _
  // Predicated region
  $region14: #{forward.1} parent=0 // pred_check
    _
  $region15: #{forward.1} parent=0 // pred_check_branch
    %31 = sbr.rel (0) target = $region17
  $region16: #{forward.1} parent=0 // pred_region
    _
  $region17: #{forward.1} parent=0 // pred_fallthru
    _
  // Predicated region
  $region18: #{forward.1} parent=0 // pred_check
    _
  $region19: #{forward.1} parent=0 // pred_check_branch
    %33 = sbr.rel (0) target = $region21
  $region20: #{forward.1} parent=0 // pred_region
    _
  $region21: #{forward.1} parent=0 // pred_fallthru
    _
  // Predicated region
  $region22: #{forward.1} parent=0 // pred_check
    _
  $region23: #{forward.1} parent=0 // pred_check_branch
    %35 = sbr.rel (0) target = $region25
  $region24: #{forward.1} parent=0 // pred_region
    _
  $region25: #{forward.1} parent=0 // pred_fallthru
    _
  // Predicated region
  $region26: #{forward.1} parent=0 // pred_check
    _
  $region27: #{forward.1} parent=0 // pred_check_branch
    %37 = sbr.rel (0) target = $region29
  $region28: #{forward.1} parent=0 // pred_region
    _
  $region29: #{forward.1} parent=0 // pred_fallthru
    _
  // Predicated region
  $region30: #{forward.1} parent=0 // pred_check
    _
  $region31: #{forward.1} parent=0 // pred_check_branch
    %39 = sbr.rel (0) target = $region33
  $region32: #{forward.1} parent=0 // pred_region
    _
  $region33: #{forward.1} parent=0 // pred_fallthru
    _
  // Predicated region
  $region34: #{forward.1} parent=0 // pred_check
    _
  $region35: #{forward.1} parent=0 // pred_check_branch
    %41 = sbr.rel (0) target = $region37
  $region36: #{forward.1} parent=0 // pred_region
    _
  $region37: #{forward.1} parent=0 // pred_fallthru
    _
  // Predicated region
  $region38: #{forward.1} parent=0 // pred_check
    _
  $region39: #{forward.1} parent=0 // pred_check_branch
    %43 = sbr.rel (0) target = $region41
  $region40: #{forward.1} parent=0 // pred_region
    _
  $region41: #{forward.1} parent=0 // pred_fallthru
    _
  // Predicated region
  $region42: #{forward.1} parent=0 // pred_check
    _
  $region43: #{forward.1} parent=0 // pred_check_branch
    %45 = sbr.rel (0) target = $region45
  $region44: #{forward.1} parent=0 // pred_region
    _
  $region45: #{forward.1} parent=0 // pred_fallthru
    _
  // Predicated region
  $region46: #{forward.1} parent=0 // pred_check
    _
  $region47: #{forward.1} parent=0 // pred_check_branch
    %47 = sbr.rel (0) target = $region49
  $region48: #{forward.1} parent=0 // pred_region
    _
  $region49: #{forward.1} parent=0 // pred_fallthru
    _
  // Predicated region
  $region50: #{forward.1} parent=0 // pred_check
    _
  $region51: #{forward.1} parent=0 // pred_check_branch
    %49 = sbr.rel (0) target = $region53
  $region52: #{forward.1} parent=0 // pred_region
    _
  $region53: #{forward.1} parent=0 // pred_fallthru
    _
  // Predicated region
  $region54: #{forward.1} parent=0 // pred_check
    _
  $region55: #{forward.1} parent=0 // pred_check_branch
    %51 = sbr.rel (0) target = $region57
  $region56: #{forward.1} parent=0 // pred_region
    _
  $region57: #{forward.1} parent=0 // pred_fallthru
    _
  // Predicated region
  $region58: #{forward.1} parent=0 // pred_check
    _
  $region59: #{forward.1} parent=0 // pred_check_branch
    %53 = sbr.rel (0) target = $region61
  $region60: #{forward.1} parent=0 // pred_region
    _
  $region61: #{forward.1} parent=0 // pred_fallthru
    _
  // Predicated region
  $region62: #{forward.1} parent=0 // pred_check
    _
  $region63: #{forward.1} parent=0 // pred_check_branch
    %55 = sbr.rel (0) target = $region65
  $region64: #{forward.1} parent=0 // pred_region
    _
  $region65: #{forward.1} parent=0 // pred_fallthru
    _
  // Predicated region
  $region66: #{forward.1} parent=0 // pred_check
    _
  $region67: #{forward.1} parent=0 // pred_check_branch
    %57 = sbr.rel (0) target = $region69
  $region68: #{forward.1} parent=0 // pred_region
    _
  $region69: #{forward.1} parent=0 // pred_fallthru
    _
  // Predicated region
  $region70: #{forward.1} parent=0 // pred_check
    _
  $region71: #{forward.1} parent=0 // pred_check_branch
    %59 = sbr.rel (0) target = $region73
  $region72: #{forward.1} parent=0 // pred_region
    _
  $region73: #{forward.1} parent=0 // pred_fallthru
    _
  // Predicated region
  $region74: #{forward.1} parent=0 // pred_check
    _
  $region75: #{forward.1} parent=0 // pred_check_branch
    %61 = sbr.rel (0) target = $region77
  $region76: #{forward.1} parent=0 // pred_region
    _
  $region77: #{forward.1} parent=0 // pred_fallthru
    _
  %v63 = vld [vmem:[%s0] sm:$0xff]
  %v64 = vld [vmem:[%s0 + $0x8] sm:$0xff]
  %vm67 = vcmask 1046528
  %v68 = vrot.slane %v63, 1
  %v69 = vrot.slane %v64, 1
  %v70 = vsel %vm67, %v68, %v69
  %v74 = vsel %vm67, 0.0, %v68
  %v75 = vsel %vm67, %v69, 0.0
  %v78 = vrot.slane %v74, 1
  %v79 = vrot.slane %v70, 1
  %v80 = vsel %vm67, %v78, %v79
  %v81 = vrot.slane %v75, 1
  %v82 = vsel %vm67, %v79, %v81
  %83 = vrot.lane.b32.xlu0 %v80, 16
  %v84 = vpop.permute.xlu0 %83
  %85 = vrot.lane.b32.xlu0 %v82, 16
  %v86 = vpop.permute.xlu0 %85
  %vm89 = vcmask 1045504
  %v90 = vrot.slane %v74, 2
  %v91 = vrot.slane %v70, 2
  %v92 = vsel %vm89, %v90, %v91
  %v93 = vrot.slane %v75, 2
  %v94 = vsel %vm89, %v91, %v93
  %95 = vrot.lane.b32.xlu0 %v92, 32
  %v96 = vpop.permute.xlu0 %95
  %97 = vrot.lane.b32.xlu0 %v94, 32
  %v98 = vpop.permute.xlu0 %97
  %vm101 = vcmask 1044480
  %v102 = vrot.slane %v74, 3
  %v103 = vrot.slane %v70, 3
  %v104 = vsel %vm101, %v102, %v103
  %v105 = vrot.slane %v75, 3
  %v106 = vsel %vm101, %v103, %v105
  %107 = vrot.lane.b32.xlu0 %v104, 48
  %v108 = vpop.permute.xlu0 %107
  %109 = vrot.lane.b32.xlu0 %v106, 48
  %v110 = vpop.permute.xlu0 %109
  %vm113 = vcmask 1043456
  %v114 = vrot.slane %v74, 4
  %v115 = vrot.slane %v70, 4
  %v116 = vsel %vm113, %v114, %v115
  %v117 = vrot.slane %v75, 4
  %v118 = vsel %vm113, %v115, %v117
  %119 = vrot.lane.b32.xlu0 %v116, 64
  %v120 = vpop.permute.xlu0 %119
  %121 = vrot.lane.b32.xlu0 %v118, 64
  %v122 = vpop.permute.xlu0 %121
  %vm125 = vcmask 1042432
  %v126 = vrot.slane %v74, 5
  %v127 = vrot.slane %v70, 5
  %v128 = vsel %vm125, %v126, %v127
  %v129 = vrot.slane %v75, 5
  %v130 = vsel %vm125, %v127, %v129
  %131 = vrot.lane.b32.xlu0 %v128, 80
  %v132 = vpop.permute.xlu0 %131
  %133 = vrot.lane.b32.xlu0 %v130, 80
  %v134 = vpop.permute.xlu0 %133
  %vm137 = vcmask 1041408
  %v138 = vrot.slane %v74, 6
  %v139 = vrot.slane %v70, 6
  %v140 = vsel %vm137, %v138, %v139
  %v141 = vrot.slane %v75, 6
  %v142 = vsel %vm137, %v139, %v141
  %143 = vrot.lane.b32.xlu0 %v140, 96
  %v144 = vpop.permute.xlu0 %143
  %145 = vrot.lane.b32.xlu0 %v142, 96
  %v146 = vpop.permute.xlu0 %145
  %vm149 = vcmask 1040384
  %v150 = vrot.slane %v74, 7
  %v151 = vrot.slane %v70, 7
  %v152 = vsel %vm149, %v150, %v151
  %v153 = vrot.slane %v75, 7
  %v154 = vsel %vm149, %v151, %v153
  %155 = vrot.lane.b32.xlu0 %v152, 112
  %v156 = vpop.permute.xlu0 %155
  %157 = vrot.lane.b32.xlu0 %v154, 112
  %v158 = vpop.permute.xlu0 %157
  %v162 = vrot.slane 0.0, 1
  %v163 = vsel %vm67, %v81, %v162
  %164 = vrot.lane.b32.xlu0 %v163, 16
  %v165 = vpop.permute.xlu0 %164
  %v167 = vrot.slane 0.0, 2
  %v168 = vsel %vm89, %v93, %v167
  %169 = vrot.lane.b32.xlu0 %v168, 32
  %v170 = vpop.permute.xlu0 %169
  %v172 = vrot.slane 0.0, 3
  %v173 = vsel %vm101, %v105, %v172
  %174 = vrot.lane.b32.xlu0 %v173, 48
  %v175 = vpop.permute.xlu0 %174
  %v177 = vrot.slane 0.0, 4
  %v178 = vsel %vm113, %v117, %v177
  %179 = vrot.lane.b32.xlu0 %v178, 64
  %v180 = vpop.permute.xlu0 %179
  %v182 = vrot.slane 0.0, 5
  %v183 = vsel %vm125, %v129, %v182
  %184 = vrot.lane.b32.xlu0 %v183, 80
  %v185 = vpop.permute.xlu0 %184
  %v187 = vrot.slane 0.0, 6
  %v188 = vsel %vm137, %v141, %v187
  %189 = vrot.lane.b32.xlu0 %v188, 96
  %v190 = vpop.permute.xlu0 %189
  %vm192 = vcmask 130048
  %v193 = vsel %vm192, %v74, %v84
  %v194 = vsel %vm192, %v70, %v86
  %vm195 = vcmask 261120
  %v196 = vsel %vm195, %v193, %v96
  %v197 = vsel %vm195, %v194, %v98
  %vm198 = vcmask 392192
  %v199 = vsel %vm198, %v196, %v108
  %v200 = vsel %vm198, %v197, %v110
  %vm201 = vcmask 523264
  %v202 = vsel %vm201, %v199, %v120
  %v203 = vsel %vm201, %v200, %v122
  %vm204 = vcmask 654336
  %v205 = vsel %vm204, %v202, %v132
  %v206 = vsel %vm204, %v203, %v134
  %vm207 = vcmask 785408
  %v208 = vsel %vm207, %v205, %v144
  %v209 = vsel %vm207, %v206, %v146
  %vm210 = vcmask 916480
  %v211 = vsel %vm210, %v208, %v156
  %v212 = vsel %vm210, %v209, %v158
  %v213 = vsel %vm192, %v75, %v165
  %v214 = vsel %vm195, %v213, %v170
  %v215 = vsel %vm198, %v214, %v175
  %v216 = vsel %vm201, %v215, %v180
  %v217 = vsel %vm204, %v216, %v185
  %v218 = vsel %vm207, %v217, %v190
  %s219 = scalar_lea.vmem %s0, 16
  %v220 = vld [vmem:[%s219] sm:$0xff]
  %v221 = vld [vmem:[%s219 + $0x8] sm:$0xff]
  %v224 = vrot.slane %v220, 1
  %v225 = vrot.slane %v221, 1
  %v226 = vsel %vm67, %v224, %v225
  %v230 = vsel %vm67, 0.0, %v224
  %v231 = vsel %vm67, %v225, 0.0
  %v234 = vrot.slane %v230, 1
  %v235 = vrot.slane %v226, 1
  %v236 = vsel %vm67, %v234, %v235
  %v237 = vrot.slane %v231, 1
  %v238 = vsel %vm67, %v235, %v237
  %239 = vrot.lane.b32.xlu0 %v236, 16
  %v240 = vpop.permute.xlu0 %239
  %241 = vrot.lane.b32.xlu0 %v238, 16
  %v242 = vpop.permute.xlu0 %241
  %v245 = vrot.slane %v230, 2
  %v246 = vrot.slane %v226, 2
  %v247 = vsel %vm89, %v245, %v246
  %v248 = vrot.slane %v231, 2
  %v249 = vsel %vm89, %v246, %v248
  %250 = vrot.lane.b32.xlu0 %v247, 32
  %v251 = vpop.permute.xlu0 %250
  %252 = vrot.lane.b32.xlu0 %v249, 32
  %v253 = vpop.permute.xlu0 %252
  %v256 = vrot.slane %v230, 3
  %v257 = vrot.slane %v226, 3
  %v258 = vsel %vm101, %v256, %v257
  %v259 = vrot.slane %v231, 3
  %v260 = vsel %vm101, %v257, %v259
  %261 = vrot.lane.b32.xlu0 %v258, 48
  %v262 = vpop.permute.xlu0 %261
  %263 = vrot.lane.b32.xlu0 %v260, 48
  %v264 = vpop.permute.xlu0 %263
  %v267 = vrot.slane %v230, 4
  %v268 = vrot.slane %v226, 4
  %v269 = vsel %vm113, %v267, %v268
  %v270 = vrot.slane %v231, 4
  %v271 = vsel %vm113, %v268, %v270
  %272 = vrot.lane.b32.xlu0 %v269, 64
  %v273 = vpop.permute.xlu0 %272
  %274 = vrot.lane.b32.xlu0 %v271, 64
  %v275 = vpop.permute.xlu0 %274
  %v278 = vrot.slane %v230, 5
  %v279 = vrot.slane %v226, 5
  %v280 = vsel %vm125, %v278, %v279
  %v281 = vrot.slane %v231, 5
  %v282 = vsel %vm125, %v279, %v281
  %283 = vrot.lane.b32.xlu0 %v280, 80
  %v284 = vpop.permute.xlu0 %283
  %285 = vrot.lane.b32.xlu0 %v282, 80
  %v286 = vpop.permute.xlu0 %285
  %v289 = vrot.slane %v230, 6
  %v290 = vrot.slane %v226, 6
  %v291 = vsel %vm137, %v289, %v290
  %v292 = vrot.slane %v231, 6
  %v293 = vsel %vm137, %v290, %v292
  %294 = vrot.lane.b32.xlu0 %v291, 96
  %v295 = vpop.permute.xlu0 %294
  %296 = vrot.lane.b32.xlu0 %v293, 96
  %v297 = vpop.permute.xlu0 %296
  %v300 = vrot.slane %v230, 7
  %v301 = vrot.slane %v226, 7
  %v302 = vsel %vm149, %v300, %v301
  %v303 = vrot.slane %v231, 7
  %v304 = vsel %vm149, %v301, %v303
  %305 = vrot.lane.b32.xlu0 %v302, 112
  %v306 = vpop.permute.xlu0 %305
  %307 = vrot.lane.b32.xlu0 %v304, 112
  %v308 = vpop.permute.xlu0 %307
  %v311 = vsel %vm67, %v237, %v162
  %312 = vrot.lane.b32.xlu0 %v311, 16
  %v313 = vpop.permute.xlu0 %312
  %v315 = vsel %vm89, %v248, %v167
  %316 = vrot.lane.b32.xlu0 %v315, 32
  %v317 = vpop.permute.xlu0 %316
  %v319 = vsel %vm101, %v259, %v172
  %320 = vrot.lane.b32.xlu0 %v319, 48
  %v321 = vpop.permute.xlu0 %320
  %v323 = vsel %vm113, %v270, %v177
  %324 = vrot.lane.b32.xlu0 %v323, 64
  %v325 = vpop.permute.xlu0 %324
  %v327 = vsel %vm125, %v281, %v182
  %328 = vrot.lane.b32.xlu0 %v327, 80
  %v329 = vpop.permute.xlu0 %328
  %v331 = vsel %vm137, %v292, %v187
  %332 = vrot.lane.b32.xlu0 %v331, 96
  %v333 = vpop.permute.xlu0 %332
  %v335 = vsel %vm192, %v230, %v240
  %v336 = vsel %vm192, %v226, %v242
  %v337 = vsel %vm195, %v335, %v251
  %v338 = vsel %vm195, %v336, %v253
  %v339 = vsel %vm198, %v337, %v262
  %v340 = vsel %vm198, %v338, %v264
  %v341 = vsel %vm201, %v339, %v273
  %v342 = vsel %vm201, %v340, %v275
  %v343 = vsel %vm204, %v341, %v284
  %v344 = vsel %vm204, %v342, %v286
  %v345 = vsel %vm207, %v343, %v295
  %v346 = vsel %vm207, %v344, %v297
  %v347 = vsel %vm210, %v345, %v306
  %v348 = vsel %vm210, %v346, %v308
  %v349 = vsel %vm192, %v231, %v313
  %v350 = vsel %vm195, %v349, %v317
  %v351 = vsel %vm198, %v350, %v321
  %v352 = vsel %vm201, %v351, %v325
  %v353 = vsel %vm204, %v352, %v329
  %v354 = vsel %vm207, %v353, %v333
  %v355 = vpack.c.bf16 %v212, %v211
  %v356 = vpack.c.bf16 %v218, %v209
  %v357 = vpack.c.bf16 %v348, %v347
  %v358 = vpack.c.bf16 %v354, %v346
  %v359 = vld [vmem:[%s1] sm:$0xf]
  %v360 = vld [vmem:[%s1 + $0x4] sm:$0xf]
  %v361 = vld [vmem:[%s1 + $0x8] sm:$0xf]
  %v362 = vld [vmem:[%s1 + $0xc] sm:$0xf]
  %v363 = vld [vmem:[%s1 + $0x10] sm:$0xf]
  %v364 = vld [vmem:[%s1 + $0x14] sm:$0xf]
  %v365 = vld [vmem:[%s1 + $0x18] sm:$0xf]
  %v366 = vld [vmem:[%s1 + $0x1c] sm:$0xf]
  %v367 = vld [vmem:[%s1 + $0x20] sm:$0xf]
  %v368 = vld [vmem:[%s1 + $0x24] sm:$0xf]
  %v369 = vld [vmem:[%s1 + $0x28] sm:$0xf]
  %v370 = vld [vmem:[%s1 + $0x2c] sm:$0xf]
  %v371 = vld [vmem:[%s1 + $0x30] sm:$0xf]
  %v372 = vld [vmem:[%s1 + $0x34] sm:$0xf]
  %v373 = vld [vmem:[%s1 + $0x38] sm:$0xf]
  %v374 = vld [vmem:[%s1 + $0x3c] sm:$0xf]
  %v375 = vld [vmem:[%s1 + $0x40] sm:$0xf]
  %v376 = vld [vmem:[%s1 + $0x44] sm:$0xf]
  %v377 = vld [vmem:[%s1 + $0x48] sm:$0xf]
  %v378 = vld [vmem:[%s1 + $0x4c] sm:$0xf]
  %v379 = vld [vmem:[%s1 + $0x50] sm:$0xf]
  %v380 = vld [vmem:[%s1 + $0x54] sm:$0xf]
  %v381 = vld [vmem:[%s1 + $0x58] sm:$0xf]
  %v382 = vld [vmem:[%s1 + $0x5c] sm:$0xf]
  %v383 = vld [vmem:[%s1 + $0x60] sm:$0xf]
  %v384 = vld [vmem:[%s1 + $0x64] sm:$0xf]
  %v385 = vld [vmem:[%s1 + $0x68] sm:$0xf]
  %v386 = vld [vmem:[%s1 + $0x6c] sm:$0xf]
  %v387 = vld [vmem:[%s1 + $0x70] sm:$0xf]
  %v388 = vld [vmem:[%s1 + $0x74] sm:$0xf]
  %v389 = vld [vmem:[%s2] sm:$0x1]
  %v391 = vlaneseq
  %v392 = vshrl.u32 %v391, 7
  %v393 = vsub.s32 0, %v392
  %v394 = vrot.slane %v389, %v393
  %v426 = vunpack.c.l.b16 %v359
  %v427 = vunpack.c.l.b16 %v360
  %v428 = vunpack.c.l.b16 %v361
  %v429 = vunpack.c.l.b16 %v362
  %v430 = vunpack.c.l.b16 %v363
  %v431 = vunpack.c.l.b16 %v364
  %v432 = vunpack.c.l.b16 %v365
  %v433 = vunpack.c.l.b16 %v366
  %v434 = vunpack.c.l.b16 %v367
  %v435 = vunpack.c.l.b16 %v368
  %v436 = vunpack.c.l.b16 %v369
  %v437 = vunpack.c.l.b16 %v370
  %v438 = vunpack.c.l.b16 %v371
  %v439 = vunpack.c.l.b16 %v372
  %v440 = vunpack.c.l.b16 %v373
  %v441 = vunpack.c.l.b16 %v374
  %v442 = vunpack.c.l.b16 %v375
  %v443 = vunpack.c.l.b16 %v376
  %v444 = vunpack.c.l.b16 %v377
  %v445 = vunpack.c.l.b16 %v378
  %v446 = vunpack.c.l.b16 %v379
  %v447 = vunpack.c.l.b16 %v380
  %v448 = vunpack.c.l.b16 %v381
  %v449 = vunpack.c.l.b16 %v382
  %v450 = vunpack.c.l.b16 %v383
  %v451 = vunpack.c.l.b16 %v384
  %v452 = vunpack.c.l.b16 %v385
  %v453 = vunpack.c.l.b16 %v386
  %v454 = vunpack.c.l.b16 %v387
  %v455 = vunpack.c.l.b16 %v388
  %v456 = vpack.c.b16 %v427, %v426
  %v457 = vpack.c.b16 %v429, %v428
  %v458 = vpack.c.b16 %v431, %v430
  %v459 = vpack.c.b16 %v433, %v432
  %v460 = vpack.c.b16 %v435, %v434
  %v461 = vpack.c.b16 %v437, %v436
  %v462 = vpack.c.b16 %v439, %v438
  %v463 = vpack.c.b16 %v441, %v440
  %v464 = vpack.c.b16 %v443, %v442
  %v465 = vpack.c.b16 %v445, %v444
  %v466 = vpack.c.b16 %v447, %v446
  %v467 = vpack.c.b16 %v449, %v448
  %v468 = vpack.c.b16 %v451, %v450
  %v469 = vpack.c.b16 %v453, %v452
  %v470 = vpack.c.b16 %v455, %v454
  %v487 = vsel %vm210, %v356, 0
  %v490 = vsel %vm210, %v358, 0
  %492 = vmatprep.subr.bf16.mxu0 0
  %493 = vmatpush1.bf16.msra.mxu0 %v456
  %494 = vmatprep.subr.bf16.mxu0 0
  %495 = vmatpush1.bf16.msra.mxu0 %v457
  %496 = vmatprep.subr.bf16.mxu0 0
  %497 = vmatpush1.bf16.msra.mxu0 %v458
  %498 = vmatprep.subr.bf16.mxu0 0
  %499 = vmatpush1.bf16.msra.mxu0 %v459
  %500 = vmatprep.subr.bf16.mxu0 0
  %501 = vmatpush1.bf16.msra.mxu0 %v460
  %502 = vmatprep.subr.bf16.mxu0 0
  %503 = vmatpush1.bf16.msra.mxu0 %v461
  %504 = vmatprep.subr.bf16.mxu0 0
  %505 = vmatpush1.bf16.msra.mxu0 %v462
  %506 = vmatprep.subr.bf16.mxu0 0
  %507 = vmatpush1.bf16.msra.mxu0 %v463
  %508 = vmatprep.subr.bf16.mxu0 0
  %509 = vmatpush1.bf16.msra.mxu0 %v464
  %510 = vmatprep.subr.bf16.mxu0 0
  %511 = vmatpush1.bf16.msra.mxu0 %v465
  %512 = vmatprep.subr.bf16.mxu0 0
  %513 = vmatpush1.bf16.msra.mxu0 %v466
  %514 = vmatprep.subr.bf16.mxu0 0
  %515 = vmatpush1.bf16.msra.mxu0 %v467
  %516 = vmatprep.subr.bf16.mxu0 0
  %517 = vmatpush1.bf16.msra.mxu0 %v468
  %518 = vmatprep.subr.bf16.mxu0 0
  %519 = vmatpush1.bf16.msra.mxu0 %v469
  %520 = vmatprep.subr.bf16.mxu0 0
  %521 = vmatpush1.bf16.msra.mxu0 %v470
  %522 = vmatprep.subr.bf16.mxu0 0
  %523 = vmatpush1.bf16.msra.mxu0 0
  %524 = vmatprep.mubr.bf16.mxu0 %v487
  %525 = vmatmul.mubr.bf16.gmra.mrb[0].mxu0 %v355
  %v526 = vpop.f32.mrb[0].mxu0
  %v527 = vadd.f32 %v394, %v526
  %v528 = vpop.f32.mrb[0].mxu0
  %v529 = vpop.f32.mrb[0].mxu0
  %v530 = vadd.f32 %v394, %v529
  %v531 = vpop.f32.mrb[0].mxu0
  %532 = vmatprep.mubr.bf16.mxu0 %v490
  %533 = vmatmul.mubr.bf16.gmra.mrb[0].mxu0 %v357
  %v534 = vpop.f32.mrb[0].mxu0
  %v535 = vadd.f32 %v394, %v534
  %v536 = vpop.f32.mrb[0].mxu0
  %v537 = vpop.f32.mrb[0].mxu0
  %v538 = vadd.f32 %v394, %v537
  %v539 = vpop.f32.mrb[0].mxu0
  %540 = vdwg.mxu0
  %v541 = vmax.f32 %v527, 0.0
  %v542 = vmax.f32 %v530, 0.0
  %v543 = vmax.f32 %v535, 0.0
  %v544 = vmax.f32 %v538, 0.0
  %v545 = vld [vmem:[%s3] sm:$0xff]
  %v546 = vld [vmem:[%s3 + $0x8] sm:$0xf]
  %v547 = vld [vmem:[%s3 + $0xc] sm:$0xff]
  %v548 = vld [vmem:[%s3 + $0x14] sm:$0xf]
  %v549 = vld [vmem:[%s3 + $0x18] sm:$0xff]
  %v550 = vld [vmem:[%s3 + $0x20] sm:$0xf]
  %v551 = vld [vmem:[%s3 + $0x24] sm:$0xff]
  %v552 = vld [vmem:[%s3 + $0x2c] sm:$0xf]
  %v553 = vld [vmem:[%s3 + $0x30] sm:$0xff]
  %v554 = vld [vmem:[%s3 + $0x38] sm:$0xf]
  %v555 = vld [vmem:[%s3 + $0x3c] sm:$0xff]
  %v556 = vld [vmem:[%s3 + $0x44] sm:$0xf]
  %v557 = vld [vmem:[%s3 + $0x48] sm:$0xff]
  %v558 = vld [vmem:[%s3 + $0x50] sm:$0xf]
  %v559 = vld [vmem:[%s3 + $0x54] sm:$0xff]
  %v560 = vld [vmem:[%s3 + $0x5c] sm:$0xf]
  %v561 = vld [vmem:[%s3 + $0x60] sm:$0xff]
  %v562 = vld [vmem:[%s3 + $0x68] sm:$0xf]
  %v563 = vld [vmem:[%s3 + $0x6c] sm:$0xff]
  %v564 = vld [vmem:[%s3 + $0x74] sm:$0xf]
  %v565 = vld [vmem:[%s3 + $0x78] sm:$0xff]
  %v566 = vld [vmem:[%s3 + $0x80] sm:$0xf]
  %v567 = vld [vmem:[%s3 + $0x84] sm:$0xff]
  %v568 = vld [vmem:[%s3 + $0x8c] sm:$0xf]
  %v569 = vld [vmem:[%s4] sm:$0x7]
  %v570 = vld [vmem:[%s5] sm:$0xf]
  %v571 = vld [vmem:[%s5 + $0x4] sm:$0xf]
  %v572 = vld [vmem:[%s5 + $0x8] sm:$0xf]
  %v573 = vld [vmem:[%s5 + $0xc] sm:$0xf]
  %v574 = vld [vmem:[%s5 + $0x10] sm:$0xf]
  %v575 = vld [vmem:[%s5 + $0x14] sm:$0xf]
  %v576 = vld [vmem:[%s5 + $0x18] sm:$0xf]
  %v577 = vld [vmem:[%s5 + $0x1c] sm:$0xf]
  %v578 = vld [vmem:[%s5 + $0x20] sm:$0xf]
  %v579 = vld [vmem:[%s5 + $0x24] sm:$0xf]
  %v580 = vld [vmem:[%s5 + $0x28] sm:$0xf]
  %v581 = vld [vmem:[%s5 + $0x2c] sm:$0xf]
  %v582 = vld [vmem:[%s6] sm:$0x1]
  %v583 = vpack.c.bf16 %v542, %v541
  %v584 = vpack.c.bf16 %v544, %v543
  %v586 = vlaneseq
  %v587 = vshrl.u32 %v586, 7
  %v588 = vsub.s32 0, %v587
  %v589 = vrot.slane %v569, %v588
  %v590 = vlaneseq
  %v591 = vshrl.u32 %v590, 7
  %v592 = vsub.s32 1, %v591
  %v593 = vrot.slane %v569, %v592
  %v594 = vlaneseq
  %v595 = vshrl.u32 %v594, 7
  %v596 = vsub.s32 2, %v595
  %v597 = vrot.slane %v569, %v596
  %v625 = vunpack.c.l.b16 %v545
  %v626 = vunpack.c.h.b16 %v545
  %v627 = vunpack.c.l.b16 %v546
  %v628 = vunpack.c.l.b16 %v547
  %v629 = vunpack.c.h.b16 %v547
  %v630 = vunpack.c.l.b16 %v548
  %v631 = vunpack.c.l.b16 %v549
  %v632 = vunpack.c.h.b16 %v549
  %v633 = vunpack.c.l.b16 %v550
  %v634 = vunpack.c.l.b16 %v551
  %v635 = vunpack.c.h.b16 %v551
  %v636 = vunpack.c.l.b16 %v552
  %v637 = vunpack.c.l.b16 %v553
  %v638 = vunpack.c.h.b16 %v553
  %v639 = vunpack.c.l.b16 %v554
  %v640 = vunpack.c.l.b16 %v555
  %v641 = vunpack.c.h.b16 %v555
  %v642 = vunpack.c.l.b16 %v556
  %v643 = vunpack.c.l.b16 %v557
  %v644 = vunpack.c.h.b16 %v557
  %v645 = vunpack.c.l.b16 %v558
  %v646 = vunpack.c.l.b16 %v559
  %v647 = vunpack.c.h.b16 %v559
  %v648 = vunpack.c.l.b16 %v560
  %v649 = vunpack.c.l.b16 %v561
  %v650 = vunpack.c.h.b16 %v561
  %v651 = vunpack.c.l.b16 %v562
  %v652 = vunpack.c.l.b16 %v563
  %v653 = vunpack.c.h.b16 %v563
  %v654 = vunpack.c.l.b16 %v564
  %v655 = vunpack.c.l.b16 %v565
  %v656 = vunpack.c.h.b16 %v565
  %v657 = vunpack.c.l.b16 %v566
  %v658 = vunpack.c.l.b16 %v567
  %v659 = vunpack.c.h.b16 %v567
  %v660 = vunpack.c.l.b16 %v568
  %v661 = vpack.c.b16 %v628, %v625
  %v662 = vpack.c.b16 %v629, %v626
  %v663 = vpack.c.b16 %v630, %v627
  %v664 = vpack.c.b16 %v634, %v631
  %v665 = vpack.c.b16 %v635, %v632
  %v666 = vpack.c.b16 %v636, %v633
  %v667 = vpack.c.b16 %v640, %v637
  %v668 = vpack.c.b16 %v641, %v638
  %v669 = vpack.c.b16 %v642, %v639
  %v670 = vpack.c.b16 %v646, %v643
  %v671 = vpack.c.b16 %v647, %v644
  %v672 = vpack.c.b16 %v648, %v645
  %v673 = vpack.c.b16 %v652, %v649
  %v674 = vpack.c.b16 %v653, %v650
  %v675 = vpack.c.b16 %v654, %v651
  %v676 = vpack.c.b16 %v658, %v655
  %v677 = vpack.c.b16 %v659, %v656
  %v678 = vpack.c.b16 %v660, %v657
  %v698 = vsel %vm207, %v583, 0
  %v701 = vsel %vm207, %v584, 0
  %703 = vmatprep.subr.bf16.mxu0 %v662
  %704 = vmatpush1.bf16.msra.mxu0 %v661
  %705 = vmatprep.subr.bf16.mxu0 %v665
  %706 = vmatpush1.bf16.msra.mxu0 %v664
  %707 = vmatprep.subr.bf16.mxu0 %v668
  %708 = vmatpush1.bf16.msra.mxu0 %v667
  %709 = vmatprep.subr.bf16.mxu0 %v671
  %710 = vmatpush1.bf16.msra.mxu0 %v670
  %711 = vmatprep.subr.bf16.mxu0 %v674
  %712 = vmatpush1.bf16.msra.mxu0 %v673
  %713 = vmatprep.subr.bf16.mxu0 %v677
  %714 = vmatpush1.bf16.msra.mxu0 %v676
  %715 = vmatprep.subr.bf16.mxu0 0
  %716 = vmatpush1.bf16.msra.mxu0 0
  %717 = vmatprep.subr.bf16.mxu0 0
  %718 = vmatpush1.bf16.msra.mxu0 0
  %719 = vmatprep.subr.bf16.mxu0 0
  %720 = vmatpush1.bf16.msra.mxu0 0
  %721 = vmatprep.subr.bf16.mxu0 0
  %722 = vmatpush1.bf16.msra.mxu0 0
  %723 = vmatprep.subr.bf16.mxu0 0
  %724 = vmatpush1.bf16.msra.mxu0 0
  %725 = vmatprep.subr.bf16.mxu0 0
  %726 = vmatpush1.bf16.msra.mxu0 0
  %727 = vmatprep.subr.bf16.mxu0 0
  %728 = vmatpush1.bf16.msra.mxu0 0
  %729 = vmatprep.subr.bf16.mxu0 0
  %730 = vmatpush1.bf16.msra.mxu0 0
  %731 = vmatprep.subr.bf16.mxu0 0
  %732 = vmatpush1.bf16.msra.mxu0 0
  %733 = vmatprep.subr.bf16.mxu0 0
  %734 = vmatpush1.bf16.msra.mxu0 0
  %735 = vmatprep.mubr.bf16.mxu0 0
  %736 = vmatmul.mubr.bf16.gmra.mrb[0].mxu0 %v698
  %v737 = vpop.f32.mrb[0].mxu0
  %v738 = vadd.f32 %v589, %v737
  %v739 = vpop.f32.mrb[0].mxu0
  %v740 = vadd.f32 %v593, %v739
  %v741 = vpop.f32.mrb[0].mxu0
  %v742 = vadd.f32 %v589, %v741
  %v743 = vpop.f32.mrb[0].mxu0
  %v744 = vadd.f32 %v593, %v743
  %745 = vmatprep.mubr.bf16.mxu0 0
  %746 = vmatmul.mubr.bf16.gmra.mrb[0].mxu0 %v701
  %v747 = vpop.f32.mrb[0].mxu0
  %v748 = vadd.f32 %v589, %v747
  %v749 = vpop.f32.mrb[0].mxu0
  %v750 = vadd.f32 %v593, %v749
  %v751 = vpop.f32.mrb[0].mxu0
  %v752 = vadd.f32 %v589, %v751
  %v753 = vpop.f32.mrb[0].mxu0
  %v754 = vadd.f32 %v593, %v753
  %755 = vdwg.mxu0
  %756 = vmatprep.subr.bf16.mxu0 0
  %757 = vmatpush1.bf16.msra.mxu0 %v663
  %758 = vmatprep.subr.bf16.mxu0 0
  %759 = vmatpush1.bf16.msra.mxu0 %v666
  %760 = vmatprep.subr.bf16.mxu0 0
  %761 = vmatpush1.bf16.msra.mxu0 %v669
  %762 = vmatprep.subr.bf16.mxu0 0
  %763 = vmatpush1.bf16.msra.mxu0 %v672
  %764 = vmatprep.subr.bf16.mxu0 0
  %765 = vmatpush1.bf16.msra.mxu0 %v675
  %766 = vmatprep.subr.bf16.mxu0 0
  %767 = vmatpush1.bf16.msra.mxu0 %v678
  %768 = vmatprep.subr.bf16.mxu0 0
  %769 = vmatpush1.bf16.msra.mxu0 0
  %770 = vmatprep.subr.bf16.mxu0 0
  %771 = vmatpush1.bf16.msra.mxu0 0
  %772 = vmatprep.subr.bf16.mxu0 0
  %773 = vmatpush1.bf16.msra.mxu0 0
  %774 = vmatprep.subr.bf16.mxu0 0
  %775 = vmatpush1.bf16.msra.mxu0 0
  %776 = vmatprep.subr.bf16.mxu0 0
  %777 = vmatpush1.bf16.msra.mxu0 0
  %778 = vmatprep.subr.bf16.mxu0 0
  %779 = vmatpush1.bf16.msra.mxu0 0
  %780 = vmatprep.subr.bf16.mxu0 0
  %781 = vmatpush1.bf16.msra.mxu0 0
  %782 = vmatprep.subr.bf16.mxu0 0
  %783 = vmatpush1.bf16.msra.mxu0 0
  %784 = vmatprep.subr.bf16.mxu0 0
  %785 = vmatpush1.bf16.msra.mxu0 0
  %786 = vmatprep.subr.bf16.mxu0 0
  %787 = vmatpush1.bf16.msra.mxu0 0
  %788 = vmatprep.mubr.bf16.mxu0 0
  %789 = vmatmul.mubr.bf16.gmra.mrb[0].mxu0 %v698
  %v790 = vpop.f32.mrb[0].mxu0
  %v791 = vadd.f32 %v597, %v790
  %v792 = vpop.f32.mrb[0].mxu0
  %v793 = vpop.f32.mrb[0].mxu0
  %v794 = vadd.f32 %v597, %v793
  %v795 = vpop.f32.mrb[0].mxu0
  %796 = vmatprep.mubr.bf16.mxu0 0
  %797 = vmatmul.mubr.bf16.gmra.mrb[0].mxu0 %v701
  %v798 = vpop.f32.mrb[0].mxu0
  %v799 = vadd.f32 %v597, %v798
  %v800 = vpop.f32.mrb[0].mxu0
  %v801 = vpop.f32.mrb[0].mxu0
  %v802 = vadd.f32 %v597, %v801
  %v803 = vpop.f32.mrb[0].mxu0
  %804 = vdwg.mxu0
  %807 = vrot.lane.b32.xlu0 %v738, 104
  %v808 = vpop.permute.xlu0 %807
  %809 = vrot.lane.b32.xlu0 %v742, 104
  %v810 = vpop.permute.xlu0 %809
  %813 = vrot.lane.b32.xlu0 %v738, 80
  %v814 = vpop.permute.xlu0 %813
  %815 = vrot.lane.b32.xlu0 %v742, 80
  %v816 = vpop.permute.xlu0 %815
  %819 = vrot.lane.b32.xlu0 %v738, 56
  %v820 = vpop.permute.xlu0 %819
  %821 = vrot.lane.b32.xlu0 %v742, 56
  %v822 = vpop.permute.xlu0 %821
  %v825 = vpack.c.bf16 %v742, %v738
  %v826 = vpack.c.bf16 %v810, %v808
  %v827 = vpack.c.bf16 %v816, %v814
  %v828 = vpack.c.bf16 %v822, %v820
  %831 = vrot.lane.b32.xlu0 %v740, 104
  %v832 = vpop.permute.xlu0 %831
  %833 = vrot.lane.b32.xlu0 %v744, 104
  %v834 = vpop.permute.xlu0 %833
  %vm835 = vcmask 850944
  %v836 = vsel %vm835, %v808, %v832
  %v837 = vsel %vm835, %v810, %v834
  %840 = vrot.lane.b32.xlu0 %v740, 80
  %v841 = vpop.permute.xlu0 %840
  %842 = vrot.lane.b32.xlu0 %v744, 80
  %v843 = vpop.permute.xlu0 %842
  %846 = vrot.lane.b32.xlu0 %v740, 56
  %v847 = vpop.permute.xlu0 %846
  %848 = vrot.lane.b32.xlu0 %v744, 56
  %v849 = vpop.permute.xlu0 %848
  %v852 = vpack.c.bf16 %v837, %v836
  %v853 = vpack.c.bf16 %v843, %v841
  %v854 = vpack.c.bf16 %v849, %v847
  %859 = vrot.lane.b32.xlu0 %v791, 80
  %v860 = vpop.permute.xlu0 %859
  %861 = vrot.lane.b32.xlu0 %v794, 80
  %v862 = vpop.permute.xlu0 %861
  %v863 = vsel %vm204, %v841, %v860
  %v864 = vsel %vm204, %v843, %v862
  %867 = vrot.lane.b32.xlu0 %v791, 56
  %v868 = vpop.permute.xlu0 %867
  %869 = vrot.lane.b32.xlu0 %v794, 56
  %v870 = vpop.permute.xlu0 %869
  %v873 = vpack.c.bf16 %v744, %v740
  %v874 = vpack.c.bf16 %v834, %v832
  %v875 = vpack.c.bf16 %v864, %v863
  %v876 = vpack.c.bf16 %v870, %v868
  %878 = vrot.lane.b32.xlu0 %v825, 32
  %v879 = vpop.permute.xlu0 %878
  %vm880 = vcmask 195584
  %v882 = vsel %vm880, %v825, 0
  %v885 = vsel %vm880, %v879, 0
  %887 = vmatprep.subr.bf16.mxu0 0
  %888 = vmatpush1.bf16.xpose.msra.mxu0 %v885
  %889 = vmatprep.subr.bf16.mxu0 0
  %890 = vmatpush1.bf16.xpose.msra.mxu0 0
  %891 = vmatprep.subr.bf16.mxu0 0
  %892 = vmatpush1.bf16.xpose.msra.mxu0 0
  %893 = vmatprep.subr.bf16.mxu0 0
  %894 = vmatpush1.bf16.xpose.msra.mxu0 0
  %895 = vmatprep.subr.bf16.mxu0 0
  %896 = vmatpush1.bf16.xpose.msra.mxu0 0
  %897 = vmatprep.subr.bf16.mxu0 0
  %898 = vmatpush1.bf16.xpose.msra.mxu0 0
  %899 = vmatprep.subr.bf16.mxu0 0
  %900 = vmatpush1.bf16.xpose.msra.mxu0 0
  %901 = vmatprep.subr.bf16.mxu0 0
  %902 = vmatpush1.bf16.xpose.msra.mxu0 0
  %903 = vmatprep.subr.bf16.mxu0 0
  %904 = vmatpush1.bf16.xpose.msra.mxu0 0
  %905 = vmatprep.subr.bf16.mxu0 0
  %906 = vmatpush1.bf16.xpose.msra.mxu0 0
  %907 = vmatprep.subr.bf16.mxu0 0
  %908 = vmatpush1.bf16.xpose.msra.mxu0 0
  %909 = vmatprep.subr.bf16.mxu0 0
  %910 = vmatpush1.bf16.xpose.msra.mxu0 0
  %911 = vmatprep.subr.bf16.mxu0 0
  %912 = vmatpush1.bf16.xpose.msra.mxu0 0
  %913 = vmatprep.subr.bf16.mxu0 0
  %914 = vmatpush1.bf16.xpose.msra.mxu0 0
  %915 = vmatprep.subr.bf16.mxu0 0
  %916 = vmatpush1.bf16.xpose.msra.mxu0 0
  %917 = vmatprep.subr.bf16.mxu0 0
  %918 = vmatpush1.bf16.xpose.msra.mxu0 0
  %919 = vmatprep.mubr.bf16.mxu0 0
  %920 = vmatmul.mubr.bf16.gmra.mrb[0].mxu0 %v882
  %v921 = vpop.f32.mrb[0].mxu0
  %v922 = vadd.f32 0.0, %v921
  %v923 = vpop.f32.mrb[0].mxu0
  %v924 = vpop.f32.mrb[0].mxu0
  %v925 = vadd.f32 0.0, %v924
  %v926 = vpop.f32.mrb[0].mxu0
  %927 = vdwg.mxu0
  %929 = vrot.lane.b32.xlu0 %v852, 32
  %v930 = vpop.permute.xlu0 %929
  %v932 = vsel %vm880, %v826, 0
  %v935 = vsel %vm880, %v930, 0
  %937 = vmatprep.subr.bf16.mxu0 0
  %938 = vmatpush1.bf16.xpose.msra.mxu0 %v935
  %939 = vmatprep.subr.bf16.mxu0 0
  %940 = vmatpush1.bf16.xpose.msra.mxu0 0
  %941 = vmatprep.subr.bf16.mxu0 0
  %942 = vmatpush1.bf16.xpose.msra.mxu0 0
  %943 = vmatprep.subr.bf16.mxu0 0
  %944 = vmatpush1.bf16.xpose.msra.mxu0 0
  %945 = vmatprep.subr.bf16.mxu0 0
  %946 = vmatpush1.bf16.xpose.msra.mxu0 0
  %947 = vmatprep.subr.bf16.mxu0 0
  %948 = vmatpush1.bf16.xpose.msra.mxu0 0
  %949 = vmatprep.subr.bf16.mxu0 0
  %950 = vmatpush1.bf16.xpose.msra.mxu0 0
  %951 = vmatprep.subr.bf16.mxu0 0
  %952 = vmatpush1.bf16.xpose.msra.mxu0 0
  %953 = vmatprep.subr.bf16.mxu0 0
  %954 = vmatpush1.bf16.xpose.msra.mxu0 0
  %955 = vmatprep.subr.bf16.mxu0 0
  %956 = vmatpush1.bf16.xpose.msra.mxu0 0
  %957 = vmatprep.subr.bf16.mxu0 0
  %958 = vmatpush1.bf16.xpose.msra.mxu0 0
  %959 = vmatprep.subr.bf16.mxu0 0
  %960 = vmatpush1.bf16.xpose.msra.mxu0 0
  %961 = vmatprep.subr.bf16.mxu0 0
  %962 = vmatpush1.bf16.xpose.msra.mxu0 0
  %963 = vmatprep.subr.bf16.mxu0 0
  %964 = vmatpush1.bf16.xpose.msra.mxu0 0
  %965 = vmatprep.subr.bf16.mxu0 0
  %966 = vmatpush1.bf16.xpose.msra.mxu0 0
  %967 = vmatprep.subr.bf16.mxu0 0
  %968 = vmatpush1.bf16.xpose.msra.mxu0 0
  %969 = vmatprep.mubr.bf16.mxu0 0
  %970 = vmatmul.mubr.bf16.gmra.mrb[0].mxu0 %v932
  %v971 = vpop.f32.mrb[0].mxu0
  %v972 = vadd.f32 0.0, %v971
  %v973 = vpop.f32.mrb[0].mxu0
  %v974 = vpop.f32.mrb[0].mxu0
  %v975 = vadd.f32 0.0, %v974
  %v976 = vpop.f32.mrb[0].mxu0
  %977 = vdwg.mxu0
  %979 = vrot.lane.b32.xlu0 %v853, 32
  %v980 = vpop.permute.xlu0 %979
  %v982 = vsel %vm880, %v827, 0
  %v985 = vsel %vm880, %v980, 0
  %987 = vmatprep.subr.bf16.mxu0 0
  %988 = vmatpush1.bf16.xpose.msra.mxu0 %v985
  %989 = vmatprep.subr.bf16.mxu0 0
  %990 = vmatpush1.bf16.xpose.msra.mxu0 0
  %991 = vmatprep.subr.bf16.mxu0 0
  %992 = vmatpush1.bf16.xpose.msra.mxu0 0
  %993 = vmatprep.subr.bf16.mxu0 0
  %994 = vmatpush1.bf16.xpose.msra.mxu0 0
  %995 = vmatprep.subr.bf16.mxu0 0
  %996 = vmatpush1.bf16.xpose.msra.mxu0 0
  %997 = vmatprep.subr.bf16.mxu0 0
  %998 = vmatpush1.bf16.xpose.msra.mxu0 0
  %999 = vmatprep.subr.bf16.mxu0 0
  %1000 = vmatpush1.bf16.xpose.msra.mxu0 0
  %1001 = vmatprep.subr.bf16.mxu0 0
  %1002 = vmatpush1.bf16.xpose.msra.mxu0 0
  %1003 = vmatprep.subr.bf16.mxu0 0
  %1004 = vmatpush1.bf16.xpose.msra.mxu0 0
  %1005 = vmatprep.subr.bf16.mxu0 0
  %1006 = vmatpush1.bf16.xpose.msra.mxu0 0
  %1007 = vmatprep.subr.bf16.mxu0 0
  %1008 = vmatpush1.bf16.xpose.msra.mxu0 0
  %1009 = vmatprep.subr.bf16.mxu0 0
  %1010 = vmatpush1.bf16.xpose.msra.mxu0 0
  %1011 = vmatprep.subr.bf16.mxu0 0
  %1012 = vmatpush1.bf16.xpose.msra.mxu0 0
  %1013 = vmatprep.subr.bf16.mxu0 0
  %1014 = vmatpush1.bf16.xpose.msra.mxu0 0
  %1015 = vmatprep.subr.bf16.mxu0 0
  %1016 = vmatpush1.bf16.xpose.msra.mxu0 0
  %1017 = vmatprep.subr.bf16.mxu0 0
  %1018 = vmatpush1.bf16.xpose.msra.mxu0 0
  %1019 = vmatprep.mubr.bf16.mxu0 0
  %1020 = vmatmul.mubr.bf16.gmra.mrb[0].mxu0 %v982
  %v1021 = vpop.f32.mrb[0].mxu0
  %v1022 = vadd.f32 0.0, %v1021
  %v1023 = vpop.f32.mrb[0].mxu0
  %v1024 = vpop.f32.mrb[0].mxu0
  %v1025 = vadd.f32 0.0, %v1024
  %v1026 = vpop.f32.mrb[0].mxu0
  %1027 = vdwg.mxu0
  %1029 = vrot.lane.b32.xlu0 %v854, 32
  %v1030 = vpop.permute.xlu0 %1029
  %v1032 = vsel %vm880, %v828, 0
  %v1035 = vsel %vm880, %v1030, 0
  %1037 = vmatprep.subr.bf16.mxu0 0
  %1038 = vmatpush1.bf16.xpose.msra.mxu0 %v1035
  %1039 = vmatprep.subr.bf16.mxu0 0
  %1040 = vmatpush1.bf16.xpose.msra.mxu0 0
  %1041 = vmatprep.subr.bf16.mxu0 0
  %1042 = vmatpush1.bf16.xpose.msra.mxu0 0
  %1043 = vmatprep.subr.bf16.mxu0 0
  %1044 = vmatpush1.bf16.xpose.msra.mxu0 0
  %1045 = vmatprep.subr.bf16.mxu0 0
  %1046 = vmatpush1.bf16.xpose.msra.mxu0 0
  %1047 = vmatprep.subr.bf16.mxu0 0
  %1048 = vmatpush1.bf16.xpose.msra.mxu0 0
  %1049 = vmatprep.subr.bf16.mxu0 0
  %1050 = vmatpush1.bf16.xpose.msra.mxu0 0
  %1051 = vmatprep.subr.bf16.mxu0 0
  %1052 = vmatpush1.bf16.xpose.msra.mxu0 0
  %1053 = vmatprep.subr.bf16.mxu0 0
  %1054 = vmatpush1.bf16.xpose.msra.mxu0 0
  %1055 = vmatprep.subr.bf16.mxu0 0
  %1056 = vmatpush1.bf16.xpose.msra.mxu0 0
  %1057 = vmatprep.subr.bf16.mxu0 0
  %1058 = vmatpush1.bf16.xpose.msra.mxu0 0
  %1059 = vmatprep.subr.bf16.mxu0 0
  %1060 = vmatpush1.bf16.xpose.msra.mxu0 0
  %1061 = vmatprep.subr.bf16.mxu0 0
  %1062 = vmatpush1.bf16.xpose.msra.mxu0 0
  %1063 = vmatprep.subr.bf16.mxu0 0
  %1064 = vmatpush1.bf16.xpose.msra.mxu0 0
  %1065 = vmatprep.subr.bf16.mxu0 0
  %1066 = vmatpush1.bf16.xpose.msra.mxu0 0
  %1067 = vmatprep.subr.bf16.mxu0 0
  %1068 = vmatpush1.bf16.xpose.msra.mxu0 0
  %1069 = vmatprep.mubr.bf16.mxu0 0
  %1070 = vmatmul.mubr.bf16.gmra.mrb[0].mxu0 %v1032
  %v1071 = vpop.f32.mrb[0].mxu0
  %v1072 = vadd.f32 0.0, %v1071
  %v1073 = vpop.f32.mrb[0].mxu0
  %v1074 = vpop.f32.mrb[0].mxu0
  %v1075 = vadd.f32 0.0, %v1074
  %v1076 = vpop.f32.mrb[0].mxu0
  %1077 = vdwg.mxu0
  %v1078 = vmul.f32 %v922, 0.20412415
  %v1079 = vmul.f32 %v925, 0.20412415
  %v1080 = vmul.f32 %v972, 0.20412415
  %v1081 = vmul.f32 %v975, 0.20412415
  %v1082 = vmul.f32 %v1022, 0.20412415
  %v1083 = vmul.f32 %v1025, 0.20412415
  %v1084 = vmul.f32 %v1072, 0.20412415
  %v1085 = vmul.f32 %v1075, 0.20412415
  %v1086 = vsel %vm192, %v1078, -inf
  %1087 = vmax.xlane.f32.xlu0 %v1086
  %v1088 = vpop.xlane.xlu0 %1087
  %v1089 = vsel %vm192, %v1079, -inf
  %1090 = vmax.xlane.f32.xlu0 %v1089
  %v1091 = vpop.xlane.xlu0 %1090
  %v1092 = vsel %vm192, %v1080, -inf
  %1093 = vmax.xlane.f32.xlu0 %v1092
  %v1094 = vpop.xlane.xlu0 %1093
  %v1095 = vsel %vm192, %v1081, -inf
  %1096 = vmax.xlane.f32.xlu0 %v1095
  %v1097 = vpop.xlane.xlu0 %1096
  %v1098 = vsel %vm192, %v1082, -inf
  %1099 = vmax.xlane.f32.xlu0 %v1098
  %v1100 = vpop.xlane.xlu0 %1099
  %v1101 = vsel %vm192, %v1083, -inf
  %1102 = vmax.xlane.f32.xlu0 %v1101
  %v1103 = vpop.xlane.xlu0 %1102
  %v1104 = vsel %vm192, %v1084, -inf
  %1105 = vmax.xlane.f32.xlu0 %v1104
  %v1106 = vpop.xlane.xlu0 %1105
  %v1107 = vsel %vm192, %v1085, -inf
  %1108 = vmax.xlane.f32.xlu0 %v1107
  %v1109 = vpop.xlane.xlu0 %1108
  %v1110 = vsub.f32 %v1078, %v1088
  %v1111 = vsub.f32 %v1079, %v1091
  %v1112 = vsub.f32 %v1080, %v1094
  %v1113 = vsub.f32 %v1081, %v1097
  %v1114 = vsub.f32 %v1082, %v1100
  %v1115 = vsub.f32 %v1083, %v1103
  %v1116 = vsub.f32 %v1084, %v1106
  %v1117 = vsub.f32 %v1085, %v1109
  %v1118 = vmul.f32 %v1110, 1.442695
  %v1119 = vpow.pop %v1118
  %v1120 = vmul.f32 %v1111, 1.442695
  %v1121 = vpow.pop %v1120
  %v1122 = vmul.f32 %v1112, 1.442695
  %v1123 = vpow.pop %v1122
  %v1124 = vmul.f32 %v1113, 1.442695
  %v1125 = vpow.pop %v1124
  %v1126 = vmul.f32 %v1114, 1.442695
  %v1127 = vpow.pop %v1126
  %v1128 = vmul.f32 %v1115, 1.442695
  %v1129 = vpow.pop %v1128
  %v1130 = vmul.f32 %v1116, 1.442695
  %v1131 = vpow.pop %v1130
  %v1132 = vmul.f32 %v1117, 1.442695
  %v1133 = vpow.pop %v1132
  %v1134 = vsel %vm192, %v1119, 0.0
  %1135 = vadd.xlane.f32.xlu0 %v1134
  %v1136 = vpop.xlane.xlu0 %1135
  %v1137 = vsel %vm192, %v1121, 0.0
  %1138 = vadd.xlane.f32.xlu0 %v1137
  %v1139 = vpop.xlane.xlu0 %1138
  %v1140 = vsel %vm192, %v1123, 0.0
  %1141 = vadd.xlane.f32.xlu0 %v1140
  %v1142 = vpop.xlane.xlu0 %1141
  %v1143 = vsel %vm192, %v1125, 0.0
  %1144 = vadd.xlane.f32.xlu0 %v1143
  %v1145 = vpop.xlane.xlu0 %1144
  %v1146 = vsel %vm192, %v1127, 0.0
  %1147 = vadd.xlane.f32.xlu0 %v1146
  %v1148 = vpop.xlane.xlu0 %1147
  %v1149 = vsel %vm192, %v1129, 0.0
  %1150 = vadd.xlane.f32.xlu0 %v1149
  %v1151 = vpop.xlane.xlu0 %1150
  %v1152 = vsel %vm192, %v1131, 0.0
  %1153 = vadd.xlane.f32.xlu0 %v1152
  %v1154 = vpop.xlane.xlu0 %1153
  %v1155 = vsel %vm192, %v1133, 0.0
  %1156 = vadd.xlane.f32.xlu0 %v1155
  %v1157 = vpop.xlane.xlu0 %1156
  %v1158 = vrcp.pop %v1136
  %v1159 = vrcp.pop %v1139
  %v1160 = vrcp.pop %v1142
  %v1161 = vrcp.pop %v1145
  %v1162 = vrcp.pop %v1148
  %v1163 = vrcp.pop %v1151
  %v1164 = vrcp.pop %v1154
  %v1165 = vrcp.pop %v1157
  %v1166 = vmul.f32 %v1119, %v1158
  %v1167 = vmul.f32 %v1121, %v1159
  %v1168 = vmul.f32 %v1123, %v1160
  %v1169 = vmul.f32 %v1125, %v1161
  %v1170 = vmul.f32 %v1127, %v1162
  %v1171 = vmul.f32 %v1129, %v1163
  %v1172 = vmul.f32 %v1131, %v1164
  %v1173 = vmul.f32 %v1133, %v1165
  %v1174 = vpack.c.bf16 %v1167, %v1166
  %v1175 = vpack.c.bf16 %v1169, %v1168
  %v1176 = vpack.c.bf16 %v1171, %v1170
  %v1177 = vpack.c.bf16 %v1173, %v1172
  %1179 = vrot.lane.b32.xlu0 %v873, 64
  %v1180 = vpop.permute.xlu0 %1179
  %v1183 = vsel %vm192, %v1174, 0
  %1185 = vmatprep.subr.bf16.mxu0 0
  %1186 = vmatpush1.bf16.msra.mxu0 %v1180
  %1187 = vmatprep.subr.bf16.mxu0 0
  %1188 = vmatpush1.bf16.msra.mxu0 0
  %1189 = vmatprep.subr.bf16.mxu0 0
  %1190 = vmatpush1.bf16.msra.mxu0 0
  %1191 = vmatprep.subr.bf16.mxu0 0
  %1192 = vmatpush1.bf16.msra.mxu0 0
  %1193 = vmatprep.subr.bf16.mxu0 0
  %1194 = vmatpush1.bf16.msra.mxu0 0
  %1195 = vmatprep.subr.bf16.mxu0 0
  %1196 = vmatpush1.bf16.msra.mxu0 0
  %1197 = vmatprep.subr.bf16.mxu0 0
  %1198 = vmatpush1.bf16.msra.mxu0 0
  %1199 = vmatprep.subr.bf16.mxu0 0
  %1200 = vmatpush1.bf16.msra.mxu0 0
  %1201 = vmatprep.subr.bf16.mxu0 0
  %1202 = vmatpush1.bf16.msra.mxu0 0
  %1203 = vmatprep.subr.bf16.mxu0 0
  %1204 = vmatpush1.bf16.msra.mxu0 0
  %1205 = vmatprep.subr.bf16.mxu0 0
  %1206 = vmatpush1.bf16.msra.mxu0 0
  %1207 = vmatprep.subr.bf16.mxu0 0
  %1208 = vmatpush1.bf16.msra.mxu0 0
  %1209 = vmatprep.subr.bf16.mxu0 0
  %1210 = vmatpush1.bf16.msra.mxu0 0
  %1211 = vmatprep.subr.bf16.mxu0 0
  %1212 = vmatpush1.bf16.msra.mxu0 0
  %1213 = vmatprep.subr.bf16.mxu0 0
  %1214 = vmatpush1.bf16.msra.mxu0 0
  %1215 = vmatprep.subr.bf16.mxu0 0
  %1216 = vmatpush1.bf16.msra.mxu0 0
  %1217 = vmatprep.mubr.bf16.mxu0 0
  %1218 = vmatmul.mubr.bf16.gmra.mrb[0].mxu0 %v1183
  %v1219 = vpop.f32.mrb[0].mxu0
  %v1220 = vadd.f32 0.0, %v1219
  %v1221 = vpop.f32.mrb[0].mxu0
  %v1222 = vpop.f32.mrb[0].mxu0
  %v1223 = vadd.f32 0.0, %v1222
  %v1224 = vpop.f32.mrb[0].mxu0
  %1225 = vdwg.mxu0
  %1227 = vrot.lane.b32.xlu0 %v874, 64
  %v1228 = vpop.permute.xlu0 %1227
  %v1231 = vsel %vm192, %v1175, 0
  %1233 = vmatprep.subr.bf16.mxu0 0
  %1234 = vmatpush1.bf16.msra.mxu0 %v1228
  %1235 = vmatprep.subr.bf16.mxu0 0
  %1236 = vmatpush1.bf16.msra.mxu0 0
  %1237 = vmatprep.subr.bf16.mxu0 0
  %1238 = vmatpush1.bf16.msra.mxu0 0
  %1239 = vmatprep.subr.bf16.mxu0 0
  %1240 = vmatpush1.bf16.msra.mxu0 0
  %1241 = vmatprep.subr.bf16.mxu0 0
  %1242 = vmatpush1.bf16.msra.mxu0 0
  %1243 = vmatprep.subr.bf16.mxu0 0
  %1244 = vmatpush1.bf16.msra.mxu0 0
  %1245 = vmatprep.subr.bf16.mxu0 0
  %1246 = vmatpush1.bf16.msra.mxu0 0
  %1247 = vmatprep.subr.bf16.mxu0 0
  %1248 = vmatpush1.bf16.msra.mxu0 0
  %1249 = vmatprep.subr.bf16.mxu0 0
  %1250 = vmatpush1.bf16.msra.mxu0 0
  %1251 = vmatprep.subr.bf16.mxu0 0
  %1252 = vmatpush1.bf16.msra.mxu0 0
  %1253 = vmatprep.subr.bf16.mxu0 0
  %1254 = vmatpush1.bf16.msra.mxu0 0
  %1255 = vmatprep.subr.bf16.mxu0 0
  %1256 = vmatpush1.bf16.msra.mxu0 0
  %1257 = vmatprep.subr.bf16.mxu0 0
  %1258 = vmatpush1.bf16.msra.mxu0 0
  %1259 = vmatprep.subr.bf16.mxu0 0
  %1260 = vmatpush1.bf16.msra.mxu0 0
  %1261 = vmatprep.subr.bf16.mxu0 0
  %1262 = vmatpush1.bf16.msra.mxu0 0
  %1263 = vmatprep.subr.bf16.mxu0 0
  %1264 = vmatpush1.bf16.msra.mxu0 0
  %1265 = vmatprep.mubr.bf16.mxu0 0
  %1266 = vmatmul.mubr.bf16.gmra.mrb[0].mxu0 %v1231
  %v1267 = vpop.f32.mrb[0].mxu0
  %v1268 = vadd.f32 0.0, %v1267
  %v1269 = vpop.f32.mrb[0].mxu0
  %v1270 = vpop.f32.mrb[0].mxu0
  %v1271 = vadd.f32 0.0, %v1270
  %v1272 = vpop.f32.mrb[0].mxu0
  %1273 = vdwg.mxu0
  %1275 = vrot.lane.b32.xlu0 %v875, 64
  %v1276 = vpop.permute.xlu0 %1275
  %v1279 = vsel %vm192, %v1176, 0
  %1281 = vmatprep.subr.bf16.mxu0 0
  %1282 = vmatpush1.bf16.msra.mxu0 %v1276
  %1283 = vmatprep.subr.bf16.mxu0 0
  %1284 = vmatpush1.bf16.msra.mxu0 0
  %1285 = vmatprep.subr.bf16.mxu0 0
  %1286 = vmatpush1.bf16.msra.mxu0 0
  %1287 = vmatprep.subr.bf16.mxu0 0
  %1288 = vmatpush1.bf16.msra.mxu0 0
  %1289 = vmatprep.subr.bf16.mxu0 0
  %1290 = vmatpush1.bf16.msra.mxu0 0
  %1291 = vmatprep.subr.bf16.mxu0 0
  %1292 = vmatpush1.bf16.msra.mxu0 0
  %1293 = vmatprep.subr.bf16.mxu0 0
  %1294 = vmatpush1.bf16.msra.mxu0 0
  %1295 = vmatprep.subr.bf16.mxu0 0
  %1296 = vmatpush1.bf16.msra.mxu0 0
  %1297 = vmatprep.subr.bf16.mxu0 0
  %1298 = vmatpush1.bf16.msra.mxu0 0
  %1299 = vmatprep.subr.bf16.mxu0 0
  %1300 = vmatpush1.bf16.msra.mxu0 0
  %1301 = vmatprep.subr.bf16.mxu0 0
  %1302 = vmatpush1.bf16.msra.mxu0 0
  %1303 = vmatprep.subr.bf16.mxu0 0
  %1304 = vmatpush1.bf16.msra.mxu0 0
  %1305 = vmatprep.subr.bf16.mxu0 0
  %1306 = vmatpush1.bf16.msra.mxu0 0
  %1307 = vmatprep.subr.bf16.mxu0 0
  %1308 = vmatpush1.bf16.msra.mxu0 0
  %1309 = vmatprep.subr.bf16.mxu0 0
  %1310 = vmatpush1.bf16.msra.mxu0 0
  %1311 = vmatprep.subr.bf16.mxu0 0
  %1312 = vmatpush1.bf16.msra.mxu0 0
  %1313 = vmatprep.mubr.bf16.mxu0 0
  %1314 = vmatmul.mubr.bf16.gmra.mrb[0].mxu0 %v1279
  %v1315 = vpop.f32.mrb[0].mxu0
  %v1316 = vadd.f32 0.0, %v1315
  %v1317 = vpop.f32.mrb[0].mxu0
  %v1318 = vpop.f32.mrb[0].mxu0
  %v1319 = vadd.f32 0.0, %v1318
  %v1320 = vpop.f32.mrb[0].mxu0
  %1321 = vdwg.mxu0
  %1323 = vrot.lane.b32.xlu0 %v876, 64
  %v1324 = vpop.permute.xlu0 %1323
  %v1327 = vsel %vm192, %v1177, 0
  %1329 = vmatprep.subr.bf16.mxu0 0
  %1330 = vmatpush1.bf16.msra.mxu0 %v1324
  %1331 = vmatprep.subr.bf16.mxu0 0
  %1332 = vmatpush1.bf16.msra.mxu0 0
  %1333 = vmatprep.subr.bf16.mxu0 0
  %1334 = vmatpush1.bf16.msra.mxu0 0
  %1335 = vmatprep.subr.bf16.mxu0 0
  %1336 = vmatpush1.bf16.msra.mxu0 0
  %1337 = vmatprep.subr.bf16.mxu0 0
  %1338 = vmatpush1.bf16.msra.mxu0 0
  %1339 = vmatprep.subr.bf16.mxu0 0
  %1340 = vmatpush1.bf16.msra.mxu0 0
  %1341 = vmatprep.subr.bf16.mxu0 0
  %1342 = vmatpush1.bf16.msra.mxu0 0
  %1343 = vmatprep.subr.bf16.mxu0 0
  %1344 = vmatpush1.bf16.msra.mxu0 0
  %1345 = vmatprep.subr.bf16.mxu0 0
  %1346 = vmatpush1.bf16.msra.mxu0 0
  %1347 = vmatprep.subr.bf16.mxu0 0
  %1348 = vmatpush1.bf16.msra.mxu0 0
  %1349 = vmatprep.subr.bf16.mxu0 0
  %1350 = vmatpush1.bf16.msra.mxu0 0
  %1351 = vmatprep.subr.bf16.mxu0 0
  %1352 = vmatpush1.bf16.msra.mxu0 0
  %1353 = vmatprep.subr.bf16.mxu0 0
  %1354 = vmatpush1.bf16.msra.mxu0 0
  %1355 = vmatprep.subr.bf16.mxu0 0
  %1356 = vmatpush1.bf16.msra.mxu0 0
  %1357 = vmatprep.subr.bf16.mxu0 0
  %1358 = vmatpush1.bf16.msra.mxu0 0
  %1359 = vmatprep.subr.bf16.mxu0 0
  %1360 = vmatpush1.bf16.msra.mxu0 0
  %1361 = vmatprep.mubr.bf16.mxu0 0
  %1362 = vmatmul.mubr.bf16.gmra.mrb[0].mxu0 %v1327
  %v1363 = vpop.f32.mrb[0].mxu0
  %v1364 = vadd.f32 0.0, %v1363
  %v1365 = vpop.f32.mrb[0].mxu0
  %v1366 = vpop.f32.mrb[0].mxu0
  %v1367 = vadd.f32 0.0, %v1366
  %v1368 = vpop.f32.mrb[0].mxu0
  %1369 = vdwg.mxu0
  %1372 = vrot.lane.b32.xlu0 %v1268, 24
  %v1373 = vpop.permute.xlu0 %1372
  %1374 = vrot.lane.b32.xlu0 %v1271, 24
  %v1375 = vpop.permute.xlu0 %1374
  %1380 = vrot.lane.b32.xlu0 %v1316, 48
  %v1381 = vpop.permute.xlu0 %1380
  %1382 = vrot.lane.b32.xlu0 %v1319, 48
  %v1383 = vpop.permute.xlu0 %1382
  %1388 = vrot.lane.b32.xlu0 %v1364, 72
  %v1389 = vpop.permute.xlu0 %1388
  %1390 = vrot.lane.b32.xlu0 %v1367, 72
  %v1391 = vpop.permute.xlu0 %1390
  %v1394 = vsel %vm880, %v1220, %v1373
  %v1395 = vsel %vm880, %v1223, %v1375
  %v1396 = vsel %vm198, %v1394, %v1381
  %v1397 = vsel %vm198, %v1395, %v1383
  %vm1398 = vcmask 588800
  %v1399 = vsel %vm1398, %v1396, %v1389
  %v1400 = vsel %vm1398, %v1397, %v1391
  %1403 = vrot.lane.b32.xlu0 %v748, 104
  %v1404 = vpop.permute.xlu0 %1403
  %1405 = vrot.lane.b32.xlu0 %v752, 104
  %v1406 = vpop.permute.xlu0 %1405
  %1409 = vrot.lane.b32.xlu0 %v748, 80
  %v1410 = vpop.permute.xlu0 %1409
  %1411 = vrot.lane.b32.xlu0 %v752, 80
  %v1412 = vpop.permute.xlu0 %1411
  %1415 = vrot.lane.b32.xlu0 %v748, 56
  %v1416 = vpop.permute.xlu0 %1415
  %1417 = vrot.lane.b32.xlu0 %v752, 56
  %v1418 = vpop.permute.xlu0 %1417
  %v1421 = vpack.c.bf16 %v752, %v748
  %v1422 = vpack.c.bf16 %v1406, %v1404
  %v1423 = vpack.c.bf16 %v1412, %v1410
  %v1424 = vpack.c.bf16 %v1418, %v1416
  %1427 = vrot.lane.b32.xlu0 %v750, 104
  %v1428 = vpop.permute.xlu0 %1427
  %1429 = vrot.lane.b32.xlu0 %v754, 104
  %v1430 = vpop.permute.xlu0 %1429
  %v1431 = vsel %vm835, %v1404, %v1428
  %v1432 = vsel %vm835, %v1406, %v1430
  %1435 = vrot.lane.b32.xlu0 %v750, 80
  %v1436 = vpop.permute.xlu0 %1435
  %1437 = vrot.lane.b32.xlu0 %v754, 80
  %v1438 = vpop.permute.xlu0 %1437
  %1441 = vrot.lane.b32.xlu0 %v750, 56
  %v1442 = vpop.permute.xlu0 %1441
  %1443 = vrot.lane.b32.xlu0 %v754, 56
  %v1444 = vpop.permute.xlu0 %1443
  %v1447 = vpack.c.bf16 %v1432, %v1431
  %v1448 = vpack.c.bf16 %v1438, %v1436
  %v1449 = vpack.c.bf16 %v1444, %v1442
  %1454 = vrot.lane.b32.xlu0 %v799, 80
  %v1455 = vpop.permute.xlu0 %1454
  %1456 = vrot.lane.b32.xlu0 %v802, 80
  %v1457 = vpop.permute.xlu0 %1456
  %v1458 = vsel %vm204, %v1436, %v1455
  %v1459 = vsel %vm204, %v1438, %v1457
  %1462 = vrot.lane.b32.xlu0 %v799, 56
  %v1463 = vpop.permute.xlu0 %1462
  %1464 = vrot.lane.b32.xlu0 %v802, 56
  %v1465 = vpop.permute.xlu0 %1464
  %v1468 = vpack.c.bf16 %v754, %v750
  %v1469 = vpack.c.bf16 %v1430, %v1428
  %v1470 = vpack.c.bf16 %v1459, %v1458
  %v1471 = vpack.c.bf16 %v1465, %v1463
  %1473 = vrot.lane.b32.xlu0 %v1421, 32
  %v1474 = vpop.permute.xlu0 %1473
  %v1476 = vsel %vm880, %v1421, 0
  %v1479 = vsel %vm880, %v1474, 0
  %1481 = vmatprep.subr.bf16.mxu0 0
  %1482 = vmatpush1.bf16.xpose.msra.mxu0 %v1479
  %1483 = vmatprep.subr.bf16.mxu0 0
  %1484 = vmatpush1.bf16.xpose.msra.mxu0 0
  %1485 = vmatprep.subr.bf16.mxu0 0
  %1486 = vmatpush1.bf16.xpose.msra.mxu0 0
  %1487 = vmatprep.subr.bf16.mxu0 0
  %1488 = vmatpush1.bf16.xpose.msra.mxu0 0
  %1489 = vmatprep.subr.bf16.mxu0 0
  %1490 = vmatpush1.bf16.xpose.msra.mxu0 0
  %1491 = vmatprep.subr.bf16.mxu0 0
  %1492 = vmatpush1.bf16.xpose.msra.mxu0 0
  %1493 = vmatprep.subr.bf16.mxu0 0
  %1494 = vmatpush1.bf16.xpose.msra.mxu0 0
  %1495 = vmatprep.subr.bf16.mxu0 0
  %1496 = vmatpush1.bf16.xpose.msra.mxu0 0
  %1497 = vmatprep.subr.bf16.mxu0 0
  %1498 = vmatpush1.bf16.xpose.msra.mxu0 0
  %1499 = vmatprep.subr.bf16.mxu0 0
  %1500 = vmatpush1.bf16.xpose.msra.mxu0 0
  %1501 = vmatprep.subr.bf16.mxu0 0
  %1502 = vmatpush1.bf16.xpose.msra.mxu0 0
  %1503 = vmatprep.subr.bf16.mxu0 0
  %1504 = vmatpush1.bf16.xpose.msra.mxu0 0
  %1505 = vmatprep.subr.bf16.mxu0 0
  %1506 = vmatpush1.bf16.xpose.msra.mxu0 0
  %1507 = vmatprep.subr.bf16.mxu0 0
  %1508 = vmatpush1.bf16.xpose.msra.mxu0 0
  %1509 = vmatprep.subr.bf16.mxu0 0
  %1510 = vmatpush1.bf16.xpose.msra.mxu0 0
  %1511 = vmatprep.subr.bf16.mxu0 0
  %1512 = vmatpush1.bf16.xpose.msra.mxu0 0
  %1513 = vmatprep.mubr.bf16.mxu0 0
  %1514 = vmatmul.mubr.bf16.gmra.mrb[0].mxu0 %v1476
  %v1515 = vpop.f32.mrb[0].mxu0
  %v1516 = vadd.f32 0.0, %v1515
  %v1517 = vpop.f32.mrb[0].mxu0
  %v1518 = vpop.f32.mrb[0].mxu0
  %v1519 = vadd.f32 0.0, %v1518
  %v1520 = vpop.f32.mrb[0].mxu0
  %1521 = vdwg.mxu0
  %1523 = vrot.lane.b32.xlu0 %v1447, 32
  %v1524 = vpop.permute.xlu0 %1523
  %v1526 = vsel %vm880, %v1422, 0
  %v1529 = vsel %vm880, %v1524, 0
  %1531 = vmatprep.subr.bf16.mxu0 0
  %1532 = vmatpush1.bf16.xpose.msra.mxu0 %v1529
  %1533 = vmatprep.subr.bf16.mxu0 0
  %1534 = vmatpush1.bf16.xpose.msra.mxu0 0
  %1535 = vmatprep.subr.bf16.mxu0 0
  %1536 = vmatpush1.bf16.xpose.msra.mxu0 0
  %1537 = vmatprep.subr.bf16.mxu0 0
  %1538 = vmatpush1.bf16.xpose.msra.mxu0 0
  %1539 = vmatprep.subr.bf16.mxu0 0
  %1540 = vmatpush1.bf16.xpose.msra.mxu0 0
  %1541 = vmatprep.subr.bf16.mxu0 0
  %1542 = vmatpush1.bf16.xpose.msra.mxu0 0
  %1543 = vmatprep.subr.bf16.mxu0 0
  %1544 = vmatpush1.bf16.xpose.msra.mxu0 0
  %1545 = vmatprep.subr.bf16.mxu0 0
  %1546 = vmatpush1.bf16.xpose.msra.mxu0 0
  %1547 = vmatprep.subr.bf16.mxu0 0
  %1548 = vmatpush1.bf16.xpose.msra.mxu0 0
  %1549 = vmatprep.subr.bf16.mxu0 0
  %1550 = vmatpush1.bf16.xpose.msra.mxu0 0
  %1551 = vmatprep.subr.bf16.mxu0 0
  %1552 = vmatpush1.bf16.xpose.msra.mxu0 0
  %1553 = vmatprep.subr.bf16.mxu0 0
  %1554 = vmatpush1.bf16.xpose.msra.mxu0 0
  %1555 = vmatprep.subr.bf16.mxu0 0
  %1556 = vmatpush1.bf16.xpose.msra.mxu0 0
  %1557 = vmatprep.subr.bf16.mxu0 0
  %1558 = vmatpush1.bf16.xpose.msra.mxu0 0
  %1559 = vmatprep.subr.bf16.mxu0 0
  %1560 = vmatpush1.bf16.xpose.msra.mxu0 0
  %1561 = vmatprep.subr.bf16.mxu0 0
  %1562 = vmatpush1.bf16.xpose.msra.mxu0 0
  %1563 = vmatprep.mubr.bf16.mxu0 0
  %1564 = vmatmul.mubr.bf16.gmra.mrb[0].mxu0 %v1526
  %v1565 = vpop.f32.mrb[0].mxu0
  %v1566 = vadd.f32 0.0, %v1565
  %v1567 = vpop.f32.mrb[0].mxu0
  %v1568 = vpop.f32.mrb[0].mxu0
  %v1569 = vadd.f32 0.0, %v1568
  %v1570 = vpop.f32.mrb[0].mxu0
  %1571 = vdwg.mxu0
  %1573 = vrot.lane.b32.xlu0 %v1448, 32
  %v1574 = vpop.permute.xlu0 %1573
  %v1576 = vsel %vm880, %v1423, 0
  %v1579 = vsel %vm880, %v1574, 0
  %1581 = vmatprep.subr.bf16.mxu0 0
  %1582 = vmatpush1.bf16.xpose.msra.mxu0 %v1579
  %1583 = vmatprep.subr.bf16.mxu0 0
  %1584 = vmatpush1.bf16.xpose.msra.mxu0 0
  %1585 = vmatprep.subr.bf16.mxu0 0
  %1586 = vmatpush1.bf16.xpose.msra.mxu0 0
  %1587 = vmatprep.subr.bf16.mxu0 0
  %1588 = vmatpush1.bf16.xpose.msra.mxu0 0
  %1589 = vmatprep.subr.bf16.mxu0 0
  %1590 = vmatpush1.bf16.xpose.msra.mxu0 0
  %1591 = vmatprep.subr.bf16.mxu0 0
  %1592 = vmatpush1.bf16.xpose.msra.mxu0 0
  %1593 = vmatprep.subr.bf16.mxu0 0
  %1594 = vmatpush1.bf16.xpose.msra.mxu0 0
  %1595 = vmatprep.subr.bf16.mxu0 0
  %1596 = vmatpush1.bf16.xpose.msra.mxu0 0
  %1597 = vmatprep.subr.bf16.mxu0 0
  %1598 = vmatpush1.bf16.xpose.msra.mxu0 0
  %1599 = vmatprep.subr.bf16.mxu0 0
  %1600 = vmatpush1.bf16.xpose.msra.mxu0 0
  %1601 = vmatprep.subr.bf16.mxu0 0
  %1602 = vmatpush1.bf16.xpose.msra.mxu0 0
  %1603 = vmatprep.subr.bf16.mxu0 0
  %1604 = vmatpush1.bf16.xpose.msra.mxu0 0
  %1605 = vmatprep.subr.bf16.mxu0 0
  %1606 = vmatpush1.bf16.xpose.msra.mxu0 0
  %1607 = vmatprep.subr.bf16.mxu0 0
  %1608 = vmatpush1.bf16.xpose.msra.mxu0 0
  %1609 = vmatprep.subr.bf16.mxu0 0
  %1610 = vmatpush1.bf16.xpose.msra.mxu0 0
  %1611 = vmatprep.subr.bf16.mxu0 0
  %1612 = vmatpush1.bf16.xpose.msra.mxu0 0
  %1613 = vmatprep.mubr.bf16.mxu0 0
  %1614 = vmatmul.mubr.bf16.gmra.mrb[0].mxu0 %v1576
  %v1615 = vpop.f32.mrb[0].mxu0
  %v1616 = vadd.f32 0.0, %v1615
  %v1617 = vpop.f32.mrb[0].mxu0
  %v1618 = vpop.f32.mrb[0].mxu0
  %v1619 = vadd.f32 0.0, %v1618
  %v1620 = vpop.f32.mrb[0].mxu0
  %1621 = vdwg.mxu0
  %1623 = vrot.lane.b32.xlu0 %v1449, 32
  %v1624 = vpop.permute.xlu0 %1623
  %v1626 = vsel %vm880, %v1424, 0
  %v1629 = vsel %vm880, %v1624, 0
  %1631 = vmatprep.subr.bf16.mxu0 0
  %1632 = vmatpush1.bf16.xpose.msra.mxu0 %v1629
  %1633 = vmatprep.subr.bf16.mxu0 0
  %1634 = vmatpush1.bf16.xpose.msra.mxu0 0
  %1635 = vmatprep.subr.bf16.mxu0 0
  %1636 = vmatpush1.bf16.xpose.msra.mxu0 0
  %1637 = vmatprep.subr.bf16.mxu0 0
  %1638 = vmatpush1.bf16.xpose.msra.mxu0 0
  %1639 = vmatprep.subr.bf16.mxu0 0
  %1640 = vmatpush1.bf16.xpose.msra.mxu0 0
  %1641 = vmatprep.subr.bf16.mxu0 0
  %1642 = vmatpush1.bf16.xpose.msra.mxu0 0
  %1643 = vmatprep.subr.bf16.mxu0 0
  %1644 = vmatpush1.bf16.xpose.msra.mxu0 0
  %1645 = vmatprep.subr.bf16.mxu0 0
  %1646 = vmatpush1.bf16.xpose.msra.mxu0 0
  %1647 = vmatprep.subr.bf16.mxu0 0
  %1648 = vmatpush1.bf16.xpose.msra.mxu0 0
  %1649 = vmatprep.subr.bf16.mxu0 0
  %1650 = vmatpush1.bf16.xpose.msra.mxu0 0
  %1651 = vmatprep.subr.bf16.mxu0 0
  %1652 = vmatpush1.bf16.xpose.msra.mxu0 0
  %1653 = vmatprep.subr.bf16.mxu0 0
  %1654 = vmatpush1.bf16.xpose.msra.mxu0 0
  %1655 = vmatprep.subr.bf16.mxu0 0
  %1656 = vmatpush1.bf16.xpose.msra.mxu0 0
  %1657 = vmatprep.subr.bf16.mxu0 0
  %1658 = vmatpush1.bf16.xpose.msra.mxu0 0
  %1659 = vmatprep.subr.bf16.mxu0 0
  %1660 = vmatpush1.bf16.xpose.msra.mxu0 0
  %1661 = vmatprep.subr.bf16.mxu0 0
  %1662 = vmatpush1.bf16.xpose.msra.mxu0 0
  %1663 = vmatprep.mubr.bf16.mxu0 0
  %1664 = vmatmul.mubr.bf16.gmra.mrb[0].mxu0 %v1626
  %v1665 = vpop.f32.mrb[0].mxu0
  %v1666 = vadd.f32 0.0, %v1665
  %v1667 = vpop.f32.mrb[0].mxu0
  %v1668 = vpop.f32.mrb[0].mxu0
  %v1669 = vadd.f32 0.0, %v1668
  %v1670 = vpop.f32.mrb[0].mxu0
  %1671 = vdwg.mxu0
  %v1672 = vmul.f32 %v1516, 0.20412415
  %v1673 = vmul.f32 %v1519, 0.20412415
  %v1674 = vmul.f32 %v1566, 0.20412415
  %v1675 = vmul.f32 %v1569, 0.20412415
  %v1676 = vmul.f32 %v1616, 0.20412415
  %v1677 = vmul.f32 %v1619, 0.20412415
  %v1678 = vmul.f32 %v1666, 0.20412415
  %v1679 = vmul.f32 %v1669, 0.20412415
  %v1680 = vsel %vm192, %v1672, -inf
  %1681 = vmax.xlane.f32.xlu0 %v1680
  %v1682 = vpop.xlane.xlu0 %1681
  %v1683 = vsel %vm192, %v1673, -inf
  %1684 = vmax.xlane.f32.xlu0 %v1683
  %v1685 = vpop.xlane.xlu0 %1684
  %v1686 = vsel %vm192, %v1674, -inf
  %1687 = vmax.xlane.f32.xlu0 %v1686
  %v1688 = vpop.xlane.xlu0 %1687
  %v1689 = vsel %vm192, %v1675, -inf
  %1690 = vmax.xlane.f32.xlu0 %v1689
  %v1691 = vpop.xlane.xlu0 %1690
  %v1692 = vsel %vm192, %v1676, -inf
  %1693 = vmax.xlane.f32.xlu0 %v1692
  %v1694 = vpop.xlane.xlu0 %1693
  %v1695 = vsel %vm192, %v1677, -inf
  %1696 = vmax.xlane.f32.xlu0 %v1695
  %v1697 = vpop.xlane.xlu0 %1696
  %v1698 = vsel %vm192, %v1678, -inf
  %1699 = vmax.xlane.f32.xlu0 %v1698
  %v1700 = vpop.xlane.xlu0 %1699
  %v1701 = vsel %vm192, %v1679, -inf
  %1702 = vmax.xlane.f32.xlu0 %v1701
  %v1703 = vpop.xlane.xlu0 %1702
  %v1704 = vsub.f32 %v1672, %v1682
  %v1705 = vsub.f32 %v1673, %v1685
  %v1706 = vsub.f32 %v1674, %v1688
  %v1707 = vsub.f32 %v1675, %v1691
  %v1708 = vsub.f32 %v1676, %v1694
  %v1709 = vsub.f32 %v1677, %v1697
  %v1710 = vsub.f32 %v1678, %v1700
  %v1711 = vsub.f32 %v1679, %v1703
  %v1712 = vmul.f32 %v1704, 1.442695
  %v1713 = vpow.pop %v1712
  %v1714 = vmul.f32 %v1705, 1.442695
  %v1715 = vpow.pop %v1714
  %v1716 = vmul.f32 %v1706, 1.442695
  %v1717 = vpow.pop %v1716
  %v1718 = vmul.f32 %v1707, 1.442695
  %v1719 = vpow.pop %v1718
  %v1720 = vmul.f32 %v1708, 1.442695
  %v1721 = vpow.pop %v1720
  %v1722 = vmul.f32 %v1709, 1.442695
  %v1723 = vpow.pop %v1722
  %v1724 = vmul.f32 %v1710, 1.442695
  %v1725 = vpow.pop %v1724
  %v1726 = vmul.f32 %v1711, 1.442695
  %v1727 = vpow.pop %v1726
  %v1728 = vsel %vm192, %v1713, 0.0
  %1729 = vadd.xlane.f32.xlu0 %v1728
  %v1730 = vpop.xlane.xlu0 %1729
  %v1731 = vsel %vm192, %v1715, 0.0
  %1732 = vadd.xlane.f32.xlu0 %v1731
  %v1733 = vpop.xlane.xlu0 %1732
  %v1734 = vsel %vm192, %v1717, 0.0
  %1735 = vadd.xlane.f32.xlu0 %v1734
  %v1736 = vpop.xlane.xlu0 %1735
  %v1737 = vsel %vm192, %v1719, 0.0
  %1738 = vadd.xlane.f32.xlu0 %v1737
  %v1739 = vpop.xlane.xlu0 %1738
  %v1740 = vsel %vm192, %v1721, 0.0
  %1741 = vadd.xlane.f32.xlu0 %v1740
  %v1742 = vpop.xlane.xlu0 %1741
  %v1743 = vsel %vm192, %v1723, 0.0
  %1744 = vadd.xlane.f32.xlu0 %v1743
  %v1745 = vpop.xlane.xlu0 %1744
  %v1746 = vsel %vm192, %v1725, 0.0
  %1747 = vadd.xlane.f32.xlu0 %v1746
  %v1748 = vpop.xlane.xlu0 %1747
  %v1749 = vsel %vm192, %v1727, 0.0
  %1750 = vadd.xlane.f32.xlu0 %v1749
  %v1751 = vpop.xlane.xlu0 %1750
  %v1752 = vrcp.pop %v1730
  %v1753 = vrcp.pop %v1733
  %v1754 = vrcp.pop %v1736
  %v1755 = vrcp.pop %v1739
  %v1756 = vrcp.pop %v1742
  %v1757 = vrcp.pop %v1745
  %v1758 = vrcp.pop %v1748
  %v1759 = vrcp.pop %v1751
  %v1760 = vmul.f32 %v1713, %v1752
  %v1761 = vmul.f32 %v1715, %v1753
  %v1762 = vmul.f32 %v1717, %v1754
  %v1763 = vmul.f32 %v1719, %v1755
  %v1764 = vmul.f32 %v1721, %v1756
  %v1765 = vmul.f32 %v1723, %v1757
  %v1766 = vmul.f32 %v1725, %v1758
  %v1767 = vmul.f32 %v1727, %v1759
  %v1768 = vpack.c.bf16 %v1761, %v1760
  %v1769 = vpack.c.bf16 %v1763, %v1762
  %v1770 = vpack.c.bf16 %v1765, %v1764
  %v1771 = vpack.c.bf16 %v1767, %v1766
  %1773 = vrot.lane.b32.xlu0 %v1468, 64
  %v1774 = vpop.permute.xlu0 %1773
  %v1777 = vsel %vm192, %v1768, 0
  %1779 = vmatprep.subr.bf16.mxu0 0
  %1780 = vmatpush1.bf16.msra.mxu0 %v1774
  %1781 = vmatprep.subr.bf16.mxu0 0
  %1782 = vmatpush1.bf16.msra.mxu0 0
  %1783 = vmatprep.subr.bf16.mxu0 0
  %1784 = vmatpush1.bf16.msra.mxu0 0
  %1785 = vmatprep.subr.bf16.mxu0 0
  %1786 = vmatpush1.bf16.msra.mxu0 0
  %1787 = vmatprep.subr.bf16.mxu0 0
  %1788 = vmatpush1.bf16.msra.mxu0 0
  %1789 = vmatprep.subr.bf16.mxu0 0
  %1790 = vmatpush1.bf16.msra.mxu0 0
  %1791 = vmatprep.subr.bf16.mxu0 0
  %1792 = vmatpush1.bf16.msra.mxu0 0
  %1793 = vmatprep.subr.bf16.mxu0 0
  %1794 = vmatpush1.bf16.msra.mxu0 0
  %1795 = vmatprep.subr.bf16.mxu0 0
  %1796 = vmatpush1.bf16.msra.mxu0 0
  %1797 = vmatprep.subr.bf16.mxu0 0
  %1798 = vmatpush1.bf16.msra.mxu0 0
  %1799 = vmatprep.subr.bf16.mxu0 0
  %1800 = vmatpush1.bf16.msra.mxu0 0
  %1801 = vmatprep.subr.bf16.mxu0 0
  %1802 = vmatpush1.bf16.msra.mxu0 0
  %1803 = vmatprep.subr.bf16.mxu0 0
  %1804 = vmatpush1.bf16.msra.mxu0 0
  %1805 = vmatprep.subr.bf16.mxu0 0
  %1806 = vmatpush1.bf16.msra.mxu0 0
  %1807 = vmatprep.subr.bf16.mxu0 0
  %1808 = vmatpush1.bf16.msra.mxu0 0
  %1809 = vmatprep.subr.bf16.mxu0 0
  %1810 = vmatpush1.bf16.msra.mxu0 0
  %1811 = vmatprep.mubr.bf16.mxu0 0
  %1812 = vmatmul.mubr.bf16.gmra.mrb[0].mxu0 %v1777
  %v1813 = vpop.f32.mrb[0].mxu0
  %v1814 = vadd.f32 0.0, %v1813
  %v1815 = vpop.f32.mrb[0].mxu0
  %v1816 = vpop.f32.mrb[0].mxu0
  %v1817 = vadd.f32 0.0, %v1816
  %v1818 = vpop.f32.mrb[0].mxu0
  %1819 = vdwg.mxu0
  %1821 = vrot.lane.b32.xlu0 %v1469, 64
  %v1822 = vpop.permute.xlu0 %1821
  %v1825 = vsel %vm192, %v1769, 0
  %1827 = vmatprep.subr.bf16.mxu0 0
  %1828 = vmatpush1.bf16.msra.mxu0 %v1822
  %1829 = vmatprep.subr.bf16.mxu0 0
  %1830 = vmatpush1.bf16.msra.mxu0 0
  %1831 = vmatprep.subr.bf16.mxu0 0
  %1832 = vmatpush1.bf16.msra.mxu0 0
  %1833 = vmatprep.subr.bf16.mxu0 0
  %1834 = vmatpush1.bf16.msra.mxu0 0
  %1835 = vmatprep.subr.bf16.mxu0 0
  %1836 = vmatpush1.bf16.msra.mxu0 0
  %1837 = vmatprep.subr.bf16.mxu0 0
  %1838 = vmatpush1.bf16.msra.mxu0 0
  %1839 = vmatprep.subr.bf16.mxu0 0
  %1840 = vmatpush1.bf16.msra.mxu0 0
  %1841 = vmatprep.subr.bf16.mxu0 0
  %1842 = vmatpush1.bf16.msra.mxu0 0
  %1843 = vmatprep.subr.bf16.mxu0 0
  %1844 = vmatpush1.bf16.msra.mxu0 0
  %1845 = vmatprep.subr.bf16.mxu0 0
  %1846 = vmatpush1.bf16.msra.mxu0 0
  %1847 = vmatprep.subr.bf16.mxu0 0
  %1848 = vmatpush1.bf16.msra.mxu0 0
  %1849 = vmatprep.subr.bf16.mxu0 0
  %1850 = vmatpush1.bf16.msra.mxu0 0
  %1851 = vmatprep.subr.bf16.mxu0 0
  %1852 = vmatpush1.bf16.msra.mxu0 0
  %1853 = vmatprep.subr.bf16.mxu0 0
  %1854 = vmatpush1.bf16.msra.mxu0 0
  %1855 = vmatprep.subr.bf16.mxu0 0
  %1856 = vmatpush1.bf16.msra.mxu0 0
  %1857 = vmatprep.subr.bf16.mxu0 0
  %1858 = vmatpush1.bf16.msra.mxu0 0
  %1859 = vmatprep.mubr.bf16.mxu0 0
  %1860 = vmatmul.mubr.bf16.gmra.mrb[0].mxu0 %v1825
  %v1861 = vpop.f32.mrb[0].mxu0
  %v1862 = vadd.f32 0.0, %v1861
  %v1863 = vpop.f32.mrb[0].mxu0
  %v1864 = vpop.f32.mrb[0].mxu0
  %v1865 = vadd.f32 0.0, %v1864
  %v1866 = vpop.f32.mrb[0].mxu0
  %1867 = vdwg.mxu0
  %1869 = vrot.lane.b32.xlu0 %v1470, 64
  %v1870 = vpop.permute.xlu0 %1869
  %v1873 = vsel %vm192, %v1770, 0
  %1875 = vmatprep.subr.bf16.mxu0 0
  %1876 = vmatpush1.bf16.msra.mxu0 %v1870
  %1877 = vmatprep.subr.bf16.mxu0 0
  %1878 = vmatpush1.bf16.msra.mxu0 0
  %1879 = vmatprep.subr.bf16.mxu0 0
  %1880 = vmatpush1.bf16.msra.mxu0 0
  %1881 = vmatprep.subr.bf16.mxu0 0
  %1882 = vmatpush1.bf16.msra.mxu0 0
  %1883 = vmatprep.subr.bf16.mxu0 0
  %1884 = vmatpush1.bf16.msra.mxu0 0
  %1885 = vmatprep.subr.bf16.mxu0 0
  %1886 = vmatpush1.bf16.msra.mxu0 0
  %1887 = vmatprep.subr.bf16.mxu0 0
  %1888 = vmatpush1.bf16.msra.mxu0 0
  %1889 = vmatprep.subr.bf16.mxu0 0
  %1890 = vmatpush1.bf16.msra.mxu0 0
  %1891 = vmatprep.subr.bf16.mxu0 0
  %1892 = vmatpush1.bf16.msra.mxu0 0
  %1893 = vmatprep.subr.bf16.mxu0 0
  %1894 = vmatpush1.bf16.msra.mxu0 0
  %1895 = vmatprep.subr.bf16.mxu0 0
  %1896 = vmatpush1.bf16.msra.mxu0 0
  %1897 = vmatprep.subr.bf16.mxu0 0
  %1898 = vmatpush1.bf16.msra.mxu0 0
  %1899 = vmatprep.subr.bf16.mxu0 0
  %1900 = vmatpush1.bf16.msra.mxu0 0
  %1901 = vmatprep.subr.bf16.mxu0 0
  %1902 = vmatpush1.bf16.msra.mxu0 0
  %1903 = vmatprep.subr.bf16.mxu0 0
  %1904 = vmatpush1.bf16.msra.mxu0 0
  %1905 = vmatprep.subr.bf16.mxu0 0
  %1906 = vmatpush1.bf16.msra.mxu0 0
  %1907 = vmatprep.mubr.bf16.mxu0 0
  %1908 = vmatmul.mubr.bf16.gmra.mrb[0].mxu0 %v1873
  %v1909 = vpop.f32.mrb[0].mxu0
  %v1910 = vadd.f32 0.0, %v1909
  %v1911 = vpop.f32.mrb[0].mxu0
  %v1912 = vpop.f32.mrb[0].mxu0
  %v1913 = vadd.f32 0.0, %v1912
  %v1914 = vpop.f32.mrb[0].mxu0
  %1915 = vdwg.mxu0
  %1917 = vrot.lane.b32.xlu0 %v1471, 64
  %v1918 = vpop.permute.xlu0 %1917
  %v1921 = vsel %vm192, %v1771, 0
  %1923 = vmatprep.subr.bf16.mxu0 0
  %1924 = vmatpush1.bf16.msra.mxu0 %v1918
  %1925 = vmatprep.subr.bf16.mxu0 0
  %1926 = vmatpush1.bf16.msra.mxu0 0
  %1927 = vmatprep.subr.bf16.mxu0 0
  %1928 = vmatpush1.bf16.msra.mxu0 0
  %1929 = vmatprep.subr.bf16.mxu0 0
  %1930 = vmatpush1.bf16.msra.mxu0 0
  %1931 = vmatprep.subr.bf16.mxu0 0
  %1932 = vmatpush1.bf16.msra.mxu0 0
  %1933 = vmatprep.subr.bf16.mxu0 0
  %1934 = vmatpush1.bf16.msra.mxu0 0
  %1935 = vmatprep.subr.bf16.mxu0 0
  %1936 = vmatpush1.bf16.msra.mxu0 0
  %1937 = vmatprep.subr.bf16.mxu0 0
  %1938 = vmatpush1.bf16.msra.mxu0 0
  %1939 = vmatprep.subr.bf16.mxu0 0
  %1940 = vmatpush1.bf16.msra.mxu0 0
  %1941 = vmatprep.subr.bf16.mxu0 0
  %1942 = vmatpush1.bf16.msra.mxu0 0
  %1943 = vmatprep.subr.bf16.mxu0 0
  %1944 = vmatpush1.bf16.msra.mxu0 0
  %1945 = vmatprep.subr.bf16.mxu0 0
  %1946 = vmatpush1.bf16.msra.mxu0 0
  %1947 = vmatprep.subr.bf16.mxu0 0
  %1948 = vmatpush1.bf16.msra.mxu0 0
  %1949 = vmatprep.subr.bf16.mxu0 0
  %1950 = vmatpush1.bf16.msra.mxu0 0
  %1951 = vmatprep.subr.bf16.mxu0 0
  %1952 = vmatpush1.bf16.msra.mxu0 0
  %1953 = vmatprep.subr.bf16.mxu0 0
  %1954 = vmatpush1.bf16.msra.mxu0 0
  %1955 = vmatprep.mubr.bf16.mxu0 0
  %1956 = vmatmul.mubr.bf16.gmra.mrb[0].mxu0 %v1921
  %v1957 = vpop.f32.mrb[0].mxu0
  %v1958 = vadd.f32 0.0, %v1957
  %v1959 = vpop.f32.mrb[0].mxu0
  %v1960 = vpop.f32.mrb[0].mxu0
  %v1961 = vadd.f32 0.0, %v1960
  %v1962 = vpop.f32.mrb[0].mxu0
  %1963 = vdwg.mxu0
  %1966 = vrot.lane.b32.xlu0 %v1862, 24
  %v1967 = vpop.permute.xlu0 %1966
  %1968 = vrot.lane.b32.xlu0 %v1865, 24
  %v1969 = vpop.permute.xlu0 %1968
  %1974 = vrot.lane.b32.xlu0 %v1910, 48
  %v1975 = vpop.permute.xlu0 %1974
  %1976 = vrot.lane.b32.xlu0 %v1913, 48
  %v1977 = vpop.permute.xlu0 %1976
  %1982 = vrot.lane.b32.xlu0 %v1958, 72
  %v1983 = vpop.permute.xlu0 %1982
  %1984 = vrot.lane.b32.xlu0 %v1961, 72
  %v1985 = vpop.permute.xlu0 %1984
  %v1988 = vsel %vm880, %v1814, %v1967
  %v1989 = vsel %vm880, %v1817, %v1969
  %v1990 = vsel %vm198, %v1988, %v1975
  %v1991 = vsel %vm198, %v1989, %v1977
  %v1992 = vsel %vm1398, %v1990, %v1983
  %v1993 = vsel %vm1398, %v1991, %v1985
  %v1994 = vpack.c.bf16 %v1400, %v1399
  %v1995 = vpack.c.bf16 %v1993, %v1992
  %v1997 = vlaneseq
  %v1998 = vshrl.u32 %v1997, 7
  %v1999 = vsub.s32 0, %v1998
  %v2000 = vrot.slane %v582, %v1999
  %v2014 = vunpack.c.l.b16 %v570
  %v2015 = vunpack.c.l.b16 %v571
  %v2016 = vunpack.c.l.b16 %v572
  %v2017 = vunpack.c.l.b16 %v573
  %v2018 = vunpack.c.l.b16 %v574
  %v2019 = vunpack.c.l.b16 %v575
  %v2020 = vunpack.c.l.b16 %v576
  %v2021 = vunpack.c.l.b16 %v577
  %v2022 = vunpack.c.l.b16 %v578
  %v2023 = vunpack.c.l.b16 %v579
  %v2024 = vunpack.c.l.b16 %v580
  %v2025 = vunpack.c.l.b16 %v581
  %v2026 = vpack.c.b16 %v2015, %v2014
  %v2027 = vpack.c.b16 %v2017, %v2016
  %v2028 = vpack.c.b16 %v2019, %v2018
  %v2029 = vpack.c.b16 %v2021, %v2020
  %v2030 = vpack.c.b16 %v2023, %v2022
  %v2031 = vpack.c.b16 %v2025, %v2024
  %v2039 = vsel %vm207, %v1994, 0
  %v2042 = vsel %vm207, %v1995, 0
  %2044 = vmatprep.subr.bf16.mxu0 0
  %2045 = vmatpush1.bf16.msra.mxu0 %v2026
  %2046 = vmatprep.subr.bf16.mxu0 0
  %2047 = vmatpush1.bf16.msra.mxu0 %v2027
  %2048 = vmatprep.subr.bf16.mxu0 0
  %2049 = vmatpush1.bf16.msra.mxu0 %v2028
  %2050 = vmatprep.subr.bf16.mxu0 0
  %2051 = vmatpush1.bf16.msra.mxu0 %v2029
  %2052 = vmatprep.subr.bf16.mxu0 0
  %2053 = vmatpush1.bf16.msra.mxu0 %v2030
  %2054 = vmatprep.subr.bf16.mxu0 0
  %2055 = vmatpush1.bf16.msra.mxu0 %v2031
  %2056 = vmatprep.subr.bf16.mxu0 0
  %2057 = vmatpush1.bf16.msra.mxu0 0
  %2058 = vmatprep.subr.bf16.mxu0 0
  %2059 = vmatpush1.bf16.msra.mxu0 0
  %2060 = vmatprep.subr.bf16.mxu0 0
  %2061 = vmatpush1.bf16.msra.mxu0 0
  %2062 = vmatprep.subr.bf16.mxu0 0
  %2063 = vmatpush1.bf16.msra.mxu0 0
  %2064 = vmatprep.subr.bf16.mxu0 0
  %2065 = vmatpush1.bf16.msra.mxu0 0
  %2066 = vmatprep.subr.bf16.mxu0 0
  %2067 = vmatpush1.bf16.msra.mxu0 0
  %2068 = vmatprep.subr.bf16.mxu0 0
  %2069 = vmatpush1.bf16.msra.mxu0 0
  %2070 = vmatprep.subr.bf16.mxu0 0
  %2071 = vmatpush1.bf16.msra.mxu0 0
  %2072 = vmatprep.subr.bf16.mxu0 0
  %2073 = vmatpush1.bf16.msra.mxu0 0
  %2074 = vmatprep.subr.bf16.mxu0 0
  %2075 = vmatpush1.bf16.msra.mxu0 0
  %2076 = vmatprep.mubr.bf16.mxu0 0
  %2077 = vmatmul.mubr.bf16.gmra.mrb[0].mxu0 %v2039
  %v2078 = vpop.f32.mrb[0].mxu0
  %v2079 = vadd.f32 %v2000, %v2078
  %v2080 = vpop.f32.mrb[0].mxu0
  %v2081 = vpop.f32.mrb[0].mxu0
  %v2082 = vadd.f32 %v2000, %v2081
  %v2083 = vpop.f32.mrb[0].mxu0
  %2084 = vmatprep.mubr.bf16.mxu0 0
  %2085 = vmatmul.mubr.bf16.gmra.mrb[0].mxu0 %v2042
  %v2086 = vpop.f32.mrb[0].mxu0
  %v2087 = vadd.f32 %v2000, %v2086
  %v2088 = vpop.f32.mrb[0].mxu0
  %v2089 = vpop.f32.mrb[0].mxu0
  %v2090 = vadd.f32 %v2000, %v2089
  %v2091 = vpop.f32.mrb[0].mxu0
  %2092 = vdwg.mxu0
  %v2093 = vadd.f32 %v541, %v2079
  %v2094 = vadd.f32 %v542, %v2082
  %v2095 = vadd.f32 %v543, %v2087
  %v2096 = vadd.f32 %v544, %v2090
  %v2097 = vld [vmem:[%s7] sm:$0x1]
  %v2098 = vld [vmem:[%s8] sm:$0x1]
  %v2099 = vsel %vm207, %v2093, 0.0
  %2100 = vadd.xlane.f32.xlu0 %v2099
  %v2101 = vpop.xlane.xlu0 %2100
  %v2102 = vsel %vm207, %v2094, 0.0
  %2103 = vadd.xlane.f32.xlu0 %v2102
  %v2104 = vpop.xlane.xlu0 %2103
  %v2105 = vsel %vm207, %v2095, 0.0
  %2106 = vadd.xlane.f32.xlu0 %v2105
  %v2107 = vpop.xlane.xlu0 %2106
  %v2108 = vsel %vm207, %v2096, 0.0
  %2109 = vadd.xlane.f32.xlu0 %v2108
  %v2110 = vpop.xlane.xlu0 %2109
  %v2111 = vrcp.pop 96.0
  %v2112 = vmul.f32 %v2101, %v2111
  %v2113 = vmul.f32 %v2104, %v2111
  %v2114 = vmul.f32 %v2107, %v2111
  %v2115 = vmul.f32 %v2110, %v2111
  %v2116 = vsub.f32 %v2093, %v2112
  %v2117 = vsub.f32 %v2094, %v2113
  %v2118 = vsub.f32 %v2095, %v2114
  %v2119 = vsub.f32 %v2096, %v2115
  %v2120 = vmul.f32 %v2116, %v2116
  %v2121 = vmul.f32 %v2117, %v2117
  %v2122 = vmul.f32 %v2118, %v2118
  %v2123 = vmul.f32 %v2119, %v2119
  %v2124 = vsel %vm207, %v2120, 0.0
  %2125 = vadd.xlane.f32.xlu0 %v2124
  %v2126 = vpop.xlane.xlu0 %2125
  %v2127 = vsel %vm207, %v2121, 0.0
  %2128 = vadd.xlane.f32.xlu0 %v2127
  %v2129 = vpop.xlane.xlu0 %2128
  %v2130 = vsel %vm207, %v2122, 0.0
  %2131 = vadd.xlane.f32.xlu0 %v2130
  %v2132 = vpop.xlane.xlu0 %2131
  %v2133 = vsel %vm207, %v2123, 0.0
  %2134 = vadd.xlane.f32.xlu0 %v2133
  %v2135 = vpop.xlane.xlu0 %2134
  %v2136 = vmul.f32 %v2126, %v2111
  %v2137 = vmul.f32 %v2129, %v2111
  %v2138 = vmul.f32 %v2132, %v2111
  %v2139 = vmul.f32 %v2135, %v2111
  %v2140 = vadd.f32 %v2136, 1e-05
  %v2141 = vadd.f32 %v2137, 1e-05
  %v2142 = vadd.f32 %v2138, 1e-05
  %v2143 = vadd.f32 %v2139, 1e-05
  %v2144 = vrsqrt.pop %v2140
  %v2145 = vrsqrt.pop %v2141
  %v2146 = vrsqrt.pop %v2142
  %v2147 = vrsqrt.pop %v2143
  %v2148 = vmul.f32 %v2116, %v2144
  %v2149 = vmul.f32 %v2117, %v2145
  %v2150 = vmul.f32 %v2118, %v2146
  %v2151 = vmul.f32 %v2119, %v2147
  %v2153 = vlaneseq
  %v2154 = vshrl.u32 %v2153, 7
  %v2155 = vsub.s32 0, %v2154
  %v2156 = vrot.slane %v2097, %v2155
  %v2158 = vmul.f32 %v2148, %v2156
  %v2159 = vmul.f32 %v2149, %v2156
  %v2160 = vmul.f32 %v2150, %v2156
  %v2161 = vmul.f32 %v2151, %v2156
  %v2163 = vlaneseq
  %v2164 = vshrl.u32 %v2163, 7
  %v2165 = vsub.s32 0, %v2164
  %v2166 = vrot.slane %v2098, %v2165
  %v2168 = vadd.f32 %v2158, %v2166
  %v2169 = vadd.f32 %v2159, %v2166
  %v2170 = vadd.f32 %v2160, %v2166
  %v2171 = vadd.f32 %v2161, %v2166
  %v2172 = vpack.c.bf16 %v2169, %v2168
  %v2173 = vpack.c.bf16 %v2171, %v2170
  %v2174 = vld [vmem:[%s9] sm:$0xff]
  %v2175 = vld [vmem:[%s9 + $0x8] sm:$0xff]
  %v2176 = vld [vmem:[%s9 + $0x10] sm:$0xff]
  %v2177 = vld [vmem:[%s9 + $0x18] sm:$0xff]
  %v2178 = vld [vmem:[%s9 + $0x20] sm:$0xff]
  %v2179 = vld [vmem:[%s9 + $0x28] sm:$0xff]
  %v2180 = vld [vmem:[%s9 + $0x30] sm:$0xff]
  %v2181 = vld [vmem:[%s9 + $0x38] sm:$0xff]
  %v2182 = vld [vmem:[%s9 + $0x40] sm:$0xff]
  %v2183 = vld [vmem:[%s9 + $0x48] sm:$0xff]
  %v2184 = vld [vmem:[%s9 + $0x50] sm:$0xff]
  %v2185 = vld [vmem:[%s9 + $0x58] sm:$0xff]
  %v2186 = vld [vmem:[%s10] sm:$0x3]
  %v2188 = vlaneseq
  %v2189 = vshrl.u32 %v2188, 7
  %v2190 = vsub.s32 0, %v2189
  %v2191 = vrot.slane %v2186, %v2190
  %v2192 = vlaneseq
  %v2193 = vshrl.u32 %v2192, 7
  %v2194 = vsub.s32 1, %v2193
  %v2195 = vrot.slane %v2186, %v2194
  %v2210 = vunpack.c.l.b16 %v2174
  %v2211 = vunpack.c.h.b16 %v2174
  %v2212 = vunpack.c.l.b16 %v2175
  %v2213 = vunpack.c.h.b16 %v2175
  %v2214 = vunpack.c.l.b16 %v2176
  %v2215 = vunpack.c.h.b16 %v2176
  %v2216 = vunpack.c.l.b16 %v2177
  %v2217 = vunpack.c.h.b16 %v2177
  %v2218 = vunpack.c.l.b16 %v2178
  %v2219 = vunpack.c.h.b16 %v2178
  %v2220 = vunpack.c.l.b16 %v2179
  %v2221 = vunpack.c.h.b16 %v2179
  %v2222 = vunpack.c.l.b16 %v2180
  %v2223 = vunpack.c.h.b16 %v2180
  %v2224 = vunpack.c.l.b16 %v2181
  %v2225 = vunpack.c.h.b16 %v2181
  %v2226 = vunpack.c.l.b16 %v2182
  %v2227 = vunpack.c.h.b16 %v2182
  %v2228 = vunpack.c.l.b16 %v2183
  %v2229 = vunpack.c.h.b16 %v2183
  %v2230 = vunpack.c.l.b16 %v2184
  %v2231 = vunpack.c.h.b16 %v2184
  %v2232 = vunpack.c.l.b16 %v2185
  %v2233 = vunpack.c.h.b16 %v2185
  %v2234 = vpack.c.b16 %v2212, %v2210
  %v2235 = vpack.c.b16 %v2213, %v2211
  %v2236 = vpack.c.b16 %v2216, %v2214
  %v2237 = vpack.c.b16 %v2217, %v2215
  %v2238 = vpack.c.b16 %v2220, %v2218
  %v2239 = vpack.c.b16 %v2221, %v2219
  %v2240 = vpack.c.b16 %v2224, %v2222
  %v2241 = vpack.c.b16 %v2225, %v2223
  %v2242 = vpack.c.b16 %v2228, %v2226
  %v2243 = vpack.c.b16 %v2229, %v2227
  %v2244 = vpack.c.b16 %v2232, %v2230
  %v2245 = vpack.c.b16 %v2233, %v2231
  %v2259 = vsel %vm207, %v2172, 0
  %v2262 = vsel %vm207, %v2173, 0
  %2264 = vmatprep.subr.bf16.mxu0 %v2235
  %2265 = vmatpush1.bf16.msra.mxu0 %v2234
  %2266 = vmatprep.subr.bf16.mxu0 %v2237
  %2267 = vmatpush1.bf16.msra.mxu0 %v2236
  %2268 = vmatprep.subr.bf16.mxu0 %v2239
  %2269 = vmatpush1.bf16.msra.mxu0 %v2238
  %2270 = vmatprep.subr.bf16.mxu0 %v2241
  %2271 = vmatpush1.bf16.msra.mxu0 %v2240
  %2272 = vmatprep.subr.bf16.mxu0 %v2243
  %2273 = vmatpush1.bf16.msra.mxu0 %v2242
  %2274 = vmatprep.subr.bf16.mxu0 %v2245
  %2275 = vmatpush1.bf16.msra.mxu0 %v2244
  %2276 = vmatprep.subr.bf16.mxu0 0
  %2277 = vmatpush1.bf16.msra.mxu0 0
  %2278 = vmatprep.subr.bf16.mxu0 0
  %2279 = vmatpush1.bf16.msra.mxu0 0
  %2280 = vmatprep.subr.bf16.mxu0 0
  %2281 = vmatpush1.bf16.msra.mxu0 0
  %2282 = vmatprep.subr.bf16.mxu0 0
  %2283 = vmatpush1.bf16.msra.mxu0 0
  %2284 = vmatprep.subr.bf16.mxu0 0
  %2285 = vmatpush1.bf16.msra.mxu0 0
  %2286 = vmatprep.subr.bf16.mxu0 0
  %2287 = vmatpush1.bf16.msra.mxu0 0
  %2288 = vmatprep.subr.bf16.mxu0 0
  %2289 = vmatpush1.bf16.msra.mxu0 0
  %2290 = vmatprep.subr.bf16.mxu0 0
  %2291 = vmatpush1.bf16.msra.mxu0 0
  %2292 = vmatprep.subr.bf16.mxu0 0
  %2293 = vmatpush1.bf16.msra.mxu0 0
  %2294 = vmatprep.subr.bf16.mxu0 0
  %2295 = vmatpush1.bf16.msra.mxu0 0
  %2296 = vmatprep.mubr.bf16.mxu0 0
  %2297 = vmatmul.mubr.bf16.gmra.mrb[0].mxu0 %v2259
  %v2298 = vpop.f32.mrb[0].mxu0
  %v2299 = vadd.f32 %v2191, %v2298
  %v2300 = vpop.f32.mrb[0].mxu0
  %v2301 = vadd.f32 %v2195, %v2300
  %v2302 = vpop.f32.mrb[0].mxu0
  %v2303 = vadd.f32 %v2191, %v2302
  %v2304 = vpop.f32.mrb[0].mxu0
  %v2305 = vadd.f32 %v2195, %v2304
  %2306 = vmatprep.mubr.bf16.mxu0 0
  %2307 = vmatmul.mubr.bf16.gmra.mrb[0].mxu0 %v2262
  %v2308 = vpop.f32.mrb[0].mxu0
  %v2309 = vadd.f32 %v2191, %v2308
  %v2310 = vpop.f32.mrb[0].mxu0
  %v2311 = vadd.f32 %v2195, %v2310
  %v2312 = vpop.f32.mrb[0].mxu0
  %v2313 = vadd.f32 %v2191, %v2312
  %v2314 = vpop.f32.mrb[0].mxu0
  %v2315 = vadd.f32 %v2195, %v2314
  %2316 = vdwg.mxu0
  %v2317 = vmax.f32 %v2299, 0.0
  %v2318 = vmax.f32 %v2301, 0.0
  %v2319 = vmax.f32 %v2303, 0.0
  %v2320 = vmax.f32 %v2305, 0.0
  %v2321 = vmax.f32 %v2309, 0.0
  %v2322 = vmax.f32 %v2311, 0.0
  %v2323 = vmax.f32 %v2313, 0.0
  %v2324 = vmax.f32 %v2315, 0.0
  %v2325 = vpack.c.bf16 %v2319, %v2317
  %v2326 = vpack.c.bf16 %v2320, %v2318
  %v2327 = vpack.c.bf16 %v2323, %v2321
  %v2328 = vpack.c.bf16 %v2324, %v2322
  %v2329 = vld [vmem:[%s11] sm:$0xf]
  %v2330 = vld [vmem:[%s11 + $0x4] sm:$0xf]
  %v2331 = vld [vmem:[%s11 + $0x8] sm:$0xf]
  %v2332 = vld [vmem:[%s11 + $0xc] sm:$0xf]
  %v2333 = vld [vmem:[%s11 + $0x10] sm:$0xf]
  %v2334 = vld [vmem:[%s11 + $0x14] sm:$0xf]
  %v2335 = vld [vmem:[%s11 + $0x18] sm:$0xf]
  %v2336 = vld [vmem:[%s11 + $0x1c] sm:$0xf]
  %v2337 = vld [vmem:[%s11 + $0x20] sm:$0xf]
  %v2338 = vld [vmem:[%s11 + $0x24] sm:$0xf]
  %v2339 = vld [vmem:[%s11 + $0x28] sm:$0xf]
  %v2340 = vld [vmem:[%s11 + $0x2c] sm:$0xf]
  %v2341 = vld [vmem:[%s11 + $0x30] sm:$0xf]
  %v2342 = vld [vmem:[%s11 + $0x34] sm:$0xf]
  %v2343 = vld [vmem:[%s11 + $0x38] sm:$0xf]
  %v2344 = vld [vmem:[%s11 + $0x3c] sm:$0xf]
  %v2345 = vld [vmem:[%s11 + $0x40] sm:$0xf]
  %v2346 = vld [vmem:[%s11 + $0x44] sm:$0xf]
  %v2347 = vld [vmem:[%s11 + $0x48] sm:$0xf]
  %v2348 = vld [vmem:[%s11 + $0x4c] sm:$0xf]
  %v2349 = vld [vmem:[%s11 + $0x50] sm:$0xf]
  %v2350 = vld [vmem:[%s11 + $0x54] sm:$0xf]
  %v2351 = vld [vmem:[%s11 + $0x58] sm:$0xf]
  %v2352 = vld [vmem:[%s11 + $0x5c] sm:$0xf]
  %v2353 = vld [vmem:[%s11 + $0x60] sm:$0xf]
  %v2354 = vld [vmem:[%s11 + $0x64] sm:$0xf]
  %v2355 = vld [vmem:[%s11 + $0x68] sm:$0xf]
  %v2356 = vld [vmem:[%s11 + $0x6c] sm:$0xf]
  %v2357 = vld [vmem:[%s11 + $0x70] sm:$0xf]
  %v2358 = vld [vmem:[%s11 + $0x74] sm:$0xf]
  %v2359 = vld [vmem:[%s11 + $0x78] sm:$0xf]
  %v2360 = vld [vmem:[%s11 + $0x7c] sm:$0xf]
  %v2361 = vld [vmem:[%s12] sm:$0x1]
  %v2363 = vlaneseq
  %v2364 = vshrl.u32 %v2363, 7
  %v2365 = vsub.s32 0, %v2364
  %v2366 = vrot.slane %v2361, %v2365
  %v2400 = vunpack.c.l.b16 %v2329
  %v2401 = vunpack.c.l.b16 %v2330
  %v2402 = vunpack.c.l.b16 %v2331
  %v2403 = vunpack.c.l.b16 %v2332
  %v2404 = vunpack.c.l.b16 %v2333
  %v2405 = vunpack.c.l.b16 %v2334
  %v2406 = vunpack.c.l.b16 %v2335
  %v2407 = vunpack.c.l.b16 %v2336
  %v2408 = vunpack.c.l.b16 %v2337
  %v2409 = vunpack.c.l.b16 %v2338
  %v2410 = vunpack.c.l.b16 %v2339
  %v2411 = vunpack.c.l.b16 %v2340
  %v2412 = vunpack.c.l.b16 %v2341
  %v2413 = vunpack.c.l.b16 %v2342
  %v2414 = vunpack.c.l.b16 %v2343
  %v2415 = vunpack.c.l.b16 %v2344
  %v2416 = vunpack.c.l.b16 %v2345
  %v2417 = vunpack.c.l.b16 %v2346
  %v2418 = vunpack.c.l.b16 %v2347
  %v2419 = vunpack.c.l.b16 %v2348
  %v2420 = vunpack.c.l.b16 %v2349
  %v2421 = vunpack.c.l.b16 %v2350
  %v2422 = vunpack.c.l.b16 %v2351
  %v2423 = vunpack.c.l.b16 %v2352
  %v2424 = vunpack.c.l.b16 %v2353
  %v2425 = vunpack.c.l.b16 %v2354
  %v2426 = vunpack.c.l.b16 %v2355
  %v2427 = vunpack.c.l.b16 %v2356
  %v2428 = vunpack.c.l.b16 %v2357
  %v2429 = vunpack.c.l.b16 %v2358
  %v2430 = vunpack.c.l.b16 %v2359
  %v2431 = vunpack.c.l.b16 %v2360
  %v2432 = vpack.c.b16 %v2401, %v2400
  %v2433 = vpack.c.b16 %v2403, %v2402
  %v2434 = vpack.c.b16 %v2405, %v2404
  %v2435 = vpack.c.b16 %v2407, %v2406
  %v2436 = vpack.c.b16 %v2409, %v2408
  %v2437 = vpack.c.b16 %v2411, %v2410
  %v2438 = vpack.c.b16 %v2413, %v2412
  %v2439 = vpack.c.b16 %v2415, %v2414
  %v2440 = vpack.c.b16 %v2417, %v2416
  %v2441 = vpack.c.b16 %v2419, %v2418
  %v2442 = vpack.c.b16 %v2421, %v2420
  %v2443 = vpack.c.b16 %v2423, %v2422
  %v2444 = vpack.c.b16 %v2425, %v2424
  %v2445 = vpack.c.b16 %v2427, %v2426
  %v2446 = vpack.c.b16 %v2429, %v2428
  %v2447 = vpack.c.b16 %v2431, %v2430
  %2464 = vmatprep.subr.bf16.mxu0 0
  %2465 = vmatpush1.bf16.msra.mxu0 %v2432
  %2466 = vmatprep.subr.bf16.mxu0 0
  %2467 = vmatpush1.bf16.msra.mxu0 %v2433
  %2468 = vmatprep.subr.bf16.mxu0 0
  %2469 = vmatpush1.bf16.msra.mxu0 %v2434
  %2470 = vmatprep.subr.bf16.mxu0 0
  %2471 = vmatpush1.bf16.msra.mxu0 %v2435
  %2472 = vmatprep.subr.bf16.mxu0 0
  %2473 = vmatpush1.bf16.msra.mxu0 %v2436
  %2474 = vmatprep.subr.bf16.mxu0 0
  %2475 = vmatpush1.bf16.msra.mxu0 %v2437
  %2476 = vmatprep.subr.bf16.mxu0 0
  %2477 = vmatpush1.bf16.msra.mxu0 %v2438
  %2478 = vmatprep.subr.bf16.mxu0 0
  %2479 = vmatpush1.bf16.msra.mxu0 %v2439
  %2480 = vmatprep.subr.bf16.mxu0 0
  %2481 = vmatpush1.bf16.msra.mxu0 %v2440
  %2482 = vmatprep.subr.bf16.mxu0 0
  %2483 = vmatpush1.bf16.msra.mxu0 %v2441
  %2484 = vmatprep.subr.bf16.mxu0 0
  %2485 = vmatpush1.bf16.msra.mxu0 %v2442
  %2486 = vmatprep.subr.bf16.mxu0 0
  %2487 = vmatpush1.bf16.msra.mxu0 %v2443
  %2488 = vmatprep.subr.bf16.mxu0 0
  %2489 = vmatpush1.bf16.msra.mxu0 %v2444
  %2490 = vmatprep.subr.bf16.mxu0 0
  %2491 = vmatpush1.bf16.msra.mxu0 %v2445
  %2492 = vmatprep.subr.bf16.mxu0 0
  %2493 = vmatpush1.bf16.msra.mxu0 %v2446
  %2494 = vmatprep.subr.bf16.mxu0 0
  %2495 = vmatpush1.bf16.msra.mxu0 %v2447
  %2496 = vmatprep.mubr.bf16.mxu0 %v2326
  %2497 = vmatmul.mubr.bf16.gmra.mrb[0].mxu0 %v2325
  %v2498 = vpop.f32.mrb[0].mxu0
  %v2499 = vadd.f32 %v2366, %v2498
  %v2500 = vpop.f32.mrb[0].mxu0
  %v2501 = vpop.f32.mrb[0].mxu0
  %v2502 = vadd.f32 %v2366, %v2501
  %v2503 = vpop.f32.mrb[0].mxu0
  %2504 = vmatprep.mubr.bf16.mxu0 %v2328
  %2505 = vmatmul.mubr.bf16.gmra.mrb[0].mxu0 %v2327
  %v2506 = vpop.f32.mrb[0].mxu0
  %v2507 = vadd.f32 %v2366, %v2506
  %v2508 = vpop.f32.mrb[0].mxu0
  %v2509 = vpop.f32.mrb[0].mxu0
  %v2510 = vadd.f32 %v2366, %v2509
  %v2511 = vpop.f32.mrb[0].mxu0
  %2512 = vdwg.mxu0
  %v2513 = vadd.f32 %v2168, %v2499
  %v2514 = vadd.f32 %v2169, %v2502
  %v2515 = vadd.f32 %v2170, %v2507
  %v2516 = vadd.f32 %v2171, %v2510
  %v2517 = vld [vmem:[%s13] sm:$0x1]
  %v2518 = vld [vmem:[%s14] sm:$0x1]
  %v2519 = vsel %vm207, %v2513, 0.0
  %2520 = vadd.xlane.f32.xlu0 %v2519
  %v2521 = vpop.xlane.xlu0 %2520
  %v2522 = vsel %vm207, %v2514, 0.0
  %2523 = vadd.xlane.f32.xlu0 %v2522
  %v2524 = vpop.xlane.xlu0 %2523
  %v2525 = vsel %vm207, %v2515, 0.0
  %2526 = vadd.xlane.f32.xlu0 %v2525
  %v2527 = vpop.xlane.xlu0 %2526
  %v2528 = vsel %vm207, %v2516, 0.0
  %2529 = vadd.xlane.f32.xlu0 %v2528
  %v2530 = vpop.xlane.xlu0 %2529
  %v2531 = vmul.f32 %v2521, %v2111
  %v2532 = vmul.f32 %v2524, %v2111
  %v2533 = vmul.f32 %v2527, %v2111
  %v2534 = vmul.f32 %v2530, %v2111
  %v2535 = vsub.f32 %v2513, %v2531
  %v2536 = vsub.f32 %v2514, %v2532
  %v2537 = vsub.f32 %v2515, %v2533
  %v2538 = vsub.f32 %v2516, %v2534
  %v2539 = vmul.f32 %v2535, %v2535
  %v2540 = vmul.f32 %v2536, %v2536
  %v2541 = vmul.f32 %v2537, %v2537
  %v2542 = vmul.f32 %v2538, %v2538
  %v2543 = vsel %vm207, %v2539, 0.0
  %2544 = vadd.xlane.f32.xlu0 %v2543
  %v2545 = vpop.xlane.xlu0 %2544
  %v2546 = vsel %vm207, %v2540, 0.0
  %2547 = vadd.xlane.f32.xlu0 %v2546
  %v2548 = vpop.xlane.xlu0 %2547
  %v2549 = vsel %vm207, %v2541, 0.0
  %2550 = vadd.xlane.f32.xlu0 %v2549
  %v2551 = vpop.xlane.xlu0 %2550
  %v2552 = vsel %vm207, %v2542, 0.0
  %2553 = vadd.xlane.f32.xlu0 %v2552
  %v2554 = vpop.xlane.xlu0 %2553
  %v2555 = vmul.f32 %v2545, %v2111
  %v2556 = vmul.f32 %v2548, %v2111
  %v2557 = vmul.f32 %v2551, %v2111
  %v2558 = vmul.f32 %v2554, %v2111
  %v2559 = vadd.f32 %v2555, 1e-05
  %v2560 = vadd.f32 %v2556, 1e-05
  %v2561 = vadd.f32 %v2557, 1e-05
  %v2562 = vadd.f32 %v2558, 1e-05
  %v2563 = vrsqrt.pop %v2559
  %v2564 = vrsqrt.pop %v2560
  %v2565 = vrsqrt.pop %v2561
  %v2566 = vrsqrt.pop %v2562
  %v2567 = vmul.f32 %v2535, %v2563
  %v2568 = vmul.f32 %v2536, %v2564
  %v2569 = vmul.f32 %v2537, %v2565
  %v2570 = vmul.f32 %v2538, %v2566
  %v2572 = vlaneseq
  %v2573 = vshrl.u32 %v2572, 7
  %v2574 = vsub.s32 0, %v2573
  %v2575 = vrot.slane %v2517, %v2574
  %v2577 = vmul.f32 %v2567, %v2575
  %v2578 = vmul.f32 %v2568, %v2575
  %v2579 = vmul.f32 %v2569, %v2575
  %v2580 = vmul.f32 %v2570, %v2575
  %v2582 = vlaneseq
  %v2583 = vshrl.u32 %v2582, 7
  %v2584 = vsub.s32 0, %v2583
  %v2585 = vrot.slane %v2518, %v2584
  %v2587 = vadd.f32 %v2577, %v2585
  %v2588 = vadd.f32 %v2578, %v2585
  %v2589 = vadd.f32 %v2579, %v2585
  %v2590 = vadd.f32 %v2580, %v2585
  %s2591 = scalar_lea.vmem %s3, 144
  %v2592 = vld [vmem:[%s2591] sm:$0xff]
  %v2593 = vld [vmem:[%s2591 + $0x8] sm:$0xf]
  %v2594 = vld [vmem:[%s2591 + $0xc] sm:$0xff]
  %v2595 = vld [vmem:[%s2591 + $0x14] sm:$0xf]
  %v2596 = vld [vmem:[%s2591 + $0x18] sm:$0xff]
  %v2597 = vld [vmem:[%s2591 + $0x20] sm:$0xf]
  %v2598 = vld [vmem:[%s2591 + $0x24] sm:$0xff]
  %v2599 = vld [vmem:[%s2591 + $0x2c] sm:$0xf]
  %v2600 = vld [vmem:[%s2591 + $0x30] sm:$0xff]
  %v2601 = vld [vmem:[%s2591 + $0x38] sm:$0xf]
  %v2602 = vld [vmem:[%s2591 + $0x3c] sm:$0xff]
  %v2603 = vld [vmem:[%s2591 + $0x44] sm:$0xf]
  %v2604 = vld [vmem:[%s2591 + $0x48] sm:$0xff]
  %v2605 = vld [vmem:[%s2591 + $0x50] sm:$0xf]
  %v2606 = vld [vmem:[%s2591 + $0x54] sm:$0xff]
  %v2607 = vld [vmem:[%s2591 + $0x5c] sm:$0xf]
  %v2608 = vld [vmem:[%s2591 + $0x60] sm:$0xff]
  %v2609 = vld [vmem:[%s2591 + $0x68] sm:$0xf]
  %v2610 = vld [vmem:[%s2591 + $0x6c] sm:$0xff]
  %v2611 = vld [vmem:[%s2591 + $0x74] sm:$0xf]
  %v2612 = vld [vmem:[%s2591 + $0x78] sm:$0xff]
  %v2613 = vld [vmem:[%s2591 + $0x80] sm:$0xf]
  %v2614 = vld [vmem:[%s2591 + $0x84] sm:$0xff]
  %v2615 = vld [vmem:[%s2591 + $0x8c] sm:$0xf]
  %s2616 = scalar_lea.vmem %s4, 3
  %v2617 = vld [vmem:[%s2616] sm:$0x7]
  %s2618 = scalar_lea.vmem %s5, 48
  %v2619 = vld [vmem:[%s2618] sm:$0xf]
  %v2620 = vld [vmem:[%s2618 + $0x4] sm:$0xf]
  %v2621 = vld [vmem:[%s2618 + $0x8] sm:$0xf]
  %v2622 = vld [vmem:[%s2618 + $0xc] sm:$0xf]
  %v2623 = vld [vmem:[%s2618 + $0x10] sm:$0xf]
  %v2624 = vld [vmem:[%s2618 + $0x14] sm:$0xf]
  %v2625 = vld [vmem:[%s2618 + $0x18] sm:$0xf]
  %v2626 = vld [vmem:[%s2618 + $0x1c] sm:$0xf]
  %v2627 = vld [vmem:[%s2618 + $0x20] sm:$0xf]
  %v2628 = vld [vmem:[%s2618 + $0x24] sm:$0xf]
  %v2629 = vld [vmem:[%s2618 + $0x28] sm:$0xf]
  %v2630 = vld [vmem:[%s2618 + $0x2c] sm:$0xf]
  %s2631 = scalar_lea.vmem %s6, 1
  %v2632 = vld [vmem:[%s2631] sm:$0x1]
  %v2633 = vpack.c.bf16 %v2588, %v2587
  %v2634 = vpack.c.bf16 %v2590, %v2589
  %v2636 = vlaneseq
  %v2637 = vshrl.u32 %v2636, 7
  %v2638 = vsub.s32 0, %v2637
  %v2639 = vrot.slane %v2617, %v2638
  %v2640 = vlaneseq
  %v2641 = vshrl.u32 %v2640, 7
  %v2642 = vsub.s32 1, %v2641
  %v2643 = vrot.slane %v2617, %v2642
  %v2644 = vlaneseq
  %v2645 = vshrl.u32 %v2644, 7
  %v2646 = vsub.s32 2, %v2645
  %v2647 = vrot.slane %v2617, %v2646
  %v2675 = vunpack.c.l.b16 %v2592
  %v2676 = vunpack.c.h.b16 %v2592
  %v2677 = vunpack.c.l.b16 %v2593
  %v2678 = vunpack.c.l.b16 %v2594
  %v2679 = vunpack.c.h.b16 %v2594
  %v2680 = vunpack.c.l.b16 %v2595
  %v2681 = vunpack.c.l.b16 %v2596
  %v2682 = vunpack.c.h.b16 %v2596
  %v2683 = vunpack.c.l.b16 %v2597
  %v2684 = vunpack.c.l.b16 %v2598
  %v2685 = vunpack.c.h.b16 %v2598
  %v2686 = vunpack.c.l.b16 %v2599
  %v2687 = vunpack.c.l.b16 %v2600
  %v2688 = vunpack.c.h.b16 %v2600
  %v2689 = vunpack.c.l.b16 %v2601
  %v2690 = vunpack.c.l.b16 %v2602
  %v2691 = vunpack.c.h.b16 %v2602
  %v2692 = vunpack.c.l.b16 %v2603
  %v2693 = vunpack.c.l.b16 %v2604
  %v2694 = vunpack.c.h.b16 %v2604
  %v2695 = vunpack.c.l.b16 %v2605
  %v2696 = vunpack.c.l.b16 %v2606
  %v2697 = vunpack.c.h.b16 %v2606
  %v2698 = vunpack.c.l.b16 %v2607
  %v2699 = vunpack.c.l.b16 %v2608
  %v2700 = vunpack.c.h.b16 %v2608
  %v2701 = vunpack.c.l.b16 %v2609
  %v2702 = vunpack.c.l.b16 %v2610
  %v2703 = vunpack.c.h.b16 %v2610
  %v2704 = vunpack.c.l.b16 %v2611
  %v2705 = vunpack.c.l.b16 %v2612
  %v2706 = vunpack.c.h.b16 %v2612
  %v2707 = vunpack.c.l.b16 %v2613
  %v2708 = vunpack.c.l.b16 %v2614
  %v2709 = vunpack.c.h.b16 %v2614
  %v2710 = vunpack.c.l.b16 %v2615
  %v2711 = vpack.c.b16 %v2678, %v2675
  %v2712 = vpack.c.b16 %v2679, %v2676
  %v2713 = vpack.c.b16 %v2680, %v2677
  %v2714 = vpack.c.b16 %v2684, %v2681
  %v2715 = vpack.c.b16 %v2685, %v2682
  %v2716 = vpack.c.b16 %v2686, %v2683
  %v2717 = vpack.c.b16 %v2690, %v2687
  %v2718 = vpack.c.b16 %v2691, %v2688
  %v2719 = vpack.c.b16 %v2692, %v2689
  %v2720 = vpack.c.b16 %v2696, %v2693
  %v2721 = vpack.c.b16 %v2697, %v2694
  %v2722 = vpack.c.b16 %v2698, %v2695
  %v2723 = vpack.c.b16 %v2702, %v2699
  %v2724 = vpack.c.b16 %v2703, %v2700
  %v2725 = vpack.c.b16 %v2704, %v2701
  %v2726 = vpack.c.b16 %v2708, %v2705
  %v2727 = vpack.c.b16 %v2709, %v2706
  %v2728 = vpack.c.b16 %v2710, %v2707
  %v2748 = vsel %vm207, %v2633, 0
  %v2751 = vsel %vm207, %v2634, 0
  %2753 = vmatprep.subr.bf16.mxu0 %v2712
  %2754 = vmatpush1.bf16.msra.mxu0 %v2711
  %2755 = vmatprep.subr.bf16.mxu0 %v2715
  %2756 = vmatpush1.bf16.msra.mxu0 %v2714
  %2757 = vmatprep.subr.bf16.mxu0 %v2718
  %2758 = vmatpush1.bf16.msra.mxu0 %v2717
  %2759 = vmatprep.subr.bf16.mxu0 %v2721
  %2760 = vmatpush1.bf16.msra.mxu0 %v2720
  %2761 = vmatprep.subr.bf16.mxu0 %v2724
  %2762 = vmatpush1.bf16.msra.mxu0 %v2723
  %2763 = vmatprep.subr.bf16.mxu0 %v2727
  %2764 = vmatpush1.bf16.msra.mxu0 %v2726
  %2765 = vmatprep.subr.bf16.mxu0 0
  %2766 = vmatpush1.bf16.msra.mxu0 0
  %2767 = vmatprep.subr.bf16.mxu0 0
  %2768 = vmatpush1.bf16.msra.mxu0 0
  %2769 = vmatprep.subr.bf16.mxu0 0
  %2770 = vmatpush1.bf16.msra.mxu0 0
  %2771 = vmatprep.subr.bf16.mxu0 0
  %2772 = vmatpush1.bf16.msra.mxu0 0
  %2773 = vmatprep.subr.bf16.mxu0 0
  %2774 = vmatpush1.bf16.msra.mxu0 0
  %2775 = vmatprep.subr.bf16.mxu0 0
  %2776 = vmatpush1.bf16.msra.mxu0 0
  %2777 = vmatprep.subr.bf16.mxu0 0
  %2778 = vmatpush1.bf16.msra.mxu0 0
  %2779 = vmatprep.subr.bf16.mxu0 0
  %2780 = vmatpush1.bf16.msra.mxu0 0
  %2781 = vmatprep.subr.bf16.mxu0 0
  %2782 = vmatpush1.bf16.msra.mxu0 0
  %2783 = vmatprep.subr.bf16.mxu0 0
  %2784 = vmatpush1.bf16.msra.mxu0 0
  %2785 = vmatprep.mubr.bf16.mxu0 0
  %2786 = vmatmul.mubr.bf16.gmra.mrb[0].mxu0 %v2748
  %v2787 = vpop.f32.mrb[0].mxu0
  %v2788 = vadd.f32 %v2639, %v2787
  %v2789 = vpop.f32.mrb[0].mxu0
  %v2790 = vadd.f32 %v2643, %v2789
  %v2791 = vpop.f32.mrb[0].mxu0
  %v2792 = vadd.f32 %v2639, %v2791
  %v2793 = vpop.f32.mrb[0].mxu0
  %v2794 = vadd.f32 %v2643, %v2793
  %2795 = vmatprep.mubr.bf16.mxu0 0
  %2796 = vmatmul.mubr.bf16.gmra.mrb[0].mxu0 %v2751
  %v2797 = vpop.f32.mrb[0].mxu0
  %v2798 = vadd.f32 %v2639, %v2797
  %v2799 = vpop.f32.mrb[0].mxu0
  %v2800 = vadd.f32 %v2643, %v2799
  %v2801 = vpop.f32.mrb[0].mxu0
  %v2802 = vadd.f32 %v2639, %v2801
  %v2803 = vpop.f32.mrb[0].mxu0
  %v2804 = vadd.f32 %v2643, %v2803
  %2805 = vdwg.mxu0
  %2806 = vmatprep.subr.bf16.mxu0 0
  %2807 = vmatpush1.bf16.msra.mxu0 %v2713
  %2808 = vmatprep.subr.bf16.mxu0 0
  %2809 = vmatpush1.bf16.msra.mxu0 %v2716
  %2810 = vmatprep.subr.bf16.mxu0 0
  %2811 = vmatpush1.bf16.msra.mxu0 %v2719
  %2812 = vmatprep.subr.bf16.mxu0 0
  %2813 = vmatpush1.bf16.msra.mxu0 %v2722
  %2814 = vmatprep.subr.bf16.mxu0 0
  %2815 = vmatpush1.bf16.msra.mxu0 %v2725
  %2816 = vmatprep.subr.bf16.mxu0 0
  %2817 = vmatpush1.bf16.msra.mxu0 %v2728
  %2818 = vmatprep.subr.bf16.mxu0 0
  %2819 = vmatpush1.bf16.msra.mxu0 0
  %2820 = vmatprep.subr.bf16.mxu0 0
  %2821 = vmatpush1.bf16.msra.mxu0 0
  %2822 = vmatprep.subr.bf16.mxu0 0
  %2823 = vmatpush1.bf16.msra.mxu0 0
  %2824 = vmatprep.subr.bf16.mxu0 0
  %2825 = vmatpush1.bf16.msra.mxu0 0
  %2826 = vmatprep.subr.bf16.mxu0 0
  %2827 = vmatpush1.bf16.msra.mxu0 0
  %2828 = vmatprep.subr.bf16.mxu0 0
  %2829 = vmatpush1.bf16.msra.mxu0 0
  %2830 = vmatprep.subr.bf16.mxu0 0
  %2831 = vmatpush1.bf16.msra.mxu0 0
  %2832 = vmatprep.subr.bf16.mxu0 0
  %2833 = vmatpush1.bf16.msra.mxu0 0
  %2834 = vmatprep.subr.bf16.mxu0 0
  %2835 = vmatpush1.bf16.msra.mxu0 0
  %2836 = vmatprep.subr.bf16.mxu0 0
  %2837 = vmatpush1.bf16.msra.mxu0 0
  %2838 = vmatprep.mubr.bf16.mxu0 0
  %2839 = vmatmul.mubr.bf16.gmra.mrb[0].mxu0 %v2748
  %v2840 = vpop.f32.mrb[0].mxu0
  %v2841 = vadd.f32 %v2647, %v2840
  %v2842 = vpop.f32.mrb[0].mxu0
  %v2843 = vpop.f32.mrb[0].mxu0
  %v2844 = vadd.f32 %v2647, %v2843
  %v2845 = vpop.f32.mrb[0].mxu0
  %2846 = vmatprep.mubr.bf16.mxu0 0
  %2847 = vmatmul.mubr.bf16.gmra.mrb[0].mxu0 %v2751
  %v2848 = vpop.f32.mrb[0].mxu0
  %v2849 = vadd.f32 %v2647, %v2848
  %v2850 = vpop.f32.mrb[0].mxu0
  %v2851 = vpop.f32.mrb[0].mxu0
  %v2852 = vadd.f32 %v2647, %v2851
  %v2853 = vpop.f32.mrb[0].mxu0
  %2854 = vdwg.mxu0
  %2857 = vrot.lane.b32.xlu0 %v2788, 104
  %v2858 = vpop.permute.xlu0 %2857
  %2859 = vrot.lane.b32.xlu0 %v2792, 104
  %v2860 = vpop.permute.xlu0 %2859
  %2863 = vrot.lane.b32.xlu0 %v2788, 80
  %v2864 = vpop.permute.xlu0 %2863
  %2865 = vrot.lane.b32.xlu0 %v2792, 80
  %v2866 = vpop.permute.xlu0 %2865
  %2869 = vrot.lane.b32.xlu0 %v2788, 56
  %v2870 = vpop.permute.xlu0 %2869
  %2871 = vrot.lane.b32.xlu0 %v2792, 56
  %v2872 = vpop.permute.xlu0 %2871
  %v2875 = vpack.c.bf16 %v2792, %v2788
  %v2876 = vpack.c.bf16 %v2860, %v2858
  %v2877 = vpack.c.bf16 %v2866, %v2864
  %v2878 = vpack.c.bf16 %v2872, %v2870
  %2881 = vrot.lane.b32.xlu0 %v2790, 104
  %v2882 = vpop.permute.xlu0 %2881
  %2883 = vrot.lane.b32.xlu0 %v2794, 104
  %v2884 = vpop.permute.xlu0 %2883
  %v2885 = vsel %vm835, %v2858, %v2882
  %v2886 = vsel %vm835, %v2860, %v2884
  %2889 = vrot.lane.b32.xlu0 %v2790, 80
  %v2890 = vpop.permute.xlu0 %2889
  %2891 = vrot.lane.b32.xlu0 %v2794, 80
  %v2892 = vpop.permute.xlu0 %2891
  %2895 = vrot.lane.b32.xlu0 %v2790, 56
  %v2896 = vpop.permute.xlu0 %2895
  %2897 = vrot.lane.b32.xlu0 %v2794, 56
  %v2898 = vpop.permute.xlu0 %2897
  %v2901 = vpack.c.bf16 %v2886, %v2885
  %v2902 = vpack.c.bf16 %v2892, %v2890
  %v2903 = vpack.c.bf16 %v2898, %v2896
  %2908 = vrot.lane.b32.xlu0 %v2841, 80
  %v2909 = vpop.permute.xlu0 %2908
  %2910 = vrot.lane.b32.xlu0 %v2844, 80
  %v2911 = vpop.permute.xlu0 %2910
  %v2912 = vsel %vm204, %v2890, %v2909
  %v2913 = vsel %vm204, %v2892, %v2911
  %2916 = vrot.lane.b32.xlu0 %v2841, 56
  %v2917 = vpop.permute.xlu0 %2916
  %2918 = vrot.lane.b32.xlu0 %v2844, 56
  %v2919 = vpop.permute.xlu0 %2918
  %v2922 = vpack.c.bf16 %v2794, %v2790
  %v2923 = vpack.c.bf16 %v2884, %v2882
  %v2924 = vpack.c.bf16 %v2913, %v2912
  %v2925 = vpack.c.bf16 %v2919, %v2917
  %2927 = vrot.lane.b32.xlu0 %v2875, 32
  %v2928 = vpop.permute.xlu0 %2927
  %v2930 = vsel %vm880, %v2875, 0
  %v2933 = vsel %vm880, %v2928, 0
  %2935 = vmatprep.subr.bf16.mxu0 0
  %2936 = vmatpush1.bf16.xpose.msra.mxu0 %v2933
  %2937 = vmatprep.subr.bf16.mxu0 0
  %2938 = vmatpush1.bf16.xpose.msra.mxu0 0
  %2939 = vmatprep.subr.bf16.mxu0 0
  %2940 = vmatpush1.bf16.xpose.msra.mxu0 0
  %2941 = vmatprep.subr.bf16.mxu0 0
  %2942 = vmatpush1.bf16.xpose.msra.mxu0 0
  %2943 = vmatprep.subr.bf16.mxu0 0
  %2944 = vmatpush1.bf16.xpose.msra.mxu0 0
  %2945 = vmatprep.subr.bf16.mxu0 0
  %2946 = vmatpush1.bf16.xpose.msra.mxu0 0
  %2947 = vmatprep.subr.bf16.mxu0 0
  %2948 = vmatpush1.bf16.xpose.msra.mxu0 0
  %2949 = vmatprep.subr.bf16.mxu0 0
  %2950 = vmatpush1.bf16.xpose.msra.mxu0 0
  %2951 = vmatprep.subr.bf16.mxu0 0
  %2952 = vmatpush1.bf16.xpose.msra.mxu0 0
  %2953 = vmatprep.subr.bf16.mxu0 0
  %2954 = vmatpush1.bf16.xpose.msra.mxu0 0
  %2955 = vmatprep.subr.bf16.mxu0 0
  %2956 = vmatpush1.bf16.xpose.msra.mxu0 0
  %2957 = vmatprep.subr.bf16.mxu0 0
  %2958 = vmatpush1.bf16.xpose.msra.mxu0 0
  %2959 = vmatprep.subr.bf16.mxu0 0
  %2960 = vmatpush1.bf16.xpose.msra.mxu0 0
  %2961 = vmatprep.subr.bf16.mxu0 0
  %2962 = vmatpush1.bf16.xpose.msra.mxu0 0
  %2963 = vmatprep.subr.bf16.mxu0 0
  %2964 = vmatpush1.bf16.xpose.msra.mxu0 0
  %2965 = vmatprep.subr.bf16.mxu0 0
  %2966 = vmatpush1.bf16.xpose.msra.mxu0 0
  %2967 = vmatprep.mubr.bf16.mxu0 0
  %2968 = vmatmul.mubr.bf16.gmra.mrb[0].mxu0 %v2930
  %v2969 = vpop.f32.mrb[0].mxu0
  %v2970 = vadd.f32 0.0, %v2969
  %v2971 = vpop.f32.mrb[0].mxu0
  %v2972 = vpop.f32.mrb[0].mxu0
  %v2973 = vadd.f32 0.0, %v2972
  %v2974 = vpop.f32.mrb[0].mxu0
  %2975 = vdwg.mxu0
  %2977 = vrot.lane.b32.xlu0 %v2901, 32
  %v2978 = vpop.permute.xlu0 %2977
  %v2980 = vsel %vm880, %v2876, 0
  %v2983 = vsel %vm880, %v2978, 0
  %2985 = vmatprep.subr.bf16.mxu0 0
  %2986 = vmatpush1.bf16.xpose.msra.mxu0 %v2983
  %2987 = vmatprep.subr.bf16.mxu0 0
  %2988 = vmatpush1.bf16.xpose.msra.mxu0 0
  %2989 = vmatprep.subr.bf16.mxu0 0
  %2990 = vmatpush1.bf16.xpose.msra.mxu0 0
  %2991 = vmatprep.subr.bf16.mxu0 0
  %2992 = vmatpush1.bf16.xpose.msra.mxu0 0
  %2993 = vmatprep.subr.bf16.mxu0 0
  %2994 = vmatpush1.bf16.xpose.msra.mxu0 0
  %2995 = vmatprep.subr.bf16.mxu0 0
  %2996 = vmatpush1.bf16.xpose.msra.mxu0 0
  %2997 = vmatprep.subr.bf16.mxu0 0
  %2998 = vmatpush1.bf16.xpose.msra.mxu0 0
  %2999 = vmatprep.subr.bf16.mxu0 0
  %3000 = vmatpush1.bf16.xpose.msra.mxu0 0
  %3001 = vmatprep.subr.bf16.mxu0 0
  %3002 = vmatpush1.bf16.xpose.msra.mxu0 0
  %3003 = vmatprep.subr.bf16.mxu0 0
  %3004 = vmatpush1.bf16.xpose.msra.mxu0 0
  %3005 = vmatprep.subr.bf16.mxu0 0
  %3006 = vmatpush1.bf16.xpose.msra.mxu0 0
  %3007 = vmatprep.subr.bf16.mxu0 0
  %3008 = vmatpush1.bf16.xpose.msra.mxu0 0
  %3009 = vmatprep.subr.bf16.mxu0 0
  %3010 = vmatpush1.bf16.xpose.msra.mxu0 0
  %3011 = vmatprep.subr.bf16.mxu0 0
  %3012 = vmatpush1.bf16.xpose.msra.mxu0 0
  %3013 = vmatprep.subr.bf16.mxu0 0
  %3014 = vmatpush1.bf16.xpose.msra.mxu0 0
  %3015 = vmatprep.subr.bf16.mxu0 0
  %3016 = vmatpush1.bf16.xpose.msra.mxu0 0
  %3017 = vmatprep.mubr.bf16.mxu0 0
  %3018 = vmatmul.mubr.bf16.gmra.mrb[0].mxu0 %v2980
  %v3019 = vpop.f32.mrb[0].mxu0
  %v3020 = vadd.f32 0.0, %v3019
  %v3021 = vpop.f32.mrb[0].mxu0
  %v3022 = vpop.f32.mrb[0].mxu0
  %v3023 = vadd.f32 0.0, %v3022
  %v3024 = vpop.f32.mrb[0].mxu0
  %3025 = vdwg.mxu0
  %3027 = vrot.lane.b32.xlu0 %v2902, 32
  %v3028 = vpop.permute.xlu0 %3027
  %v3030 = vsel %vm880, %v2877, 0
  %v3033 = vsel %vm880, %v3028, 0
  %3035 = vmatprep.subr.bf16.mxu0 0
  %3036 = vmatpush1.bf16.xpose.msra.mxu0 %v3033
  %3037 = vmatprep.subr.bf16.mxu0 0
  %3038 = vmatpush1.bf16.xpose.msra.mxu0 0
  %3039 = vmatprep.subr.bf16.mxu0 0
  %3040 = vmatpush1.bf16.xpose.msra.mxu0 0
  %3041 = vmatprep.subr.bf16.mxu0 0
  %3042 = vmatpush1.bf16.xpose.msra.mxu0 0
  %3043 = vmatprep.subr.bf16.mxu0 0
  %3044 = vmatpush1.bf16.xpose.msra.mxu0 0
  %3045 = vmatprep.subr.bf16.mxu0 0
  %3046 = vmatpush1.bf16.xpose.msra.mxu0 0
  %3047 = vmatprep.subr.bf16.mxu0 0
  %3048 = vmatpush1.bf16.xpose.msra.mxu0 0
  %3049 = vmatprep.subr.bf16.mxu0 0
  %3050 = vmatpush1.bf16.xpose.msra.mxu0 0
  %3051 = vmatprep.subr.bf16.mxu0 0
  %3052 = vmatpush1.bf16.xpose.msra.mxu0 0
  %3053 = vmatprep.subr.bf16.mxu0 0
  %3054 = vmatpush1.bf16.xpose.msra.mxu0 0
  %3055 = vmatprep.subr.bf16.mxu0 0
  %3056 = vmatpush1.bf16.xpose.msra.mxu0 0
  %3057 = vmatprep.subr.bf16.mxu0 0
  %3058 = vmatpush1.bf16.xpose.msra.mxu0 0
  %3059 = vmatprep.subr.bf16.mxu0 0
  %3060 = vmatpush1.bf16.xpose.msra.mxu0 0
  %3061 = vmatprep.subr.bf16.mxu0 0
  %3062 = vmatpush1.bf16.xpose.msra.mxu0 0
  %3063 = vmatprep.subr.bf16.mxu0 0
  %3064 = vmatpush1.bf16.xpose.msra.mxu0 0
  %3065 = vmatprep.subr.bf16.mxu0 0
  %3066 = vmatpush1.bf16.xpose.msra.mxu0 0
  %3067 = vmatprep.mubr.bf16.mxu0 0
  %3068 = vmatmul.mubr.bf16.gmra.mrb[0].mxu0 %v3030
  %v3069 = vpop.f32.mrb[0].mxu0
  %v3070 = vadd.f32 0.0, %v3069
  %v3071 = vpop.f32.mrb[0].mxu0
  %v3072 = vpop.f32.mrb[0].mxu0
  %v3073 = vadd.f32 0.0, %v3072
  %v3074 = vpop.f32.mrb[0].mxu0
  %3075 = vdwg.mxu0
  %3077 = vrot.lane.b32.xlu0 %v2903, 32
  %v3078 = vpop.permute.xlu0 %3077
  %v3080 = vsel %vm880, %v2878, 0
  %v3083 = vsel %vm880, %v3078, 0
  %3085 = vmatprep.subr.bf16.mxu0 0
  %3086 = vmatpush1.bf16.xpose.msra.mxu0 %v3083
  %3087 = vmatprep.subr.bf16.mxu0 0
  %3088 = vmatpush1.bf16.xpose.msra.mxu0 0
  %3089 = vmatprep.subr.bf16.mxu0 0
  %3090 = vmatpush1.bf16.xpose.msra.mxu0 0
  %3091 = vmatprep.subr.bf16.mxu0 0
  %3092 = vmatpush1.bf16.xpose.msra.mxu0 0
  %3093 = vmatprep.subr.bf16.mxu0 0
  %3094 = vmatpush1.bf16.xpose.msra.mxu0 0
  %3095 = vmatprep.subr.bf16.mxu0 0
  %3096 = vmatpush1.bf16.xpose.msra.mxu0 0
  %3097 = vmatprep.subr.bf16.mxu0 0
  %3098 = vmatpush1.bf16.xpose.msra.mxu0 0
  %3099 = vmatprep.subr.bf16.mxu0 0
  %3100 = vmatpush1.bf16.xpose.msra.mxu0 0
  %3101 = vmatprep.subr.bf16.mxu0 0
  %3102 = vmatpush1.bf16.xpose.msra.mxu0 0
  %3103 = vmatprep.subr.bf16.mxu0 0
  %3104 = vmatpush1.bf16.xpose.msra.mxu0 0
  %3105 = vmatprep.subr.bf16.mxu0 0
  %3106 = vmatpush1.bf16.xpose.msra.mxu0 0
  %3107 = vmatprep.subr.bf16.mxu0 0
  %3108 = vmatpush1.bf16.xpose.msra.mxu0 0
  %3109 = vmatprep.subr.bf16.mxu0 0
  %3110 = vmatpush1.bf16.xpose.msra.mxu0 0
  %3111 = vmatprep.subr.bf16.mxu0 0
  %3112 = vmatpush1.bf16.xpose.msra.mxu0 0
  %3113 = vmatprep.subr.bf16.mxu0 0
  %3114 = vmatpush1.bf16.xpose.msra.mxu0 0
  %3115 = vmatprep.subr.bf16.mxu0 0
  %3116 = vmatpush1.bf16.xpose.msra.mxu0 0
  %3117 = vmatprep.mubr.bf16.mxu0 0
  %3118 = vmatmul.mubr.bf16.gmra.mrb[0].mxu0 %v3080
  %v3119 = vpop.f32.mrb[0].mxu0
  %v3120 = vadd.f32 0.0, %v3119
  %v3121 = vpop.f32.mrb[0].mxu0
  %v3122 = vpop.f32.mrb[0].mxu0
  %v3123 = vadd.f32 0.0, %v3122
  %v3124 = vpop.f32.mrb[0].mxu0
  %3125 = vdwg.mxu0
  %v3126 = vmul.f32 %v2970, 0.20412415
  %v3127 = vmul.f32 %v2973, 0.20412415
  %v3128 = vmul.f32 %v3020, 0.20412415
  %v3129 = vmul.f32 %v3023, 0.20412415
  %v3130 = vmul.f32 %v3070, 0.20412415
  %v3131 = vmul.f32 %v3073, 0.20412415
  %v3132 = vmul.f32 %v3120, 0.20412415
  %v3133 = vmul.f32 %v3123, 0.20412415
  %v3134 = vsel %vm192, %v3126, -inf
  %3135 = vmax.xlane.f32.xlu0 %v3134
  %v3136 = vpop.xlane.xlu0 %3135
  %v3137 = vsel %vm192, %v3127, -inf
  %3138 = vmax.xlane.f32.xlu0 %v3137
  %v3139 = vpop.xlane.xlu0 %3138
  %v3140 = vsel %vm192, %v3128, -inf
  %3141 = vmax.xlane.f32.xlu0 %v3140
  %v3142 = vpop.xlane.xlu0 %3141
  %v3143 = vsel %vm192, %v3129, -inf
  %3144 = vmax.xlane.f32.xlu0 %v3143
  %v3145 = vpop.xlane.xlu0 %3144
  %v3146 = vsel %vm192, %v3130, -inf
  %3147 = vmax.xlane.f32.xlu0 %v3146
  %v3148 = vpop.xlane.xlu0 %3147
  %v3149 = vsel %vm192, %v3131, -inf
  %3150 = vmax.xlane.f32.xlu0 %v3149
  %v3151 = vpop.xlane.xlu0 %3150
  %v3152 = vsel %vm192, %v3132, -inf
  %3153 = vmax.xlane.f32.xlu0 %v3152
  %v3154 = vpop.xlane.xlu0 %3153
  %v3155 = vsel %vm192, %v3133, -inf
  %3156 = vmax.xlane.f32.xlu0 %v3155
  %v3157 = vpop.xlane.xlu0 %3156
  %v3158 = vsub.f32 %v3126, %v3136
  %v3159 = vsub.f32 %v3127, %v3139
  %v3160 = vsub.f32 %v3128, %v3142
  %v3161 = vsub.f32 %v3129, %v3145
  %v3162 = vsub.f32 %v3130, %v3148
  %v3163 = vsub.f32 %v3131, %v3151
  %v3164 = vsub.f32 %v3132, %v3154
  %v3165 = vsub.f32 %v3133, %v3157
  %v3166 = vmul.f32 %v3158, 1.442695
  %v3167 = vpow.pop %v3166
  %v3168 = vmul.f32 %v3159, 1.442695
  %v3169 = vpow.pop %v3168
  %v3170 = vmul.f32 %v3160, 1.442695
  %v3171 = vpow.pop %v3170
  %v3172 = vmul.f32 %v3161, 1.442695
  %v3173 = vpow.pop %v3172
  %v3174 = vmul.f32 %v3162, 1.442695
  %v3175 = vpow.pop %v3174
  %v3176 = vmul.f32 %v3163, 1.442695
  %v3177 = vpow.pop %v3176
  %v3178 = vmul.f32 %v3164, 1.442695
  %v3179 = vpow.pop %v3178
  %v3180 = vmul.f32 %v3165, 1.442695
  %v3181 = vpow.pop %v3180
  %v3182 = vsel %vm192, %v3167, 0.0
  %3183 = vadd.xlane.f32.xlu0 %v3182
  %v3184 = vpop.xlane.xlu0 %3183
  %v3185 = vsel %vm192, %v3169, 0.0
  %3186 = vadd.xlane.f32.xlu0 %v3185
  %v3187 = vpop.xlane.xlu0 %3186
  %v3188 = vsel %vm192, %v3171, 0.0
  %3189 = vadd.xlane.f32.xlu0 %v3188
  %v3190 = vpop.xlane.xlu0 %3189
  %v3191 = vsel %vm192, %v3173, 0.0
  %3192 = vadd.xlane.f32.xlu0 %v3191
  %v3193 = vpop.xlane.xlu0 %3192
  %v3194 = vsel %vm192, %v3175, 0.0
  %3195 = vadd.xlane.f32.xlu0 %v3194
  %v3196 = vpop.xlane.xlu0 %3195
  %v3197 = vsel %vm192, %v3177, 0.0
  %3198 = vadd.xlane.f32.xlu0 %v3197
  %v3199 = vpop.xlane.xlu0 %3198
  %v3200 = vsel %vm192, %v3179, 0.0
  %3201 = vadd.xlane.f32.xlu0 %v3200
  %v3202 = vpop.xlane.xlu0 %3201
  %v3203 = vsel %vm192, %v3181, 0.0
  %3204 = vadd.xlane.f32.xlu0 %v3203
  %v3205 = vpop.xlane.xlu0 %3204
  %v3206 = vrcp.pop %v3184
  %v3207 = vrcp.pop %v3187
  %v3208 = vrcp.pop %v3190
  %v3209 = vrcp.pop %v3193
  %v3210 = vrcp.pop %v3196
  %v3211 = vrcp.pop %v3199
  %v3212 = vrcp.pop %v3202
  %v3213 = vrcp.pop %v3205
  %v3214 = vmul.f32 %v3167, %v3206
  %v3215 = vmul.f32 %v3169, %v3207
  %v3216 = vmul.f32 %v3171, %v3208
  %v3217 = vmul.f32 %v3173, %v3209
  %v3218 = vmul.f32 %v3175, %v3210
  %v3219 = vmul.f32 %v3177, %v3211
  %v3220 = vmul.f32 %v3179, %v3212
  %v3221 = vmul.f32 %v3181, %v3213
  %v3222 = vpack.c.bf16 %v3215, %v3214
  %v3223 = vpack.c.bf16 %v3217, %v3216
  %v3224 = vpack.c.bf16 %v3219, %v3218
  %v3225 = vpack.c.bf16 %v3221, %v3220
  %3227 = vrot.lane.b32.xlu0 %v2922, 64
  %v3228 = vpop.permute.xlu0 %3227
  %v3231 = vsel %vm192, %v3222, 0
  %3233 = vmatprep.subr.bf16.mxu0 0
  %3234 = vmatpush1.bf16.msra.mxu0 %v3228
  %3235 = vmatprep.subr.bf16.mxu0 0
  %3236 = vmatpush1.bf16.msra.mxu0 0
  %3237 = vmatprep.subr.bf16.mxu0 0
  %3238 = vmatpush1.bf16.msra.mxu0 0
  %3239 = vmatprep.subr.bf16.mxu0 0
  %3240 = vmatpush1.bf16.msra.mxu0 0
  %3241 = vmatprep.subr.bf16.mxu0 0
  %3242 = vmatpush1.bf16.msra.mxu0 0
  %3243 = vmatprep.subr.bf16.mxu0 0
  %3244 = vmatpush1.bf16.msra.mxu0 0
  %3245 = vmatprep.subr.bf16.mxu0 0
  %3246 = vmatpush1.bf16.msra.mxu0 0
  %3247 = vmatprep.subr.bf16.mxu0 0
  %3248 = vmatpush1.bf16.msra.mxu0 0
  %3249 = vmatprep.subr.bf16.mxu0 0
  %3250 = vmatpush1.bf16.msra.mxu0 0
  %3251 = vmatprep.subr.bf16.mxu0 0
  %3252 = vmatpush1.bf16.msra.mxu0 0
  %3253 = vmatprep.subr.bf16.mxu0 0
  %3254 = vmatpush1.bf16.msra.mxu0 0
  %3255 = vmatprep.subr.bf16.mxu0 0
  %3256 = vmatpush1.bf16.msra.mxu0 0
  %3257 = vmatprep.subr.bf16.mxu0 0
  %3258 = vmatpush1.bf16.msra.mxu0 0
  %3259 = vmatprep.subr.bf16.mxu0 0
  %3260 = vmatpush1.bf16.msra.mxu0 0
  %3261 = vmatprep.subr.bf16.mxu0 0
  %3262 = vmatpush1.bf16.msra.mxu0 0
  %3263 = vmatprep.subr.bf16.mxu0 0
  %3264 = vmatpush1.bf16.msra.mxu0 0
  %3265 = vmatprep.mubr.bf16.mxu0 0
  %3266 = vmatmul.mubr.bf16.gmra.mrb[0].mxu0 %v3231
  %v3267 = vpop.f32.mrb[0].mxu0
  %v3268 = vadd.f32 0.0, %v3267
  %v3269 = vpop.f32.mrb[0].mxu0
  %v3270 = vpop.f32.mrb[0].mxu0
  %v3271 = vadd.f32 0.0, %v3270
  %v3272 = vpop.f32.mrb[0].mxu0
  %3273 = vdwg.mxu0
  %3275 = vrot.lane.b32.xlu0 %v2923, 64
  %v3276 = vpop.permute.xlu0 %3275
  %v3279 = vsel %vm192, %v3223, 0
  %3281 = vmatprep.subr.bf16.mxu0 0
  %3282 = vmatpush1.bf16.msra.mxu0 %v3276
  %3283 = vmatprep.subr.bf16.mxu0 0
  %3284 = vmatpush1.bf16.msra.mxu0 0
  %3285 = vmatprep.subr.bf16.mxu0 0
  %3286 = vmatpush1.bf16.msra.mxu0 0
  %3287 = vmatprep.subr.bf16.mxu0 0
  %3288 = vmatpush1.bf16.msra.mxu0 0
  %3289 = vmatprep.subr.bf16.mxu0 0
  %3290 = vmatpush1.bf16.msra.mxu0 0
  %3291 = vmatprep.subr.bf16.mxu0 0
  %3292 = vmatpush1.bf16.msra.mxu0 0
  %3293 = vmatprep.subr.bf16.mxu0 0
  %3294 = vmatpush1.bf16.msra.mxu0 0
  %3295 = vmatprep.subr.bf16.mxu0 0
  %3296 = vmatpush1.bf16.msra.mxu0 0
  %3297 = vmatprep.subr.bf16.mxu0 0
  %3298 = vmatpush1.bf16.msra.mxu0 0
  %3299 = vmatprep.subr.bf16.mxu0 0
  %3300 = vmatpush1.bf16.msra.mxu0 0
  %3301 = vmatprep.subr.bf16.mxu0 0
  %3302 = vmatpush1.bf16.msra.mxu0 0
  %3303 = vmatprep.subr.bf16.mxu0 0
  %3304 = vmatpush1.bf16.msra.mxu0 0
  %3305 = vmatprep.subr.bf16.mxu0 0
  %3306 = vmatpush1.bf16.msra.mxu0 0
  %3307 = vmatprep.subr.bf16.mxu0 0
  %3308 = vmatpush1.bf16.msra.mxu0 0
  %3309 = vmatprep.subr.bf16.mxu0 0
  %3310 = vmatpush1.bf16.msra.mxu0 0
  %3311 = vmatprep.subr.bf16.mxu0 0
  %3312 = vmatpush1.bf16.msra.mxu0 0
  %3313 = vmatprep.mubr.bf16.mxu0 0
  %3314 = vmatmul.mubr.bf16.gmra.mrb[0].mxu0 %v3279
  %v3315 = vpop.f32.mrb[0].mxu0
  %v3316 = vadd.f32 0.0, %v3315
  %v3317 = vpop.f32.mrb[0].mxu0
  %v3318 = vpop.f32.mrb[0].mxu0
  %v3319 = vadd.f32 0.0, %v3318
  %v3320 = vpop.f32.mrb[0].mxu0
  %3321 = vdwg.mxu0
  %3323 = vrot.lane.b32.xlu0 %v2924, 64
  %v3324 = vpop.permute.xlu0 %3323
  %v3327 = vsel %vm192, %v3224, 0
  %3329 = vmatprep.subr.bf16.mxu0 0
  %3330 = vmatpush1.bf16.msra.mxu0 %v3324
  %3331 = vmatprep.subr.bf16.mxu0 0
  %3332 = vmatpush1.bf16.msra.mxu0 0
  %3333 = vmatprep.subr.bf16.mxu0 0
  %3334 = vmatpush1.bf16.msra.mxu0 0
  %3335 = vmatprep.subr.bf16.mxu0 0
  %3336 = vmatpush1.bf16.msra.mxu0 0
  %3337 = vmatprep.subr.bf16.mxu0 0
  %3338 = vmatpush1.bf16.msra.mxu0 0
  %3339 = vmatprep.subr.bf16.mxu0 0
  %3340 = vmatpush1.bf16.msra.mxu0 0
  %3341 = vmatprep.subr.bf16.mxu0 0
  %3342 = vmatpush1.bf16.msra.mxu0 0
  %3343 = vmatprep.subr.bf16.mxu0 0
  %3344 = vmatpush1.bf16.msra.mxu0 0
  %3345 = vmatprep.subr.bf16.mxu0 0
  %3346 = vmatpush1.bf16.msra.mxu0 0
  %3347 = vmatprep.subr.bf16.mxu0 0
  %3348 = vmatpush1.bf16.msra.mxu0 0
  %3349 = vmatprep.subr.bf16.mxu0 0
  %3350 = vmatpush1.bf16.msra.mxu0 0
  %3351 = vmatprep.subr.bf16.mxu0 0
  %3352 = vmatpush1.bf16.msra.mxu0 0
  %3353 = vmatprep.subr.bf16.mxu0 0
  %3354 = vmatpush1.bf16.msra.mxu0 0
  %3355 = vmatprep.subr.bf16.mxu0 0
  %3356 = vmatpush1.bf16.msra.mxu0 0
  %3357 = vmatprep.subr.bf16.mxu0 0
  %3358 = vmatpush1.bf16.msra.mxu0 0
  %3359 = vmatprep.subr.bf16.mxu0 0
  %3360 = vmatpush1.bf16.msra.mxu0 0
  %3361 = vmatprep.mubr.bf16.mxu0 0
  %3362 = vmatmul.mubr.bf16.gmra.mrb[0].mxu0 %v3327
  %v3363 = vpop.f32.mrb[0].mxu0
  %v3364 = vadd.f32 0.0, %v3363
  %v3365 = vpop.f32.mrb[0].mxu0
  %v3366 = vpop.f32.mrb[0].mxu0
  %v3367 = vadd.f32 0.0, %v3366
  %v3368 = vpop.f32.mrb[0].mxu0
  %3369 = vdwg.mxu0
  %3371 = vrot.lane.b32.xlu0 %v2925, 64
  %v3372 = vpop.permute.xlu0 %3371
  %v3375 = vsel %vm192, %v3225, 0
  %3377 = vmatprep.subr.bf16.mxu0 0
  %3378 = vmatpush1.bf16.msra.mxu0 %v3372
  %3379 = vmatprep.subr.bf16.mxu0 0
  %3380 = vmatpush1.bf16.msra.mxu0 0
  %3381 = vmatprep.subr.bf16.mxu0 0
  %3382 = vmatpush1.bf16.msra.mxu0 0
  %3383 = vmatprep.subr.bf16.mxu0 0
  %3384 = vmatpush1.bf16.msra.mxu0 0
  %3385 = vmatprep.subr.bf16.mxu0 0
  %3386 = vmatpush1.bf16.msra.mxu0 0
  %3387 = vmatprep.subr.bf16.mxu0 0
  %3388 = vmatpush1.bf16.msra.mxu0 0
  %3389 = vmatprep.subr.bf16.mxu0 0
  %3390 = vmatpush1.bf16.msra.mxu0 0
  %3391 = vmatprep.subr.bf16.mxu0 0
  %3392 = vmatpush1.bf16.msra.mxu0 0
  %3393 = vmatprep.subr.bf16.mxu0 0
  %3394 = vmatpush1.bf16.msra.mxu0 0
  %3395 = vmatprep.subr.bf16.mxu0 0
  %3396 = vmatpush1.bf16.msra.mxu0 0
  %3397 = vmatprep.subr.bf16.mxu0 0
  %3398 = vmatpush1.bf16.msra.mxu0 0
  %3399 = vmatprep.subr.bf16.mxu0 0
  %3400 = vmatpush1.bf16.msra.mxu0 0
  %3401 = vmatprep.subr.bf16.mxu0 0
  %3402 = vmatpush1.bf16.msra.mxu0 0
  %3403 = vmatprep.subr.bf16.mxu0 0
  %3404 = vmatpush1.bf16.msra.mxu0 0
  %3405 = vmatprep.subr.bf16.mxu0 0
  %3406 = vmatpush1.bf16.msra.mxu0 0
  %3407 = vmatprep.subr.bf16.mxu0 0
  %3408 = vmatpush1.bf16.msra.mxu0 0
  %3409 = vmatprep.mubr.bf16.mxu0 0
  %3410 = vmatmul.mubr.bf16.gmra.mrb[0].mxu0 %v3375
  %v3411 = vpop.f32.mrb[0].mxu0
  %v3412 = vadd.f32 0.0, %v3411
  %v3413 = vpop.f32.mrb[0].mxu0
  %v3414 = vpop.f32.mrb[0].mxu0
  %v3415 = vadd.f32 0.0, %v3414
  %v3416 = vpop.f32.mrb[0].mxu0
  %3417 = vdwg.mxu0
  %3420 = vrot.lane.b32.xlu0 %v3316, 24
  %v3421 = vpop.permute.xlu0 %3420
  %3422 = vrot.lane.b32.xlu0 %v3319, 24
  %v3423 = vpop.permute.xlu0 %3422
  %3428 = vrot.lane.b32.xlu0 %v3364, 48
  %v3429 = vpop.permute.xlu0 %3428
  %3430 = vrot.lane.b32.xlu0 %v3367, 48
  %v3431 = vpop.permute.xlu0 %3430
  %3436 = vrot.lane.b32.xlu0 %v3412, 72
  %v3437 = vpop.permute.xlu0 %3436
  %3438 = vrot.lane.b32.xlu0 %v3415, 72
  %v3439 = vpop.permute.xlu0 %3438
  %v3442 = vsel %vm880, %v3268, %v3421
  %v3443 = vsel %vm880, %v3271, %v3423
  %v3444 = vsel %vm198, %v3442, %v3429
  %v3445 = vsel %vm198, %v3443, %v3431
  %v3446 = vsel %vm1398, %v3444, %v3437
  %v3447 = vsel %vm1398, %v3445, %v3439
  %3450 = vrot.lane.b32.xlu0 %v2798, 104
  %v3451 = vpop.permute.xlu0 %3450
  %3452 = vrot.lane.b32.xlu0 %v2802, 104
  %v3453 = vpop.permute.xlu0 %3452
  %3456 = vrot.lane.b32.xlu0 %v2798, 80
  %v3457 = vpop.permute.xlu0 %3456
  %3458 = vrot.lane.b32.xlu0 %v2802, 80
  %v3459 = vpop.permute.xlu0 %3458
  %3462 = vrot.lane.b32.xlu0 %v2798, 56
  %v3463 = vpop.permute.xlu0 %3462
  %3464 = vrot.lane.b32.xlu0 %v2802, 56
  %v3465 = vpop.permute.xlu0 %3464
  %v3468 = vpack.c.bf16 %v2802, %v2798
  %v3469 = vpack.c.bf16 %v3453, %v3451
  %v3470 = vpack.c.bf16 %v3459, %v3457
  %v3471 = vpack.c.bf16 %v3465, %v3463
  %3474 = vrot.lane.b32.xlu0 %v2800, 104
  %v3475 = vpop.permute.xlu0 %3474
  %3476 = vrot.lane.b32.xlu0 %v2804, 104
  %v3477 = vpop.permute.xlu0 %3476
  %v3478 = vsel %vm835, %v3451, %v3475
  %v3479 = vsel %vm835, %v3453, %v3477
  %3482 = vrot.lane.b32.xlu0 %v2800, 80
  %v3483 = vpop.permute.xlu0 %3482
  %3484 = vrot.lane.b32.xlu0 %v2804, 80
  %v3485 = vpop.permute.xlu0 %3484
  %3488 = vrot.lane.b32.xlu0 %v2800, 56
  %v3489 = vpop.permute.xlu0 %3488
  %3490 = vrot.lane.b32.xlu0 %v2804, 56
  %v3491 = vpop.permute.xlu0 %3490
  %v3494 = vpack.c.bf16 %v3479, %v3478
  %v3495 = vpack.c.bf16 %v3485, %v3483
  %v3496 = vpack.c.bf16 %v3491, %v3489
  %3501 = vrot.lane.b32.xlu0 %v2849, 80
  %v3502 = vpop.permute.xlu0 %3501
  %3503 = vrot.lane.b32.xlu0 %v2852, 80
  %v3504 = vpop.permute.xlu0 %3503
  %v3505 = vsel %vm204, %v3483, %v3502
  %v3506 = vsel %vm204, %v3485, %v3504
  %3509 = vrot.lane.b32.xlu0 %v2849, 56
  %v3510 = vpop.permute.xlu0 %3509
  %3511 = vrot.lane.b32.xlu0 %v2852, 56
  %v3512 = vpop.permute.xlu0 %3511
  %v3515 = vpack.c.bf16 %v2804, %v2800
  %v3516 = vpack.c.bf16 %v3477, %v3475
  %v3517 = vpack.c.bf16 %v3506, %v3505
  %v3518 = vpack.c.bf16 %v3512, %v3510
  %3520 = vrot.lane.b32.xlu0 %v3468, 32
  %v3521 = vpop.permute.xlu0 %3520
  %v3523 = vsel %vm880, %v3468, 0
  %v3526 = vsel %vm880, %v3521, 0
  %3528 = vmatprep.subr.bf16.mxu0 0
  %3529 = vmatpush1.bf16.xpose.msra.mxu0 %v3526
  %3530 = vmatprep.subr.bf16.mxu0 0
  %3531 = vmatpush1.bf16.xpose.msra.mxu0 0
  %3532 = vmatprep.subr.bf16.mxu0 0
  %3533 = vmatpush1.bf16.xpose.msra.mxu0 0
  %3534 = vmatprep.subr.bf16.mxu0 0
  %3535 = vmatpush1.bf16.xpose.msra.mxu0 0
  %3536 = vmatprep.subr.bf16.mxu0 0
  %3537 = vmatpush1.bf16.xpose.msra.mxu0 0
  %3538 = vmatprep.subr.bf16.mxu0 0
  %3539 = vmatpush1.bf16.xpose.msra.mxu0 0
  %3540 = vmatprep.subr.bf16.mxu0 0
  %3541 = vmatpush1.bf16.xpose.msra.mxu0 0
  %3542 = vmatprep.subr.bf16.mxu0 0
  %3543 = vmatpush1.bf16.xpose.msra.mxu0 0
  %3544 = vmatprep.subr.bf16.mxu0 0
  %3545 = vmatpush1.bf16.xpose.msra.mxu0 0
  %3546 = vmatprep.subr.bf16.mxu0 0
  %3547 = vmatpush1.bf16.xpose.msra.mxu0 0
  %3548 = vmatprep.subr.bf16.mxu0 0
  %3549 = vmatpush1.bf16.xpose.msra.mxu0 0
  %3550 = vmatprep.subr.bf16.mxu0 0
  %3551 = vmatpush1.bf16.xpose.msra.mxu0 0
  %3552 = vmatprep.subr.bf16.mxu0 0
  %3553 = vmatpush1.bf16.xpose.msra.mxu0 0
  %3554 = vmatprep.subr.bf16.mxu0 0
  %3555 = vmatpush1.bf16.xpose.msra.mxu0 0
  %3556 = vmatprep.subr.bf16.mxu0 0
  %3557 = vmatpush1.bf16.xpose.msra.mxu0 0
  %3558 = vmatprep.subr.bf16.mxu0 0
  %3559 = vmatpush1.bf16.xpose.msra.mxu0 0
  %3560 = vmatprep.mubr.bf16.mxu0 0
  %3561 = vmatmul.mubr.bf16.gmra.mrb[0].mxu0 %v3523
  %v3562 = vpop.f32.mrb[0].mxu0
  %v3563 = vadd.f32 0.0, %v3562
  %v3564 = vpop.f32.mrb[0].mxu0
  %v3565 = vpop.f32.mrb[0].mxu0
  %v3566 = vadd.f32 0.0, %v3565
  %v3567 = vpop.f32.mrb[0].mxu0
  %3568 = vdwg.mxu0
  %3570 = vrot.lane.b32.xlu0 %v3494, 32
  %v3571 = vpop.permute.xlu0 %3570
  %v3573 = vsel %vm880, %v3469, 0
  %v3576 = vsel %vm880, %v3571, 0
  %3578 = vmatprep.subr.bf16.mxu0 0
  %3579 = vmatpush1.bf16.xpose.msra.mxu0 %v3576
  %3580 = vmatprep.subr.bf16.mxu0 0
  %3581 = vmatpush1.bf16.xpose.msra.mxu0 0
  %3582 = vmatprep.subr.bf16.mxu0 0
  %3583 = vmatpush1.bf16.xpose.msra.mxu0 0
  %3584 = vmatprep.subr.bf16.mxu0 0
  %3585 = vmatpush1.bf16.xpose.msra.mxu0 0
  %3586 = vmatprep.subr.bf16.mxu0 0
  %3587 = vmatpush1.bf16.xpose.msra.mxu0 0
  %3588 = vmatprep.subr.bf16.mxu0 0
  %3589 = vmatpush1.bf16.xpose.msra.mxu0 0
  %3590 = vmatprep.subr.bf16.mxu0 0
  %3591 = vmatpush1.bf16.xpose.msra.mxu0 0
  %3592 = vmatprep.subr.bf16.mxu0 0
  %3593 = vmatpush1.bf16.xpose.msra.mxu0 0
  %3594 = vmatprep.subr.bf16.mxu0 0
  %3595 = vmatpush1.bf16.xpose.msra.mxu0 0
  %3596 = vmatprep.subr.bf16.mxu0 0
  %3597 = vmatpush1.bf16.xpose.msra.mxu0 0
  %3598 = vmatprep.subr.bf16.mxu0 0
  %3599 = vmatpush1.bf16.xpose.msra.mxu0 0
  %3600 = vmatprep.subr.bf16.mxu0 0
  %3601 = vmatpush1.bf16.xpose.msra.mxu0 0
  %3602 = vmatprep.subr.bf16.mxu0 0
  %3603 = vmatpush1.bf16.xpose.msra.mxu0 0
  %3604 = vmatprep.subr.bf16.mxu0 0
  %3605 = vmatpush1.bf16.xpose.msra.mxu0 0
  %3606 = vmatprep.subr.bf16.mxu0 0
  %3607 = vmatpush1.bf16.xpose.msra.mxu0 0
  %3608 = vmatprep.subr.bf16.mxu0 0
  %3609 = vmatpush1.bf16.xpose.msra.mxu0 0
  %3610 = vmatprep.mubr.bf16.mxu0 0
  %3611 = vmatmul.mubr.bf16.gmra.mrb[0].mxu0 %v3573
  %v3612 = vpop.f32.mrb[0].mxu0
  %v3613 = vadd.f32 0.0, %v3612
  %v3614 = vpop.f32.mrb[0].mxu0
  %v3615 = vpop.f32.mrb[0].mxu0
  %v3616 = vadd.f32 0.0, %v3615
  %v3617 = vpop.f32.mrb[0].mxu0
  %3618 = vdwg.mxu0
  %3620 = vrot.lane.b32.xlu0 %v3495, 32
  %v3621 = vpop.permute.xlu0 %3620
  %v3623 = vsel %vm880, %v3470, 0
  %v3626 = vsel %vm880, %v3621, 0
  %3628 = vmatprep.subr.bf16.mxu0 0
  %3629 = vmatpush1.bf16.xpose.msra.mxu0 %v3626
  %3630 = vmatprep.subr.bf16.mxu0 0
  %3631 = vmatpush1.bf16.xpose.msra.mxu0 0
  %3632 = vmatprep.subr.bf16.mxu0 0
  %3633 = vmatpush1.bf16.xpose.msra.mxu0 0
  %3634 = vmatprep.subr.bf16.mxu0 0
  %3635 = vmatpush1.bf16.xpose.msra.mxu0 0
  %3636 = vmatprep.subr.bf16.mxu0 0
  %3637 = vmatpush1.bf16.xpose.msra.mxu0 0
  %3638 = vmatprep.subr.bf16.mxu0 0
  %3639 = vmatpush1.bf16.xpose.msra.mxu0 0
  %3640 = vmatprep.subr.bf16.mxu0 0
  %3641 = vmatpush1.bf16.xpose.msra.mxu0 0
  %3642 = vmatprep.subr.bf16.mxu0 0
  %3643 = vmatpush1.bf16.xpose.msra.mxu0 0
  %3644 = vmatprep.subr.bf16.mxu0 0
  %3645 = vmatpush1.bf16.xpose.msra.mxu0 0
  %3646 = vmatprep.subr.bf16.mxu0 0
  %3647 = vmatpush1.bf16.xpose.msra.mxu0 0
  %3648 = vmatprep.subr.bf16.mxu0 0
  %3649 = vmatpush1.bf16.xpose.msra.mxu0 0
  %3650 = vmatprep.subr.bf16.mxu0 0
  %3651 = vmatpush1.bf16.xpose.msra.mxu0 0
  %3652 = vmatprep.subr.bf16.mxu0 0
  %3653 = vmatpush1.bf16.xpose.msra.mxu0 0
  %3654 = vmatprep.subr.bf16.mxu0 0
  %3655 = vmatpush1.bf16.xpose.msra.mxu0 0
  %3656 = vmatprep.subr.bf16.mxu0 0
  %3657 = vmatpush1.bf16.xpose.msra.mxu0 0
  %3658 = vmatprep.subr.bf16.mxu0 0
  %3659 = vmatpush1.bf16.xpose.msra.mxu0 0
  %3660 = vmatprep.mubr.bf16.mxu0 0
  %3661 = vmatmul.mubr.bf16.gmra.mrb[0].mxu0 %v3623
  %v3662 = vpop.f32.mrb[0].mxu0
  %v3663 = vadd.f32 0.0, %v3662
  %v3664 = vpop.f32.mrb[0].mxu0
  %v3665 = vpop.f32.mrb[0].mxu0
  %v3666 = vadd.f32 0.0, %v3665
  %v3667 = vpop.f32.mrb[0].mxu0
  %3668 = vdwg.mxu0
  %3670 = vrot.lane.b32.xlu0 %v3496, 32
  %v3671 = vpop.permute.xlu0 %3670
  %v3673 = vsel %vm880, %v3471, 0
  %v3676 = vsel %vm880, %v3671, 0
  %3678 = vmatprep.subr.bf16.mxu0 0
  %3679 = vmatpush1.bf16.xpose.msra.mxu0 %v3676
  %3680 = vmatprep.subr.bf16.mxu0 0
  %3681 = vmatpush1.bf16.xpose.msra.mxu0 0
  %3682 = vmatprep.subr.bf16.mxu0 0
  %3683 = vmatpush1.bf16.xpose.msra.mxu0 0
  %3684 = vmatprep.subr.bf16.mxu0 0
  %3685 = vmatpush1.bf16.xpose.msra.mxu0 0
  %3686 = vmatprep.subr.bf16.mxu0 0
  %3687 = vmatpush1.bf16.xpose.msra.mxu0 0
  %3688 = vmatprep.subr.bf16.mxu0 0
  %3689 = vmatpush1.bf16.xpose.msra.mxu0 0
  %3690 = vmatprep.subr.bf16.mxu0 0
  %3691 = vmatpush1.bf16.xpose.msra.mxu0 0
  %3692 = vmatprep.subr.bf16.mxu0 0
  %3693 = vmatpush1.bf16.xpose.msra.mxu0 0
  %3694 = vmatprep.subr.bf16.mxu0 0
  %3695 = vmatpush1.bf16.xpose.msra.mxu0 0
  %3696 = vmatprep.subr.bf16.mxu0 0
  %3697 = vmatpush1.bf16.xpose.msra.mxu0 0
  %3698 = vmatprep.subr.bf16.mxu0 0
  %3699 = vmatpush1.bf16.xpose.msra.mxu0 0
  %3700 = vmatprep.subr.bf16.mxu0 0
  %3701 = vmatpush1.bf16.xpose.msra.mxu0 0
  %3702 = vmatprep.subr.bf16.mxu0 0
  %3703 = vmatpush1.bf16.xpose.msra.mxu0 0
  %3704 = vmatprep.subr.bf16.mxu0 0
  %3705 = vmatpush1.bf16.xpose.msra.mxu0 0
  %3706 = vmatprep.subr.bf16.mxu0 0
  %3707 = vmatpush1.bf16.xpose.msra.mxu0 0
  %3708 = vmatprep.subr.bf16.mxu0 0
  %3709 = vmatpush1.bf16.xpose.msra.mxu0 0
  %3710 = vmatprep.mubr.bf16.mxu0 0
  %3711 = vmatmul.mubr.bf16.gmra.mrb[0].mxu0 %v3673
  %v3712 = vpop.f32.mrb[0].mxu0
  %v3713 = vadd.f32 0.0, %v3712
  %v3714 = vpop.f32.mrb[0].mxu0
  %v3715 = vpop.f32.mrb[0].mxu0
  %v3716 = vadd.f32 0.0, %v3715
  %v3717 = vpop.f32.mrb[0].mxu0
  %3718 = vdwg.mxu0
  %v3719 = vmul.f32 %v3563, 0.20412415
  %v3720 = vmul.f32 %v3566, 0.20412415
  %v3721 = vmul.f32 %v3613, 0.20412415
  %v3722 = vmul.f32 %v3616, 0.20412415
  %v3723 = vmul.f32 %v3663, 0.20412415
  %v3724 = vmul.f32 %v3666, 0.20412415
  %v3725 = vmul.f32 %v3713, 0.20412415
  %v3726 = vmul.f32 %v3716, 0.20412415
  %v3727 = vsel %vm192, %v3719, -inf
  %3728 = vmax.xlane.f32.xlu0 %v3727
  %v3729 = vpop.xlane.xlu0 %3728
  %v3730 = vsel %vm192, %v3720, -inf
  %3731 = vmax.xlane.f32.xlu0 %v3730
  %v3732 = vpop.xlane.xlu0 %3731
  %v3733 = vsel %vm192, %v3721, -inf
  %3734 = vmax.xlane.f32.xlu0 %v3733
  %v3735 = vpop.xlane.xlu0 %3734
  %v3736 = vsel %vm192, %v3722, -inf
  %3737 = vmax.xlane.f32.xlu0 %v3736
  %v3738 = vpop.xlane.xlu0 %3737
  %v3739 = vsel %vm192, %v3723, -inf
  %3740 = vmax.xlane.f32.xlu0 %v3739
  %v3741 = vpop.xlane.xlu0 %3740
  %v3742 = vsel %vm192, %v3724, -inf
  %3743 = vmax.xlane.f32.xlu0 %v3742
  %v3744 = vpop.xlane.xlu0 %3743
  %v3745 = vsel %vm192, %v3725, -inf
  %3746 = vmax.xlane.f32.xlu0 %v3745
  %v3747 = vpop.xlane.xlu0 %3746
  %v3748 = vsel %vm192, %v3726, -inf
  %3749 = vmax.xlane.f32.xlu0 %v3748
  %v3750 = vpop.xlane.xlu0 %3749
  %v3751 = vsub.f32 %v3719, %v3729
  %v3752 = vsub.f32 %v3720, %v3732
  %v3753 = vsub.f32 %v3721, %v3735
  %v3754 = vsub.f32 %v3722, %v3738
  %v3755 = vsub.f32 %v3723, %v3741
  %v3756 = vsub.f32 %v3724, %v3744
  %v3757 = vsub.f32 %v3725, %v3747
  %v3758 = vsub.f32 %v3726, %v3750
  %v3759 = vmul.f32 %v3751, 1.442695
  %v3760 = vpow.pop %v3759
  %v3761 = vmul.f32 %v3752, 1.442695
  %v3762 = vpow.pop %v3761
  %v3763 = vmul.f32 %v3753, 1.442695
  %v3764 = vpow.pop %v3763
  %v3765 = vmul.f32 %v3754, 1.442695
  %v3766 = vpow.pop %v3765
  %v3767 = vmul.f32 %v3755, 1.442695
  %v3768 = vpow.pop %v3767
  %v3769 = vmul.f32 %v3756, 1.442695
  %v3770 = vpow.pop %v3769
  %v3771 = vmul.f32 %v3757, 1.442695
  %v3772 = vpow.pop %v3771
  %v3773 = vmul.f32 %v3758, 1.442695
  %v3774 = vpow.pop %v3773
  %v3775 = vsel %vm192, %v3760, 0.0
  %3776 = vadd.xlane.f32.xlu0 %v3775
  %v3777 = vpop.xlane.xlu0 %3776
  %v3778 = vsel %vm192, %v3762, 0.0
  %3779 = vadd.xlane.f32.xlu0 %v3778
  %v3780 = vpop.xlane.xlu0 %3779
  %v3781 = vsel %vm192, %v3764, 0.0
  %3782 = vadd.xlane.f32.xlu0 %v3781
  %v3783 = vpop.xlane.xlu0 %3782
  %v3784 = vsel %vm192, %v3766, 0.0
  %3785 = vadd.xlane.f32.xlu0 %v3784
  %v3786 = vpop.xlane.xlu0 %3785
  %v3787 = vsel %vm192, %v3768, 0.0
  %3788 = vadd.xlane.f32.xlu0 %v3787
  %v3789 = vpop.xlane.xlu0 %3788
  %v3790 = vsel %vm192, %v3770, 0.0
  %3791 = vadd.xlane.f32.xlu0 %v3790
  %v3792 = vpop.xlane.xlu0 %3791
  %v3793 = vsel %vm192, %v3772, 0.0
  %3794 = vadd.xlane.f32.xlu0 %v3793
  %v3795 = vpop.xlane.xlu0 %3794
  %v3796 = vsel %vm192, %v3774, 0.0
  %3797 = vadd.xlane.f32.xlu0 %v3796
  %v3798 = vpop.xlane.xlu0 %3797
  %v3799 = vrcp.pop %v3777
  %v3800 = vrcp.pop %v3780
  %v3801 = vrcp.pop %v3783
  %v3802 = vrcp.pop %v3786
  %v3803 = vrcp.pop %v3789
  %v3804 = vrcp.pop %v3792
  %v3805 = vrcp.pop %v3795
  %v3806 = vrcp.pop %v3798
  %v3807 = vmul.f32 %v3760, %v3799
  %v3808 = vmul.f32 %v3762, %v3800
  %v3809 = vmul.f32 %v3764, %v3801
  %v3810 = vmul.f32 %v3766, %v3802
  %v3811 = vmul.f32 %v3768, %v3803
  %v3812 = vmul.f32 %v3770, %v3804
  %v3813 = vmul.f32 %v3772, %v3805
  %v3814 = vmul.f32 %v3774, %v3806
  %v3815 = vpack.c.bf16 %v3808, %v3807
  %v3816 = vpack.c.bf16 %v3810, %v3809
  %v3817 = vpack.c.bf16 %v3812, %v3811
  %v3818 = vpack.c.bf16 %v3814, %v3813
  %3820 = vrot.lane.b32.xlu0 %v3515, 64
  %v3821 = vpop.permute.xlu0 %3820
  %v3824 = vsel %vm192, %v3815, 0
  %3826 = vmatprep.subr.bf16.mxu0 0
  %3827 = vmatpush1.bf16.msra.mxu0 %v3821
  %3828 = vmatprep.subr.bf16.mxu0 0
  %3829 = vmatpush1.bf16.msra.mxu0 0
  %3830 = vmatprep.subr.bf16.mxu0 0
  %3831 = vmatpush1.bf16.msra.mxu0 0
  %3832 = vmatprep.subr.bf16.mxu0 0
  %3833 = vmatpush1.bf16.msra.mxu0 0
  %3834 = vmatprep.subr.bf16.mxu0 0
  %3835 = vmatpush1.bf16.msra.mxu0 0
  %3836 = vmatprep.subr.bf16.mxu0 0
  %3837 = vmatpush1.bf16.msra.mxu0 0
  %3838 = vmatprep.subr.bf16.mxu0 0
  %3839 = vmatpush1.bf16.msra.mxu0 0
  %3840 = vmatprep.subr.bf16.mxu0 0
  %3841 = vmatpush1.bf16.msra.mxu0 0
  %3842 = vmatprep.subr.bf16.mxu0 0
  %3843 = vmatpush1.bf16.msra.mxu0 0
  %3844 = vmatprep.subr.bf16.mxu0 0
  %3845 = vmatpush1.bf16.msra.mxu0 0
  %3846 = vmatprep.subr.bf16.mxu0 0
  %3847 = vmatpush1.bf16.msra.mxu0 0
  %3848 = vmatprep.subr.bf16.mxu0 0
  %3849 = vmatpush1.bf16.msra.mxu0 0
  %3850 = vmatprep.subr.bf16.mxu0 0
  %3851 = vmatpush1.bf16.msra.mxu0 0
  %3852 = vmatprep.subr.bf16.mxu0 0
  %3853 = vmatpush1.bf16.msra.mxu0 0
  %3854 = vmatprep.subr.bf16.mxu0 0
  %3855 = vmatpush1.bf16.msra.mxu0 0
  %3856 = vmatprep.subr.bf16.mxu0 0
  %3857 = vmatpush1.bf16.msra.mxu0 0
  %3858 = vmatprep.mubr.bf16.mxu0 0
  %3859 = vmatmul.mubr.bf16.gmra.mrb[0].mxu0 %v3824
  %v3860 = vpop.f32.mrb[0].mxu0
  %v3861 = vadd.f32 0.0, %v3860
  %v3862 = vpop.f32.mrb[0].mxu0
  %v3863 = vpop.f32.mrb[0].mxu0
  %v3864 = vadd.f32 0.0, %v3863
  %v3865 = vpop.f32.mrb[0].mxu0
  %3866 = vdwg.mxu0
  %3868 = vrot.lane.b32.xlu0 %v3516, 64
  %v3869 = vpop.permute.xlu0 %3868
  %v3872 = vsel %vm192, %v3816, 0
  %3874 = vmatprep.subr.bf16.mxu0 0
  %3875 = vmatpush1.bf16.msra.mxu0 %v3869
  %3876 = vmatprep.subr.bf16.mxu0 0
  %3877 = vmatpush1.bf16.msra.mxu0 0
  %3878 = vmatprep.subr.bf16.mxu0 0
  %3879 = vmatpush1.bf16.msra.mxu0 0
  %3880 = vmatprep.subr.bf16.mxu0 0
  %3881 = vmatpush1.bf16.msra.mxu0 0
  %3882 = vmatprep.subr.bf16.mxu0 0
  %3883 = vmatpush1.bf16.msra.mxu0 0
  %3884 = vmatprep.subr.bf16.mxu0 0
  %3885 = vmatpush1.bf16.msra.mxu0 0
  %3886 = vmatprep.subr.bf16.mxu0 0
  %3887 = vmatpush1.bf16.msra.mxu0 0
  %3888 = vmatprep.subr.bf16.mxu0 0
  %3889 = vmatpush1.bf16.msra.mxu0 0
  %3890 = vmatprep.subr.bf16.mxu0 0
  %3891 = vmatpush1.bf16.msra.mxu0 0
  %3892 = vmatprep.subr.bf16.mxu0 0
  %3893 = vmatpush1.bf16.msra.mxu0 0
  %3894 = vmatprep.subr.bf16.mxu0 0
  %3895 = vmatpush1.bf16.msra.mxu0 0
  %3896 = vmatprep.subr.bf16.mxu0 0
  %3897 = vmatpush1.bf16.msra.mxu0 0
  %3898 = vmatprep.subr.bf16.mxu0 0
  %3899 = vmatpush1.bf16.msra.mxu0 0
  %3900 = vmatprep.subr.bf16.mxu0 0
  %3901 = vmatpush1.bf16.msra.mxu0 0
  %3902 = vmatprep.subr.bf16.mxu0 0
  %3903 = vmatpush1.bf16.msra.mxu0 0
  %3904 = vmatprep.subr.bf16.mxu0 0
  %3905 = vmatpush1.bf16.msra.mxu0 0
  %3906 = vmatprep.mubr.bf16.mxu0 0
  %3907 = vmatmul.mubr.bf16.gmra.mrb[0].mxu0 %v3872
  %v3908 = vpop.f32.mrb[0].mxu0
  %v3909 = vadd.f32 0.0, %v3908
  %v3910 = vpop.f32.mrb[0].mxu0
  %v3911 = vpop.f32.mrb[0].mxu0
  %v3912 = vadd.f32 0.0, %v3911
  %v3913 = vpop.f32.mrb[0].mxu0
  %3914 = vdwg.mxu0
  %3916 = vrot.lane.b32.xlu0 %v3517, 64
  %v3917 = vpop.permute.xlu0 %3916
  %v3920 = vsel %vm192, %v3817, 0
  %3922 = vmatprep.subr.bf16.mxu0 0
  %3923 = vmatpush1.bf16.msra.mxu0 %v3917
  %3924 = vmatprep.subr.bf16.mxu0 0
  %3925 = vmatpush1.bf16.msra.mxu0 0
  %3926 = vmatprep.subr.bf16.mxu0 0
  %3927 = vmatpush1.bf16.msra.mxu0 0
  %3928 = vmatprep.subr.bf16.mxu0 0
  %3929 = vmatpush1.bf16.msra.mxu0 0
  %3930 = vmatprep.subr.bf16.mxu0 0
  %3931 = vmatpush1.bf16.msra.mxu0 0
  %3932 = vmatprep.subr.bf16.mxu0 0
  %3933 = vmatpush1.bf16.msra.mxu0 0
  %3934 = vmatprep.subr.bf16.mxu0 0
  %3935 = vmatpush1.bf16.msra.mxu0 0
  %3936 = vmatprep.subr.bf16.mxu0 0
  %3937 = vmatpush1.bf16.msra.mxu0 0
  %3938 = vmatprep.subr.bf16.mxu0 0
  %3939 = vmatpush1.bf16.msra.mxu0 0
  %3940 = vmatprep.subr.bf16.mxu0 0
  %3941 = vmatpush1.bf16.msra.mxu0 0
  %3942 = vmatprep.subr.bf16.mxu0 0
  %3943 = vmatpush1.bf16.msra.mxu0 0
  %3944 = vmatprep.subr.bf16.mxu0 0
  %3945 = vmatpush1.bf16.msra.mxu0 0
  %3946 = vmatprep.subr.bf16.mxu0 0
  %3947 = vmatpush1.bf16.msra.mxu0 0
  %3948 = vmatprep.subr.bf16.mxu0 0
  %3949 = vmatpush1.bf16.msra.mxu0 0
  %3950 = vmatprep.subr.bf16.mxu0 0
  %3951 = vmatpush1.bf16.msra.mxu0 0
  %3952 = vmatprep.subr.bf16.mxu0 0
  %3953 = vmatpush1.bf16.msra.mxu0 0
  %3954 = vmatprep.mubr.bf16.mxu0 0
  %3955 = vmatmul.mubr.bf16.gmra.mrb[0].mxu0 %v3920
  %v3956 = vpop.f32.mrb[0].mxu0
  %v3957 = vadd.f32 0.0, %v3956
  %v3958 = vpop.f32.mrb[0].mxu0
  %v3959 = vpop.f32.mrb[0].mxu0
  %v3960 = vadd.f32 0.0, %v3959
  %v3961 = vpop.f32.mrb[0].mxu0
  %3962 = vdwg.mxu0
  %3964 = vrot.lane.b32.xlu0 %v3518, 64
  %v3965 = vpop.permute.xlu0 %3964
  %v3968 = vsel %vm192, %v3818, 0
  %3970 = vmatprep.subr.bf16.mxu0 0
  %3971 = vmatpush1.bf16.msra.mxu0 %v3965
  %3972 = vmatprep.subr.bf16.mxu0 0
  %3973 = vmatpush1.bf16.msra.mxu0 0
  %3974 = vmatprep.subr.bf16.mxu0 0
  %3975 = vmatpush1.bf16.msra.mxu0 0
  %3976 = vmatprep.subr.bf16.mxu0 0
  %3977 = vmatpush1.bf16.msra.mxu0 0
  %3978 = vmatprep.subr.bf16.mxu0 0
  %3979 = vmatpush1.bf16.msra.mxu0 0
  %3980 = vmatprep.subr.bf16.mxu0 0
  %3981 = vmatpush1.bf16.msra.mxu0 0
  %3982 = vmatprep.subr.bf16.mxu0 0
  %3983 = vmatpush1.bf16.msra.mxu0 0
  %3984 = vmatprep.subr.bf16.mxu0 0
  %3985 = vmatpush1.bf16.msra.mxu0 0
  %3986 = vmatprep.subr.bf16.mxu0 0
  %3987 = vmatpush1.bf16.msra.mxu0 0
  %3988 = vmatprep.subr.bf16.mxu0 0
  %3989 = vmatpush1.bf16.msra.mxu0 0
  %3990 = vmatprep.subr.bf16.mxu0 0
  %3991 = vmatpush1.bf16.msra.mxu0 0
  %3992 = vmatprep.subr.bf16.mxu0 0
  %3993 = vmatpush1.bf16.msra.mxu0 0
  %3994 = vmatprep.subr.bf16.mxu0 0
  %3995 = vmatpush1.bf16.msra.mxu0 0
  %3996 = vmatprep.subr.bf16.mxu0 0
  %3997 = vmatpush1.bf16.msra.mxu0 0
  %3998 = vmatprep.subr.bf16.mxu0 0
  %3999 = vmatpush1.bf16.msra.mxu0 0
  %4000 = vmatprep.subr.bf16.mxu0 0
  %4001 = vmatpush1.bf16.msra.mxu0 0
  %4002 = vmatprep.mubr.bf16.mxu0 0
  %4003 = vmatmul.mubr.bf16.gmra.mrb[0].mxu0 %v3968
  %v4004 = vpop.f32.mrb[0].mxu0
  %v4005 = vadd.f32 0.0, %v4004
  %v4006 = vpop.f32.mrb[0].mxu0
  %v4007 = vpop.f32.mrb[0].mxu0
  %v4008 = vadd.f32 0.0, %v4007
  %v4009 = vpop.f32.mrb[0].mxu0
  %4010 = vdwg.mxu0
  %4013 = vrot.lane.b32.xlu0 %v3909, 24
  %v4014 = vpop.permute.xlu0 %4013
  %4015 = vrot.lane.b32.xlu0 %v3912, 24
  %v4016 = vpop.permute.xlu0 %4015
  %4021 = vrot.lane.b32.xlu0 %v3957, 48
  %v4022 = vpop.permute.xlu0 %4021
  %4023 = vrot.lane.b32.xlu0 %v3960, 48
  %v4024 = vpop.permute.xlu0 %4023
  %4029 = vrot.lane.b32.xlu0 %v4005, 72
  %v4030 = vpop.permute.xlu0 %4029
  %4031 = vrot.lane.b32.xlu0 %v4008, 72
  %v4032 = vpop.permute.xlu0 %4031
  %v4035 = vsel %vm880, %v3861, %v4014
  %v4036 = vsel %vm880, %v3864, %v4016
  %v4037 = vsel %vm198, %v4035, %v4022
  %v4038 = vsel %vm198, %v4036, %v4024
  %v4039 = vsel %vm1398, %v4037, %v4030
  %v4040 = vsel %vm1398, %v4038, %v4032
  %v4041 = vpack.c.bf16 %v3447, %v3446
  %v4042 = vpack.c.bf16 %v4040, %v4039
  %v4044 = vlaneseq
  %v4045 = vshrl.u32 %v4044, 7
  %v4046 = vsub.s32 0, %v4045
  %v4047 = vrot.slane %v2632, %v4046
  %v4061 = vunpack.c.l.b16 %v2619
  %v4062 = vunpack.c.l.b16 %v2620
  %v4063 = vunpack.c.l.b16 %v2621
  %v4064 = vunpack.c.l.b16 %v2622
  %v4065 = vunpack.c.l.b16 %v2623
  %v4066 = vunpack.c.l.b16 %v2624
  %v4067 = vunpack.c.l.b16 %v2625
  %v4068 = vunpack.c.l.b16 %v2626
  %v4069 = vunpack.c.l.b16 %v2627
  %v4070 = vunpack.c.l.b16 %v2628
  %v4071 = vunpack.c.l.b16 %v2629
  %v4072 = vunpack.c.l.b16 %v2630
  %v4073 = vpack.c.b16 %v4062, %v4061
  %v4074 = vpack.c.b16 %v4064, %v4063
  %v4075 = vpack.c.b16 %v4066, %v4065
  %v4076 = vpack.c.b16 %v4068, %v4067
  %v4077 = vpack.c.b16 %v4070, %v4069
  %v4078 = vpack.c.b16 %v4072, %v4071
  %v4086 = vsel %vm207, %v4041, 0
  %v4089 = vsel %vm207, %v4042, 0
  %4091 = vmatprep.subr.bf16.mxu0 0
  %4092 = vmatpush1.bf16.msra.mxu0 %v4073
  %4093 = vmatprep.subr.bf16.mxu0 0
  %4094 = vmatpush1.bf16.msra.mxu0 %v4074
  %4095 = vmatprep.subr.bf16.mxu0 0
  %4096 = vmatpush1.bf16.msra.mxu0 %v4075
  %4097 = vmatprep.subr.bf16.mxu0 0
  %4098 = vmatpush1.bf16.msra.mxu0 %v4076
  %4099 = vmatprep.subr.bf16.mxu0 0
  %4100 = vmatpush1.bf16.msra.mxu0 %v4077
  %4101 = vmatprep.subr.bf16.mxu0 0
  %4102 = vmatpush1.bf16.msra.mxu0 %v4078
  %4103 = vmatprep.subr.bf16.mxu0 0
  %4104 = vmatpush1.bf16.msra.mxu0 0
  %4105 = vmatprep.subr.bf16.mxu0 0
  %4106 = vmatpush1.bf16.msra.mxu0 0
  %4107 = vmatprep.subr.bf16.mxu0 0
  %4108 = vmatpush1.bf16.msra.mxu0 0
  %4109 = vmatprep.subr.bf16.mxu0 0
  %4110 = vmatpush1.bf16.msra.mxu0 0
  %4111 = vmatprep.subr.bf16.mxu0 0
  %4112 = vmatpush1.bf16.msra.mxu0 0
  %4113 = vmatprep.subr.bf16.mxu0 0
  %4114 = vmatpush1.bf16.msra.mxu0 0
  %4115 = vmatprep.subr.bf16.mxu0 0
  %4116 = vmatpush1.bf16.msra.mxu0 0
  %4117 = vmatprep.subr.bf16.mxu0 0
  %4118 = vmatpush1.bf16.msra.mxu0 0
  %4119 = vmatprep.subr.bf16.mxu0 0
  %4120 = vmatpush1.bf16.msra.mxu0 0
  %4121 = vmatprep.subr.bf16.mxu0 0
  %4122 = vmatpush1.bf16.msra.mxu0 0
  %4123 = vmatprep.mubr.bf16.mxu0 0
  %4124 = vmatmul.mubr.bf16.gmra.mrb[0].mxu0 %v4086
  %v4125 = vpop.f32.mrb[0].mxu0
  %v4126 = vadd.f32 %v4047, %v4125
  %v4127 = vpop.f32.mrb[0].mxu0
  %v4128 = vpop.f32.mrb[0].mxu0
  %v4129 = vadd.f32 %v4047, %v4128
  %v4130 = vpop.f32.mrb[0].mxu0
  %4131 = vmatprep.mubr.bf16.mxu0 0
  %4132 = vmatmul.mubr.bf16.gmra.mrb[0].mxu0 %v4089
  %v4133 = vpop.f32.mrb[0].mxu0
  %v4134 = vadd.f32 %v4047, %v4133
  %v4135 = vpop.f32.mrb[0].mxu0
  %v4136 = vpop.f32.mrb[0].mxu0
  %v4137 = vadd.f32 %v4047, %v4136
  %v4138 = vpop.f32.mrb[0].mxu0
  %4139 = vdwg.mxu0
  %v4140 = vadd.f32 %v2587, %v4126
  %v4141 = vadd.f32 %v2588, %v4129
  %v4142 = vadd.f32 %v2589, %v4134
  %v4143 = vadd.f32 %v2590, %v4137
  %s4144 = scalar_lea.vmem %s7, 1
  %v4145 = vld [vmem:[%s4144] sm:$0x1]
  %s4146 = scalar_lea.vmem %s8, 1
  %v4147 = vld [vmem:[%s4146] sm:$0x1]
  %v4148 = vsel %vm207, %v4140, 0.0
  %4149 = vadd.xlane.f32.xlu0 %v4148
  %v4150 = vpop.xlane.xlu0 %4149
  %v4151 = vsel %vm207, %v4141, 0.0
  %4152 = vadd.xlane.f32.xlu0 %v4151
  %v4153 = vpop.xlane.xlu0 %4152
  %v4154 = vsel %vm207, %v4142, 0.0
  %4155 = vadd.xlane.f32.xlu0 %v4154
  %v4156 = vpop.xlane.xlu0 %4155
  %v4157 = vsel %vm207, %v4143, 0.0
  %4158 = vadd.xlane.f32.xlu0 %v4157
  %v4159 = vpop.xlane.xlu0 %4158
  %v4160 = vmul.f32 %v4150, %v2111
  %v4161 = vmul.f32 %v4153, %v2111
  %v4162 = vmul.f32 %v4156, %v2111
  %v4163 = vmul.f32 %v4159, %v2111
  %v4164 = vsub.f32 %v4140, %v4160
  %v4165 = vsub.f32 %v4141, %v4161
  %v4166 = vsub.f32 %v4142, %v4162
  %v4167 = vsub.f32 %v4143, %v4163
  %v4168 = vmul.f32 %v4164, %v4164
  %v4169 = vmul.f32 %v4165, %v4165
  %v4170 = vmul.f32 %v4166, %v4166
  %v4171 = vmul.f32 %v4167, %v4167
  %v4172 = vsel %vm207, %v4168, 0.0
  %4173 = vadd.xlane.f32.xlu0 %v4172
  %v4174 = vpop.xlane.xlu0 %4173
  %v4175 = vsel %vm207, %v4169, 0.0
  %4176 = vadd.xlane.f32.xlu0 %v4175
  %v4177 = vpop.xlane.xlu0 %4176
  %v4178 = vsel %vm207, %v4170, 0.0
  %4179 = vadd.xlane.f32.xlu0 %v4178
  %v4180 = vpop.xlane.xlu0 %4179
  %v4181 = vsel %vm207, %v4171, 0.0
  %4182 = vadd.xlane.f32.xlu0 %v4181
  %v4183 = vpop.xlane.xlu0 %4182
  %v4184 = vmul.f32 %v4174, %v2111
  %v4185 = vmul.f32 %v4177, %v2111
  %v4186 = vmul.f32 %v4180, %v2111
  %v4187 = vmul.f32 %v4183, %v2111
  %v4188 = vadd.f32 %v4184, 1e-05
  %v4189 = vadd.f32 %v4185, 1e-05
  %v4190 = vadd.f32 %v4186, 1e-05
  %v4191 = vadd.f32 %v4187, 1e-05
  %v4192 = vrsqrt.pop %v4188
  %v4193 = vrsqrt.pop %v4189
  %v4194 = vrsqrt.pop %v4190
  %v4195 = vrsqrt.pop %v4191
  %v4196 = vmul.f32 %v4164, %v4192
  %v4197 = vmul.f32 %v4165, %v4193
  %v4198 = vmul.f32 %v4166, %v4194
  %v4199 = vmul.f32 %v4167, %v4195
  %v4201 = vlaneseq
  %v4202 = vshrl.u32 %v4201, 7
  %v4203 = vsub.s32 0, %v4202
  %v4204 = vrot.slane %v4145, %v4203
  %v4206 = vmul.f32 %v4196, %v4204
  %v4207 = vmul.f32 %v4197, %v4204
  %v4208 = vmul.f32 %v4198, %v4204
  %v4209 = vmul.f32 %v4199, %v4204
  %v4211 = vlaneseq
  %v4212 = vshrl.u32 %v4211, 7
  %v4213 = vsub.s32 0, %v4212
  %v4214 = vrot.slane %v4147, %v4213
  %v4216 = vadd.f32 %v4206, %v4214
  %v4217 = vadd.f32 %v4207, %v4214
  %v4218 = vadd.f32 %v4208, %v4214
  %v4219 = vadd.f32 %v4209, %v4214
  %v4220 = vpack.c.bf16 %v4217, %v4216
  %v4221 = vpack.c.bf16 %v4219, %v4218
  %s4222 = scalar_lea.vmem %s9, 96
  %v4223 = vld [vmem:[%s4222] sm:$0xff]
  %v4224 = vld [vmem:[%s4222 + $0x8] sm:$0xff]
  %v4225 = vld [vmem:[%s4222 + $0x10] sm:$0xff]
  %v4226 = vld [vmem:[%s4222 + $0x18] sm:$0xff]
  %v4227 = vld [vmem:[%s4222 + $0x20] sm:$0xff]
  %v4228 = vld [vmem:[%s4222 + $0x28] sm:$0xff]
  %v4229 = vld [vmem:[%s4222 + $0x30] sm:$0xff]
  %v4230 = vld [vmem:[%s4222 + $0x38] sm:$0xff]
  %v4231 = vld [vmem:[%s4222 + $0x40] sm:$0xff]
  %v4232 = vld [vmem:[%s4222 + $0x48] sm:$0xff]
  %v4233 = vld [vmem:[%s4222 + $0x50] sm:$0xff]
  %v4234 = vld [vmem:[%s4222 + $0x58] sm:$0xff]
  %s4235 = scalar_lea.vmem %s10, 2
  %v4236 = vld [vmem:[%s4235] sm:$0x3]
  %v4238 = vlaneseq
  %v4239 = vshrl.u32 %v4238, 7
  %v4240 = vsub.s32 0, %v4239
  %v4241 = vrot.slane %v4236, %v4240
  %v4242 = vlaneseq
  %v4243 = vshrl.u32 %v4242, 7
  %v4244 = vsub.s32 1, %v4243
  %v4245 = vrot.slane %v4236, %v4244
  %v4260 = vunpack.c.l.b16 %v4223
  %v4261 = vunpack.c.h.b16 %v4223
  %v4262 = vunpack.c.l.b16 %v4224
  %v4263 = vunpack.c.h.b16 %v4224
  %v4264 = vunpack.c.l.b16 %v4225
  %v4265 = vunpack.c.h.b16 %v4225
  %v4266 = vunpack.c.l.b16 %v4226
  %v4267 = vunpack.c.h.b16 %v4226
  %v4268 = vunpack.c.l.b16 %v4227
  %v4269 = vunpack.c.h.b16 %v4227
  %v4270 = vunpack.c.l.b16 %v4228
  %v4271 = vunpack.c.h.b16 %v4228
  %v4272 = vunpack.c.l.b16 %v4229
  %v4273 = vunpack.c.h.b16 %v4229
  %v4274 = vunpack.c.l.b16 %v4230
  %v4275 = vunpack.c.h.b16 %v4230
  %v4276 = vunpack.c.l.b16 %v4231
  %v4277 = vunpack.c.h.b16 %v4231
  %v4278 = vunpack.c.l.b16 %v4232
  %v4279 = vunpack.c.h.b16 %v4232
  %v4280 = vunpack.c.l.b16 %v4233
  %v4281 = vunpack.c.h.b16 %v4233
  %v4282 = vunpack.c.l.b16 %v4234
  %v4283 = vunpack.c.h.b16 %v4234
  %v4284 = vpack.c.b16 %v4262, %v4260
  %v4285 = vpack.c.b16 %v4263, %v4261
  %v4286 = vpack.c.b16 %v4266, %v4264
  %v4287 = vpack.c.b16 %v4267, %v4265
  %v4288 = vpack.c.b16 %v4270, %v4268
  %v4289 = vpack.c.b16 %v4271, %v4269
  %v4290 = vpack.c.b16 %v4274, %v4272
  %v4291 = vpack.c.b16 %v4275, %v4273
  %v4292 = vpack.c.b16 %v4278, %v4276
  %v4293 = vpack.c.b16 %v4279, %v4277
  %v4294 = vpack.c.b16 %v4282, %v4280
  %v4295 = vpack.c.b16 %v4283, %v4281
  %v4309 = vsel %vm207, %v4220, 0
  %v4312 = vsel %vm207, %v4221, 0
  %4314 = vmatprep.subr.bf16.mxu0 %v4285
  %4315 = vmatpush1.bf16.msra.mxu0 %v4284
  %4316 = vmatprep.subr.bf16.mxu0 %v4287
  %4317 = vmatpush1.bf16.msra.mxu0 %v4286
  %4318 = vmatprep.subr.bf16.mxu0 %v4289
  %4319 = vmatpush1.bf16.msra.mxu0 %v4288
  %4320 = vmatprep.subr.bf16.mxu0 %v4291
  %4321 = vmatpush1.bf16.msra.mxu0 %v4290
  %4322 = vmatprep.subr.bf16.mxu0 %v4293
  %4323 = vmatpush1.bf16.msra.mxu0 %v4292
  %4324 = vmatprep.subr.bf16.mxu0 %v4295
  %4325 = vmatpush1.bf16.msra.mxu0 %v4294
  %4326 = vmatprep.subr.bf16.mxu0 0
  %4327 = vmatpush1.bf16.msra.mxu0 0
  %4328 = vmatprep.subr.bf16.mxu0 0
  %4329 = vmatpush1.bf16.msra.mxu0 0
  %4330 = vmatprep.subr.bf16.mxu0 0
  %4331 = vmatpush1.bf16.msra.mxu0 0
  %4332 = vmatprep.subr.bf16.mxu0 0
  %4333 = vmatpush1.bf16.msra.mxu0 0
  %4334 = vmatprep.subr.bf16.mxu0 0
  %4335 = vmatpush1.bf16.msra.mxu0 0
  %4336 = vmatprep.subr.bf16.mxu0 0
  %4337 = vmatpush1.bf16.msra.mxu0 0
  %4338 = vmatprep.subr.bf16.mxu0 0
  %4339 = vmatpush1.bf16.msra.mxu0 0
  %4340 = vmatprep.subr.bf16.mxu0 0
  %4341 = vmatpush1.bf16.msra.mxu0 0
  %4342 = vmatprep.subr.bf16.mxu0 0
  %4343 = vmatpush1.bf16.msra.mxu0 0
  %4344 = vmatprep.subr.bf16.mxu0 0
  %4345 = vmatpush1.bf16.msra.mxu0 0
  %4346 = vmatprep.mubr.bf16.mxu0 0
  %4347 = vmatmul.mubr.bf16.gmra.mrb[0].mxu0 %v4309
  %v4348 = vpop.f32.mrb[0].mxu0
  %v4349 = vadd.f32 %v4241, %v4348
  %v4350 = vpop.f32.mrb[0].mxu0
  %v4351 = vadd.f32 %v4245, %v4350
  %v4352 = vpop.f32.mrb[0].mxu0
  %v4353 = vadd.f32 %v4241, %v4352
  %v4354 = vpop.f32.mrb[0].mxu0
  %v4355 = vadd.f32 %v4245, %v4354
  %4356 = vmatprep.mubr.bf16.mxu0 0
  %4357 = vmatmul.mubr.bf16.gmra.mrb[0].mxu0 %v4312
  %v4358 = vpop.f32.mrb[0].mxu0
  %v4359 = vadd.f32 %v4241, %v4358
  %v4360 = vpop.f32.mrb[0].mxu0
  %v4361 = vadd.f32 %v4245, %v4360
  %v4362 = vpop.f32.mrb[0].mxu0
  %v4363 = vadd.f32 %v4241, %v4362
  %v4364 = vpop.f32.mrb[0].mxu0
  %v4365 = vadd.f32 %v4245, %v4364
  %4366 = vdwg.mxu0
  %v4367 = vmax.f32 %v4349, 0.0
  %v4368 = vmax.f32 %v4351, 0.0
  %v4369 = vmax.f32 %v4353, 0.0
  %v4370 = vmax.f32 %v4355, 0.0
  %v4371 = vmax.f32 %v4359, 0.0
  %v4372 = vmax.f32 %v4361, 0.0
  %v4373 = vmax.f32 %v4363, 0.0
  %v4374 = vmax.f32 %v4365, 0.0
  %v4375 = vpack.c.bf16 %v4369, %v4367
  %v4376 = vpack.c.bf16 %v4370, %v4368
  %v4377 = vpack.c.bf16 %v4373, %v4371
  %v4378 = vpack.c.bf16 %v4374, %v4372
  %s4379 = scalar_lea.vmem %s11, 128
  %v4380 = vld [vmem:[%s4379] sm:$0xf]
  %v4381 = vld [vmem:[%s4379 + $0x4] sm:$0xf]
  %v4382 = vld [vmem:[%s4379 + $0x8] sm:$0xf]
  %v4383 = vld [vmem:[%s4379 + $0xc] sm:$0xf]
  %v4384 = vld [vmem:[%s4379 + $0x10] sm:$0xf]
  %v4385 = vld [vmem:[%s4379 + $0x14] sm:$0xf]
  %v4386 = vld [vmem:[%s4379 + $0x18] sm:$0xf]
  %v4387 = vld [vmem:[%s4379 + $0x1c] sm:$0xf]
  %v4388 = vld [vmem:[%s4379 + $0x20] sm:$0xf]
  %v4389 = vld [vmem:[%s4379 + $0x24] sm:$0xf]
  %v4390 = vld [vmem:[%s4379 + $0x28] sm:$0xf]
  %v4391 = vld [vmem:[%s4379 + $0x2c] sm:$0xf]
  %v4392 = vld [vmem:[%s4379 + $0x30] sm:$0xf]
  %v4393 = vld [vmem:[%s4379 + $0x34] sm:$0xf]
  %v4394 = vld [vmem:[%s4379 + $0x38] sm:$0xf]
  %v4395 = vld [vmem:[%s4379 + $0x3c] sm:$0xf]
  %v4396 = vld [vmem:[%s4379 + $0x40] sm:$0xf]
  %v4397 = vld [vmem:[%s4379 + $0x44] sm:$0xf]
  %v4398 = vld [vmem:[%s4379 + $0x48] sm:$0xf]
  %v4399 = vld [vmem:[%s4379 + $0x4c] sm:$0xf]
  %v4400 = vld [vmem:[%s4379 + $0x50] sm:$0xf]
  %v4401 = vld [vmem:[%s4379 + $0x54] sm:$0xf]
  %v4402 = vld [vmem:[%s4379 + $0x58] sm:$0xf]
  %v4403 = vld [vmem:[%s4379 + $0x5c] sm:$0xf]
  %v4404 = vld [vmem:[%s4379 + $0x60] sm:$0xf]
  %v4405 = vld [vmem:[%s4379 + $0x64] sm:$0xf]
  %v4406 = vld [vmem:[%s4379 + $0x68] sm:$0xf]
  %v4407 = vld [vmem:[%s4379 + $0x6c] sm:$0xf]
  %v4408 = vld [vmem:[%s4379 + $0x70] sm:$0xf]
  %v4409 = vld [vmem:[%s4379 + $0x74] sm:$0xf]
  %v4410 = vld [vmem:[%s4379 + $0x78] sm:$0xf]
  %v4411 = vld [vmem:[%s4379 + $0x7c] sm:$0xf]
  %s4412 = scalar_lea.vmem %s12, 1
  %v4413 = vld [vmem:[%s4412] sm:$0x1]
  %v4415 = vlaneseq
  %v4416 = vshrl.u32 %v4415, 7
  %v4417 = vsub.s32 0, %v4416
  %v4418 = vrot.slane %v4413, %v4417
  %v4452 = vunpack.c.l.b16 %v4380
  %v4453 = vunpack.c.l.b16 %v4381
  %v4454 = vunpack.c.l.b16 %v4382
  %v4455 = vunpack.c.l.b16 %v4383
  %v4456 = vunpack.c.l.b16 %v4384
  %v4457 = vunpack.c.l.b16 %v4385
  %v4458 = vunpack.c.l.b16 %v4386
  %v4459 = vunpack.c.l.b16 %v4387
  %v4460 = vunpack.c.l.b16 %v4388
  %v4461 = vunpack.c.l.b16 %v4389
  %v4462 = vunpack.c.l.b16 %v4390
  %v4463 = vunpack.c.l.b16 %v4391
  %v4464 = vunpack.c.l.b16 %v4392
  %v4465 = vunpack.c.l.b16 %v4393
  %v4466 = vunpack.c.l.b16 %v4394
  %v4467 = vunpack.c.l.b16 %v4395
  %v4468 = vunpack.c.l.b16 %v4396
  %v4469 = vunpack.c.l.b16 %v4397
  %v4470 = vunpack.c.l.b16 %v4398
  %v4471 = vunpack.c.l.b16 %v4399
  %v4472 = vunpack.c.l.b16 %v4400
  %v4473 = vunpack.c.l.b16 %v4401
  %v4474 = vunpack.c.l.b16 %v4402
  %v4475 = vunpack.c.l.b16 %v4403
  %v4476 = vunpack.c.l.b16 %v4404
  %v4477 = vunpack.c.l.b16 %v4405
  %v4478 = vunpack.c.l.b16 %v4406
  %v4479 = vunpack.c.l.b16 %v4407
  %v4480 = vunpack.c.l.b16 %v4408
  %v4481 = vunpack.c.l.b16 %v4409
  %v4482 = vunpack.c.l.b16 %v4410
  %v4483 = vunpack.c.l.b16 %v4411
  %v4484 = vpack.c.b16 %v4453, %v4452
  %v4485 = vpack.c.b16 %v4455, %v4454
  %v4486 = vpack.c.b16 %v4457, %v4456
  %v4487 = vpack.c.b16 %v4459, %v4458
  %v4488 = vpack.c.b16 %v4461, %v4460
  %v4489 = vpack.c.b16 %v4463, %v4462
  %v4490 = vpack.c.b16 %v4465, %v4464
  %v4491 = vpack.c.b16 %v4467, %v4466
  %v4492 = vpack.c.b16 %v4469, %v4468
  %v4493 = vpack.c.b16 %v4471, %v4470
  %v4494 = vpack.c.b16 %v4473, %v4472
  %v4495 = vpack.c.b16 %v4475, %v4474
  %v4496 = vpack.c.b16 %v4477, %v4476
  %v4497 = vpack.c.b16 %v4479, %v4478
  %v4498 = vpack.c.b16 %v4481, %v4480
  %v4499 = vpack.c.b16 %v4483, %v4482
  %4516 = vmatprep.subr.bf16.mxu0 0
  %4517 = vmatpush1.bf16.msra.mxu0 %v4484
  %4518 = vmatprep.subr.bf16.mxu0 0
  %4519 = vmatpush1.bf16.msra.mxu0 %v4485
  %4520 = vmatprep.subr.bf16.mxu0 0
  %4521 = vmatpush1.bf16.msra.mxu0 %v4486
  %4522 = vmatprep.subr.bf16.mxu0 0
  %4523 = vmatpush1.bf16.msra.mxu0 %v4487
  %4524 = vmatprep.subr.bf16.mxu0 0
  %4525 = vmatpush1.bf16.msra.mxu0 %v4488
  %4526 = vmatprep.subr.bf16.mxu0 0
  %4527 = vmatpush1.bf16.msra.mxu0 %v4489
  %4528 = vmatprep.subr.bf16.mxu0 0
  %4529 = vmatpush1.bf16.msra.mxu0 %v4490
  %4530 = vmatprep.subr.bf16.mxu0 0
  %4531 = vmatpush1.bf16.msra.mxu0 %v4491
  %4532 = vmatprep.subr.bf16.mxu0 0
  %4533 = vmatpush1.bf16.msra.mxu0 %v4492
  %4534 = vmatprep.subr.bf16.mxu0 0
  %4535 = vmatpush1.bf16.msra.mxu0 %v4493
  %4536 = vmatprep.subr.bf16.mxu0 0
  %4537 = vmatpush1.bf16.msra.mxu0 %v4494
  %4538 = vmatprep.subr.bf16.mxu0 0
  %4539 = vmatpush1.bf16.msra.mxu0 %v4495
  %4540 = vmatprep.subr.bf16.mxu0 0
  %4541 = vmatpush1.bf16.msra.mxu0 %v4496
  %4542 = vmatprep.subr.bf16.mxu0 0
  %4543 = vmatpush1.bf16.msra.mxu0 %v4497
  %4544 = vmatprep.subr.bf16.mxu0 0
  %4545 = vmatpush1.bf16.msra.mxu0 %v4498
  %4546 = vmatprep.subr.bf16.mxu0 0
  %4547 = vmatpush1.bf16.msra.mxu0 %v4499
  %4548 = vmatprep.mubr.bf16.mxu0 %v4376
  %4549 = vmatmul.mubr.bf16.gmra.mrb[0].mxu0 %v4375
  %v4550 = vpop.f32.mrb[0].mxu0
  %v4551 = vadd.f32 %v4418, %v4550
  %v4552 = vpop.f32.mrb[0].mxu0
  %v4553 = vpop.f32.mrb[0].mxu0
  %v4554 = vadd.f32 %v4418, %v4553
  %v4555 = vpop.f32.mrb[0].mxu0
  %4556 = vmatprep.mubr.bf16.mxu0 %v4378
  %4557 = vmatmul.mubr.bf16.gmra.mrb[0].mxu0 %v4377
  %v4558 = vpop.f32.mrb[0].mxu0
  %v4559 = vadd.f32 %v4418, %v4558
  %v4560 = vpop.f32.mrb[0].mxu0
  %v4561 = vpop.f32.mrb[0].mxu0
  %v4562 = vadd.f32 %v4418, %v4561
  %v4563 = vpop.f32.mrb[0].mxu0
  %4564 = vdwg.mxu0
  %v4565 = vadd.f32 %v4216, %v4551
  %v4566 = vadd.f32 %v4217, %v4554
  %v4567 = vadd.f32 %v4218, %v4559
  %v4568 = vadd.f32 %v4219, %v4562
  %s4569 = scalar_lea.vmem %s13, 1
  %v4570 = vld [vmem:[%s4569] sm:$0x1]
  %s4571 = scalar_lea.vmem %s14, 1
  %v4572 = vld [vmem:[%s4571] sm:$0x1]
  %v4573 = vsel %vm207, %v4565, 0.0
  %4574 = vadd.xlane.f32.xlu0 %v4573
  %v4575 = vpop.xlane.xlu0 %4574
  %v4576 = vsel %vm207, %v4566, 0.0
  %4577 = vadd.xlane.f32.xlu0 %v4576
  %v4578 = vpop.xlane.xlu0 %4577
  %v4579 = vsel %vm207, %v4567, 0.0
  %4580 = vadd.xlane.f32.xlu0 %v4579
  %v4581 = vpop.xlane.xlu0 %4580
  %v4582 = vsel %vm207, %v4568, 0.0
  %4583 = vadd.xlane.f32.xlu0 %v4582
  %v4584 = vpop.xlane.xlu0 %4583
  %v4585 = vmul.f32 %v4575, %v2111
  %v4586 = vmul.f32 %v4578, %v2111
  %v4587 = vmul.f32 %v4581, %v2111
  %v4588 = vmul.f32 %v4584, %v2111
  %v4589 = vsub.f32 %v4565, %v4585
  %v4590 = vsub.f32 %v4566, %v4586
  %v4591 = vsub.f32 %v4567, %v4587
  %v4592 = vsub.f32 %v4568, %v4588
  %v4593 = vmul.f32 %v4589, %v4589
  %v4594 = vmul.f32 %v4590, %v4590
  %v4595 = vmul.f32 %v4591, %v4591
  %v4596 = vmul.f32 %v4592, %v4592
  %v4597 = vsel %vm207, %v4593, 0.0
  %4598 = vadd.xlane.f32.xlu0 %v4597
  %v4599 = vpop.xlane.xlu0 %4598
  %v4600 = vsel %vm207, %v4594, 0.0
  %4601 = vadd.xlane.f32.xlu0 %v4600
  %v4602 = vpop.xlane.xlu0 %4601
  %v4603 = vsel %vm207, %v4595, 0.0
  %4604 = vadd.xlane.f32.xlu0 %v4603
  %v4605 = vpop.xlane.xlu0 %4604
  %v4606 = vsel %vm207, %v4596, 0.0
  %4607 = vadd.xlane.f32.xlu0 %v4606
  %v4608 = vpop.xlane.xlu0 %4607
  %v4609 = vmul.f32 %v4599, %v2111
  %v4610 = vmul.f32 %v4602, %v2111
  %v4611 = vmul.f32 %v4605, %v2111
  %v4612 = vmul.f32 %v4608, %v2111
  %v4613 = vadd.f32 %v4609, 1e-05
  %v4614 = vadd.f32 %v4610, 1e-05
  %v4615 = vadd.f32 %v4611, 1e-05
  %v4616 = vadd.f32 %v4612, 1e-05
  %v4617 = vrsqrt.pop %v4613
  %v4618 = vrsqrt.pop %v4614
  %v4619 = vrsqrt.pop %v4615
  %v4620 = vrsqrt.pop %v4616
  %v4621 = vmul.f32 %v4589, %v4617
  %v4622 = vmul.f32 %v4590, %v4618
  %v4623 = vmul.f32 %v4591, %v4619
  %v4624 = vmul.f32 %v4592, %v4620
  %v4626 = vlaneseq
  %v4627 = vshrl.u32 %v4626, 7
  %v4628 = vsub.s32 0, %v4627
  %v4629 = vrot.slane %v4570, %v4628
  %v4631 = vmul.f32 %v4621, %v4629
  %v4632 = vmul.f32 %v4622, %v4629
  %v4633 = vmul.f32 %v4623, %v4629
  %v4634 = vmul.f32 %v4624, %v4629
  %v4636 = vlaneseq
  %v4637 = vshrl.u32 %v4636, 7
  %v4638 = vsub.s32 0, %v4637
  %v4639 = vrot.slane %v4572, %v4638
  %v4641 = vadd.f32 %v4631, %v4639
  %v4642 = vadd.f32 %v4632, %v4639
  %v4643 = vadd.f32 %v4633, %v4639
  %v4644 = vadd.f32 %v4634, %v4639
  %v4645 = vpack.c.bf16 %v4642, %v4641
  %v4646 = vpack.c.bf16 %v4644, %v4643
  %v4647 = vld [vmem:[%s15] sm:$0xff]
  %v4648 = vld [vmem:[%s15 + $0x8] sm:$0xff]
  %v4649 = vld [vmem:[%s15 + $0x10] sm:$0xff]
  %v4650 = vld [vmem:[%s15 + $0x18] sm:$0xff]
  %v4651 = vld [vmem:[%s15 + $0x20] sm:$0xff]
  %v4652 = vld [vmem:[%s15 + $0x28] sm:$0xff]
  %v4653 = vld [vmem:[%s15 + $0x30] sm:$0xff]
  %v4654 = vld [vmem:[%s15 + $0x38] sm:$0xff]
  %v4655 = vld [vmem:[%s15 + $0x40] sm:$0xff]
  %v4656 = vld [vmem:[%s15 + $0x48] sm:$0xff]
  %v4657 = vld [vmem:[%s15 + $0x50] sm:$0xff]
  %v4658 = vld [vmem:[%s15 + $0x58] sm:$0xff]
  %v4659 = vld [vmem:[%s15 + $0x60] sm:$0xff]
  %v4660 = vld [vmem:[%s15 + $0x68] sm:$0xff]
  %v4661 = vld [vmem:[%s15 + $0x70] sm:$0xff]
  %v4662 = vld [vmem:[%s15 + $0x78] sm:$0xff]
  %v4663 = vld [vmem:[%s15 + $0x80] sm:$0xff]
  %v4664 = vld [vmem:[%s15 + $0x88] sm:$0xff]
  %v4665 = vld [vmem:[%s15 + $0x90] sm:$0xff]
  %v4666 = vld [vmem:[%s15 + $0x98] sm:$0xff]
  %v4667 = vld [vmem:[%s15 + $0xa0] sm:$0xff]
  %v4668 = vld [vmem:[%s15 + $0xa8] sm:$0xff]
  %v4669 = vld [vmem:[%s15 + $0xb0] sm:$0xff]
  %v4670 = vld [vmem:[%s15 + $0xb8] sm:$0xff]
  %v4671 = vld [vmem:[%s16] sm:$0xf]
  %v4673 = vlaneseq
  %v4674 = vshrl.u32 %v4673, 7
  %v4675 = vsub.s32 0, %v4674
  %v4676 = vrot.slane %v4671, %v4675
  %v4677 = vlaneseq
  %v4678 = vshrl.u32 %v4677, 7
  %v4679 = vsub.s32 1, %v4678
  %v4680 = vrot.slane %v4671, %v4679
  %v4681 = vlaneseq
  %v4682 = vshrl.u32 %v4681, 7
  %v4683 = vsub.s32 2, %v4682
  %v4684 = vrot.slane %v4671, %v4683
  %v4685 = vlaneseq
  %v4686 = vshrl.u32 %v4685, 7
  %v4687 = vsub.s32 3, %v4686
  %v4688 = vrot.slane %v4671, %v4687
  %v4717 = vunpack.c.l.b16 %v4647
  %v4718 = vunpack.c.h.b16 %v4647
  %v4719 = vunpack.c.l.b16 %v4648
  %v4720 = vunpack.c.h.b16 %v4648
  %v4721 = vunpack.c.l.b16 %v4649
  %v4722 = vunpack.c.h.b16 %v4649
  %v4723 = vunpack.c.l.b16 %v4650
  %v4724 = vunpack.c.h.b16 %v4650
  %v4725 = vunpack.c.l.b16 %v4651
  %v4726 = vunpack.c.h.b16 %v4651
  %v4727 = vunpack.c.l.b16 %v4652
  %v4728 = vunpack.c.h.b16 %v4652
  %v4729 = vunpack.c.l.b16 %v4653
  %v4730 = vunpack.c.h.b16 %v4653
  %v4731 = vunpack.c.l.b16 %v4654
  %v4732 = vunpack.c.h.b16 %v4654
  %v4733 = vunpack.c.l.b16 %v4655
  %v4734 = vunpack.c.h.b16 %v4655
  %v4735 = vunpack.c.l.b16 %v4656
  %v4736 = vunpack.c.h.b16 %v4656
  %v4737 = vunpack.c.l.b16 %v4657
  %v4738 = vunpack.c.h.b16 %v4657
  %v4739 = vunpack.c.l.b16 %v4658
  %v4740 = vunpack.c.h.b16 %v4658
  %v4741 = vunpack.c.l.b16 %v4659
  %v4742 = vunpack.c.h.b16 %v4659
  %v4743 = vunpack.c.l.b16 %v4660
  %v4744 = vunpack.c.h.b16 %v4660
  %v4745 = vunpack.c.l.b16 %v4661
  %v4746 = vunpack.c.h.b16 %v4661
  %v4747 = vunpack.c.l.b16 %v4662
  %v4748 = vunpack.c.h.b16 %v4662
  %v4749 = vunpack.c.l.b16 %v4663
  %v4750 = vunpack.c.h.b16 %v4663
  %v4751 = vunpack.c.l.b16 %v4664
  %v4752 = vunpack.c.h.b16 %v4664
  %v4753 = vunpack.c.l.b16 %v4665
  %v4754 = vunpack.c.h.b16 %v4665
  %v4755 = vunpack.c.l.b16 %v4666
  %v4756 = vunpack.c.h.b16 %v4666
  %v4757 = vunpack.c.l.b16 %v4667
  %v4758 = vunpack.c.h.b16 %v4667
  %v4759 = vunpack.c.l.b16 %v4668
  %v4760 = vunpack.c.h.b16 %v4668
  %v4761 = vunpack.c.l.b16 %v4669
  %v4762 = vunpack.c.h.b16 %v4669
  %v4763 = vunpack.c.l.b16 %v4670
  %v4764 = vunpack.c.h.b16 %v4670
  %v4765 = vpack.c.b16 %v4721, %v4717
  %v4766 = vpack.c.b16 %v4722, %v4718
  %v4767 = vpack.c.b16 %v4723, %v4719
  %v4768 = vpack.c.b16 %v4724, %v4720
  %v4769 = vpack.c.b16 %v4729, %v4725
  %v4770 = vpack.c.b16 %v4730, %v4726
  %v4771 = vpack.c.b16 %v4731, %v4727
  %v4772 = vpack.c.b16 %v4732, %v4728
  %v4773 = vpack.c.b16 %v4737, %v4733
  %v4774 = vpack.c.b16 %v4738, %v4734
  %v4775 = vpack.c.b16 %v4739, %v4735
  %v4776 = vpack.c.b16 %v4740, %v4736
  %v4777 = vpack.c.b16 %v4745, %v4741
  %v4778 = vpack.c.b16 %v4746, %v4742
  %v4779 = vpack.c.b16 %v4747, %v4743
  %v4780 = vpack.c.b16 %v4748, %v4744
  %v4781 = vpack.c.b16 %v4753, %v4749
  %v4782 = vpack.c.b16 %v4754, %v4750
  %v4783 = vpack.c.b16 %v4755, %v4751
  %v4784 = vpack.c.b16 %v4756, %v4752
  %v4785 = vpack.c.b16 %v4761, %v4757
  %v4786 = vpack.c.b16 %v4762, %v4758
  %v4787 = vpack.c.b16 %v4763, %v4759
  %v4788 = vpack.c.b16 %v4764, %v4760
  %v4814 = vsel %vm207, %v4645, 0
  %v4817 = vsel %vm207, %v4646, 0
  %4819 = vmatprep.subr.bf16.mxu0 %v4766
  %4820 = vmatpush1.bf16.msra.mxu0 %v4765
  %4821 = vmatprep.subr.bf16.mxu0 %v4770
  %4822 = vmatpush1.bf16.msra.mxu0 %v4769
  %4823 = vmatprep.subr.bf16.mxu0 %v4774
  %4824 = vmatpush1.bf16.msra.mxu0 %v4773
  %4825 = vmatprep.subr.bf16.mxu0 %v4778
  %4826 = vmatpush1.bf16.msra.mxu0 %v4777
  %4827 = vmatprep.subr.bf16.mxu0 %v4782
  %4828 = vmatpush1.bf16.msra.mxu0 %v4781
  %4829 = vmatprep.subr.bf16.mxu0 %v4786
  %4830 = vmatpush1.bf16.msra.mxu0 %v4785
  %4831 = vmatprep.subr.bf16.mxu0 0
  %4832 = vmatpush1.bf16.msra.mxu0 0
  %4833 = vmatprep.subr.bf16.mxu0 0
  %4834 = vmatpush1.bf16.msra.mxu0 0
  %4835 = vmatprep.subr.bf16.mxu0 0
  %4836 = vmatpush1.bf16.msra.mxu0 0
  %4837 = vmatprep.subr.bf16.mxu0 0
  %4838 = vmatpush1.bf16.msra.mxu0 0
  %4839 = vmatprep.subr.bf16.mxu0 0
  %4840 = vmatpush1.bf16.msra.mxu0 0
  %4841 = vmatprep.subr.bf16.mxu0 0
  %4842 = vmatpush1.bf16.msra.mxu0 0
  %4843 = vmatprep.subr.bf16.mxu0 0
  %4844 = vmatpush1.bf16.msra.mxu0 0
  %4845 = vmatprep.subr.bf16.mxu0 0
  %4846 = vmatpush1.bf16.msra.mxu0 0
  %4847 = vmatprep.subr.bf16.mxu0 0
  %4848 = vmatpush1.bf16.msra.mxu0 0
  %4849 = vmatprep.subr.bf16.mxu0 0
  %4850 = vmatpush1.bf16.msra.mxu0 0
  %4851 = vmatprep.mubr.bf16.mxu0 0
  %4852 = vmatmul.mubr.bf16.gmra.mrb[0].mxu0 %v4814
  %v4853 = vpop.f32.mrb[0].mxu0
  %v4854 = vadd.f32 %v4676, %v4853
  %v4855 = vpop.f32.mrb[0].mxu0
  %v4856 = vadd.f32 %v4680, %v4855
  %v4857 = vpop.f32.mrb[0].mxu0
  %v4858 = vadd.f32 %v4676, %v4857
  %v4859 = vpop.f32.mrb[0].mxu0
  %v4860 = vadd.f32 %v4680, %v4859
  %4861 = vmatprep.mubr.bf16.mxu0 0
  %4862 = vmatmul.mubr.bf16.gmra.mrb[0].mxu0 %v4817
  %v4863 = vpop.f32.mrb[0].mxu0
  %v4864 = vadd.f32 %v4676, %v4863
  %v4865 = vpop.f32.mrb[0].mxu0
  %v4866 = vadd.f32 %v4680, %v4865
  %v4867 = vpop.f32.mrb[0].mxu0
  %v4868 = vadd.f32 %v4676, %v4867
  %v4869 = vpop.f32.mrb[0].mxu0
  %v4870 = vadd.f32 %v4680, %v4869
  %4871 = vdwg.mxu0
  %4872 = vmatprep.subr.bf16.mxu0 %v4768
  %4873 = vmatpush1.bf16.msra.mxu0 %v4767
  %4874 = vmatprep.subr.bf16.mxu0 %v4772
  %4875 = vmatpush1.bf16.msra.mxu0 %v4771
  %4876 = vmatprep.subr.bf16.mxu0 %v4776
  %4877 = vmatpush1.bf16.msra.mxu0 %v4775
  %4878 = vmatprep.subr.bf16.mxu0 %v4780
  %4879 = vmatpush1.bf16.msra.mxu0 %v4779
  %4880 = vmatprep.subr.bf16.mxu0 %v4784
  %4881 = vmatpush1.bf16.msra.mxu0 %v4783
  %4882 = vmatprep.subr.bf16.mxu0 %v4788
  %4883 = vmatpush1.bf16.msra.mxu0 %v4787
  %4884 = vmatprep.subr.bf16.mxu0 0
  %4885 = vmatpush1.bf16.msra.mxu0 0
  %4886 = vmatprep.subr.bf16.mxu0 0
  %4887 = vmatpush1.bf16.msra.mxu0 0
  %4888 = vmatprep.subr.bf16.mxu0 0
  %4889 = vmatpush1.bf16.msra.mxu0 0
  %4890 = vmatprep.subr.bf16.mxu0 0
  %4891 = vmatpush1.bf16.msra.mxu0 0
  %4892 = vmatprep.subr.bf16.mxu0 0
  %4893 = vmatpush1.bf16.msra.mxu0 0
  %4894 = vmatprep.subr.bf16.mxu0 0
  %4895 = vmatpush1.bf16.msra.mxu0 0
  %4896 = vmatprep.subr.bf16.mxu0 0
  %4897 = vmatpush1.bf16.msra.mxu0 0
  %4898 = vmatprep.subr.bf16.mxu0 0
  %4899 = vmatpush1.bf16.msra.mxu0 0
  %4900 = vmatprep.subr.bf16.mxu0 0
  %4901 = vmatpush1.bf16.msra.mxu0 0
  %4902 = vmatprep.subr.bf16.mxu0 0
  %4903 = vmatpush1.bf16.msra.mxu0 0
  %4904 = vmatprep.mubr.bf16.mxu0 0
  %4905 = vmatmul.mubr.bf16.gmra.mrb[0].mxu0 %v4814
  %v4906 = vpop.f32.mrb[0].mxu0
  %v4907 = vadd.f32 %v4684, %v4906
  %v4908 = vpop.f32.mrb[0].mxu0
  %v4909 = vadd.f32 %v4688, %v4908
  %v4910 = vpop.f32.mrb[0].mxu0
  %v4911 = vadd.f32 %v4684, %v4910
  %v4912 = vpop.f32.mrb[0].mxu0
  %v4913 = vadd.f32 %v4688, %v4912
  %4914 = vmatprep.mubr.bf16.mxu0 0
  %4915 = vmatmul.mubr.bf16.gmra.mrb[0].mxu0 %v4817
  %v4916 = vpop.f32.mrb[0].mxu0
  %v4917 = vadd.f32 %v4684, %v4916
  %v4918 = vpop.f32.mrb[0].mxu0
  %v4919 = vadd.f32 %v4688, %v4918
  %v4920 = vpop.f32.mrb[0].mxu0
  %v4921 = vadd.f32 %v4684, %v4920
  %v4922 = vpop.f32.mrb[0].mxu0
  %v4923 = vadd.f32 %v4688, %v4922
  %4924 = vdwg.mxu0
  %v4925 = vmax.f32 %v4854, 0.0
  %v4926 = vmax.f32 %v4856, 0.0
  %v4927 = vmax.f32 %v4907, 0.0
  %v4928 = vmax.f32 %v4909, 0.0
  %v4929 = vmax.f32 %v4858, 0.0
  %v4930 = vmax.f32 %v4860, 0.0
  %v4931 = vmax.f32 %v4911, 0.0
  %v4932 = vmax.f32 %v4913, 0.0
  %v4933 = vmax.f32 %v4864, 0.0
  %v4934 = vmax.f32 %v4866, 0.0
  %v4935 = vmax.f32 %v4917, 0.0
  %v4936 = vmax.f32 %v4919, 0.0
  %v4937 = vmax.f32 %v4868, 0.0
  %v4938 = vmax.f32 %v4870, 0.0
  %v4939 = vmax.f32 %v4921, 0.0
  %v4940 = vmax.f32 %v4923, 0.0
  %v4941 = vpack.c.bf16 %v4929, %v4925
  %v4942 = vpack.c.bf16 %v4930, %v4926
  %v4943 = vpack.c.bf16 %v4931, %v4927
  %v4944 = vpack.c.bf16 %v4932, %v4928
  %v4945 = vpack.c.bf16 %v4937, %v4933
  %v4946 = vpack.c.bf16 %v4938, %v4934
  %v4947 = vpack.c.bf16 %v4939, %v4935
  %v4948 = vpack.c.bf16 %v4940, %v4936
  %v4949 = vld [vmem:[%s17] sm:$0xf]
  %v4950 = vld [vmem:[%s17 + $0x4] sm:$0xf]
  %v4951 = vld [vmem:[%s17 + $0x8] sm:$0xf]
  %v4952 = vld [vmem:[%s17 + $0xc] sm:$0xf]
  %v4953 = vld [vmem:[%s17 + $0x10] sm:$0xf]
  %v4954 = vld [vmem:[%s17 + $0x14] sm:$0xf]
  %v4955 = vld [vmem:[%s17 + $0x18] sm:$0xf]
  %v4956 = vld [vmem:[%s17 + $0x1c] sm:$0xf]
  %v4957 = vld [vmem:[%s17 + $0x20] sm:$0xf]
  %v4958 = vld [vmem:[%s17 + $0x24] sm:$0xf]
  %v4959 = vld [vmem:[%s17 + $0x28] sm:$0xf]
  %v4960 = vld [vmem:[%s17 + $0x2c] sm:$0xf]
  %v4961 = vld [vmem:[%s17 + $0x30] sm:$0xf]
  %v4962 = vld [vmem:[%s17 + $0x34] sm:$0xf]
  %v4963 = vld [vmem:[%s17 + $0x38] sm:$0xf]
  %v4964 = vld [vmem:[%s17 + $0x3c] sm:$0xf]
  %v4965 = vld [vmem:[%s17 + $0x40] sm:$0xf]
  %v4966 = vld [vmem:[%s17 + $0x44] sm:$0xf]
  %v4967 = vld [vmem:[%s17 + $0x48] sm:$0xf]
  %v4968 = vld [vmem:[%s17 + $0x4c] sm:$0xf]
  %v4969 = vld [vmem:[%s17 + $0x50] sm:$0xf]
  %v4970 = vld [vmem:[%s17 + $0x54] sm:$0xf]
  %v4971 = vld [vmem:[%s17 + $0x58] sm:$0xf]
  %v4972 = vld [vmem:[%s17 + $0x5c] sm:$0xf]
  %v4973 = vld [vmem:[%s17 + $0x60] sm:$0xf]
  %v4974 = vld [vmem:[%s17 + $0x64] sm:$0xf]
  %v4975 = vld [vmem:[%s17 + $0x68] sm:$0xf]
  %v4976 = vld [vmem:[%s17 + $0x6c] sm:$0xf]
  %v4977 = vld [vmem:[%s17 + $0x70] sm:$0xf]
  %v4978 = vld [vmem:[%s17 + $0x74] sm:$0xf]
  %v4979 = vld [vmem:[%s17 + $0x78] sm:$0xf]
  %v4980 = vld [vmem:[%s17 + $0x7c] sm:$0xf]
  %v4981 = vld [vmem:[%s17 + $0x80] sm:$0xf]
  %v4982 = vld [vmem:[%s17 + $0x84] sm:$0xf]
  %v4983 = vld [vmem:[%s17 + $0x88] sm:$0xf]
  %v4984 = vld [vmem:[%s17 + $0x8c] sm:$0xf]
  %v4985 = vld [vmem:[%s17 + $0x90] sm:$0xf]
  %v4986 = vld [vmem:[%s17 + $0x94] sm:$0xf]
  %v4987 = vld [vmem:[%s17 + $0x98] sm:$0xf]
  %v4988 = vld [vmem:[%s17 + $0x9c] sm:$0xf]
  %v4989 = vld [vmem:[%s17 + $0xa0] sm:$0xf]
  %v4990 = vld [vmem:[%s17 + $0xa4] sm:$0xf]
  %v4991 = vld [vmem:[%s17 + $0xa8] sm:$0xf]
  %v4992 = vld [vmem:[%s17 + $0xac] sm:$0xf]
  %v4993 = vld [vmem:[%s17 + $0xb0] sm:$0xf]
  %v4994 = vld [vmem:[%s17 + $0xb4] sm:$0xf]
  %v4995 = vld [vmem:[%s17 + $0xb8] sm:$0xf]
  %v4996 = vld [vmem:[%s17 + $0xbc] sm:$0xf]
  %v4997 = vld [vmem:[%s17 + $0xc0] sm:$0xf]
  %v4998 = vld [vmem:[%s17 + $0xc4] sm:$0xf]
  %v4999 = vld [vmem:[%s17 + $0xc8] sm:$0xf]
  %v5000 = vld [vmem:[%s17 + $0xcc] sm:$0xf]
  %v5001 = vld [vmem:[%s17 + $0xd0] sm:$0xf]
  %v5002 = vld [vmem:[%s17 + $0xd4] sm:$0xf]
  %v5003 = vld [vmem:[%s17 + $0xd8] sm:$0xf]
  %v5004 = vld [vmem:[%s17 + $0xdc] sm:$0xf]
  %v5005 = vld [vmem:[%s17 + $0xe0] sm:$0xf]
  %v5006 = vld [vmem:[%s17 + $0xe4] sm:$0xf]
  %v5007 = vld [vmem:[%s17 + $0xe8] sm:$0xf]
  %v5008 = vld [vmem:[%s17 + $0xec] sm:$0xf]
  %v5009 = vld [vmem:[%s17 + $0xf0] sm:$0xf]
  %v5010 = vld [vmem:[%s17 + $0xf4] sm:$0xf]
  %v5011 = vld [vmem:[%s17 + $0xf8] sm:$0xf]
  %v5012 = vld [vmem:[%s17 + $0xfc] sm:$0xf]
  %v5013 = vld [vmem:[%s18] sm:$0x1]
  %v5015 = vlaneseq
  %v5016 = vshrl.u32 %v5015, 7
  %v5017 = vsub.s32 0, %v5016
  %v5018 = vrot.slane %v5013, %v5017
  %v5084 = vunpack.c.l.b16 %v4949
  %v5085 = vunpack.c.l.b16 %v4950
  %v5086 = vunpack.c.l.b16 %v4951
  %v5087 = vunpack.c.l.b16 %v4952
  %v5088 = vunpack.c.l.b16 %v4953
  %v5089 = vunpack.c.l.b16 %v4954
  %v5090 = vunpack.c.l.b16 %v4955
  %v5091 = vunpack.c.l.b16 %v4956
  %v5092 = vunpack.c.l.b16 %v4957
  %v5093 = vunpack.c.l.b16 %v4958
  %v5094 = vunpack.c.l.b16 %v4959
  %v5095 = vunpack.c.l.b16 %v4960
  %v5096 = vunpack.c.l.b16 %v4961
  %v5097 = vunpack.c.l.b16 %v4962
  %v5098 = vunpack.c.l.b16 %v4963
  %v5099 = vunpack.c.l.b16 %v4964
  %v5100 = vunpack.c.l.b16 %v4965
  %v5101 = vunpack.c.l.b16 %v4966
  %v5102 = vunpack.c.l.b16 %v4967
  %v5103 = vunpack.c.l.b16 %v4968
  %v5104 = vunpack.c.l.b16 %v4969
  %v5105 = vunpack.c.l.b16 %v4970
  %v5106 = vunpack.c.l.b16 %v4971
  %v5107 = vunpack.c.l.b16 %v4972
  %v5108 = vunpack.c.l.b16 %v4973
  %v5109 = vunpack.c.l.b16 %v4974
  %v5110 = vunpack.c.l.b16 %v4975
  %v5111 = vunpack.c.l.b16 %v4976
  %v5112 = vunpack.c.l.b16 %v4977
  %v5113 = vunpack.c.l.b16 %v4978
  %v5114 = vunpack.c.l.b16 %v4979
  %v5115 = vunpack.c.l.b16 %v4980
  %v5116 = vunpack.c.l.b16 %v4981
  %v5117 = vunpack.c.l.b16 %v4982
  %v5118 = vunpack.c.l.b16 %v4983
  %v5119 = vunpack.c.l.b16 %v4984
  %v5120 = vunpack.c.l.b16 %v4985
  %v5121 = vunpack.c.l.b16 %v4986
  %v5122 = vunpack.c.l.b16 %v4987
  %v5123 = vunpack.c.l.b16 %v4988
  %v5124 = vunpack.c.l.b16 %v4989
  %v5125 = vunpack.c.l.b16 %v4990
  %v5126 = vunpack.c.l.b16 %v4991
  %v5127 = vunpack.c.l.b16 %v4992
  %v5128 = vunpack.c.l.b16 %v4993
  %v5129 = vunpack.c.l.b16 %v4994
  %v5130 = vunpack.c.l.b16 %v4995
  %v5131 = vunpack.c.l.b16 %v4996
  %v5132 = vunpack.c.l.b16 %v4997
  %v5133 = vunpack.c.l.b16 %v4998
  %v5134 = vunpack.c.l.b16 %v4999
  %v5135 = vunpack.c.l.b16 %v5000
  %v5136 = vunpack.c.l.b16 %v5001
  %v5137 = vunpack.c.l.b16 %v5002
  %v5138 = vunpack.c.l.b16 %v5003
  %v5139 = vunpack.c.l.b16 %v5004
  %v5140 = vunpack.c.l.b16 %v5005
  %v5141 = vunpack.c.l.b16 %v5006
  %v5142 = vunpack.c.l.b16 %v5007
  %v5143 = vunpack.c.l.b16 %v5008
  %v5144 = vunpack.c.l.b16 %v5009
  %v5145 = vunpack.c.l.b16 %v5010
  %v5146 = vunpack.c.l.b16 %v5011
  %v5147 = vunpack.c.l.b16 %v5012
  %v5148 = vpack.c.b16 %v5085, %v5084
  %v5149 = vpack.c.b16 %v5087, %v5086
  %v5150 = vpack.c.b16 %v5089, %v5088
  %v5151 = vpack.c.b16 %v5091, %v5090
  %v5152 = vpack.c.b16 %v5093, %v5092
  %v5153 = vpack.c.b16 %v5095, %v5094
  %v5154 = vpack.c.b16 %v5097, %v5096
  %v5155 = vpack.c.b16 %v5099, %v5098
  %v5156 = vpack.c.b16 %v5101, %v5100
  %v5157 = vpack.c.b16 %v5103, %v5102
  %v5158 = vpack.c.b16 %v5105, %v5104
  %v5159 = vpack.c.b16 %v5107, %v5106
  %v5160 = vpack.c.b16 %v5109, %v5108
  %v5161 = vpack.c.b16 %v5111, %v5110
  %v5162 = vpack.c.b16 %v5113, %v5112
  %v5163 = vpack.c.b16 %v5115, %v5114
  %v5164 = vpack.c.b16 %v5117, %v5116
  %v5165 = vpack.c.b16 %v5119, %v5118
  %v5166 = vpack.c.b16 %v5121, %v5120
  %v5167 = vpack.c.b16 %v5123, %v5122
  %v5168 = vpack.c.b16 %v5125, %v5124
  %v5169 = vpack.c.b16 %v5127, %v5126
  %v5170 = vpack.c.b16 %v5129, %v5128
  %v5171 = vpack.c.b16 %v5131, %v5130
  %v5172 = vpack.c.b16 %v5133, %v5132
  %v5173 = vpack.c.b16 %v5135, %v5134
  %v5174 = vpack.c.b16 %v5137, %v5136
  %v5175 = vpack.c.b16 %v5139, %v5138
  %v5176 = vpack.c.b16 %v5141, %v5140
  %v5177 = vpack.c.b16 %v5143, %v5142
  %v5178 = vpack.c.b16 %v5145, %v5144
  %v5179 = vpack.c.b16 %v5147, %v5146
  %5212 = vmatprep.subr.bf16.mxu0 0
  %5213 = vmatpush1.bf16.msra.mxu0 %v5148
  %5214 = vmatprep.subr.bf16.mxu0 0
  %5215 = vmatpush1.bf16.msra.mxu0 %v5149
  %5216 = vmatprep.subr.bf16.mxu0 0
  %5217 = vmatpush1.bf16.msra.mxu0 %v5150
  %5218 = vmatprep.subr.bf16.mxu0 0
  %5219 = vmatpush1.bf16.msra.mxu0 %v5151
  %5220 = vmatprep.subr.bf16.mxu0 0
  %5221 = vmatpush1.bf16.msra.mxu0 %v5152
  %5222 = vmatprep.subr.bf16.mxu0 0
  %5223 = vmatpush1.bf16.msra.mxu0 %v5153
  %5224 = vmatprep.subr.bf16.mxu0 0
  %5225 = vmatpush1.bf16.msra.mxu0 %v5154
  %5226 = vmatprep.subr.bf16.mxu0 0
  %5227 = vmatpush1.bf16.msra.mxu0 %v5155
  %5228 = vmatprep.subr.bf16.mxu0 0
  %5229 = vmatpush1.bf16.msra.mxu0 %v5156
  %5230 = vmatprep.subr.bf16.mxu0 0
  %5231 = vmatpush1.bf16.msra.mxu0 %v5157
  %5232 = vmatprep.subr.bf16.mxu0 0
  %5233 = vmatpush1.bf16.msra.mxu0 %v5158
  %5234 = vmatprep.subr.bf16.mxu0 0
  %5235 = vmatpush1.bf16.msra.mxu0 %v5159
  %5236 = vmatprep.subr.bf16.mxu0 0
  %5237 = vmatpush1.bf16.msra.mxu0 %v5160
  %5238 = vmatprep.subr.bf16.mxu0 0
  %5239 = vmatpush1.bf16.msra.mxu0 %v5161
  %5240 = vmatprep.subr.bf16.mxu0 0
  %5241 = vmatpush1.bf16.msra.mxu0 %v5162
  %5242 = vmatprep.subr.bf16.mxu0 0
  %5243 = vmatpush1.bf16.msra.mxu0 %v5163
  %5244 = vmatprep.mubr.bf16.mxu0 %v4942
  %5245 = vmatmul.mubr.bf16.gmra.mrb[0].mxu0 %v4941
  %v5246 = vpop.f32.mrb[0].mxu0
  %v5247 = vadd.f32 %v5018, %v5246
  %v5248 = vpop.f32.mrb[0].mxu0
  %v5249 = vpop.f32.mrb[0].mxu0
  %v5250 = vadd.f32 %v5018, %v5249
  %v5251 = vpop.f32.mrb[0].mxu0
  %5252 = vmatprep.mubr.bf16.mxu0 %v4946
  %5253 = vmatmul.mubr.bf16.gmra.mrb[0].mxu0 %v4945
  %v5254 = vpop.f32.mrb[0].mxu0
  %v5255 = vadd.f32 %v5018, %v5254
  %v5256 = vpop.f32.mrb[0].mxu0
  %v5257 = vpop.f32.mrb[0].mxu0
  %v5258 = vadd.f32 %v5018, %v5257
  %v5259 = vpop.f32.mrb[0].mxu0
  %5260 = vdwg.mxu0
  %5261 = vmatprep.subr.bf16.mxu0 0
  %5262 = vmatpush1.bf16.msra.mxu0 %v5164
  %5263 = vmatprep.subr.bf16.mxu0 0
  %5264 = vmatpush1.bf16.msra.mxu0 %v5165
  %5265 = vmatprep.subr.bf16.mxu0 0
  %5266 = vmatpush1.bf16.msra.mxu0 %v5166
  %5267 = vmatprep.subr.bf16.mxu0 0
  %5268 = vmatpush1.bf16.msra.mxu0 %v5167
  %5269 = vmatprep.subr.bf16.mxu0 0
  %5270 = vmatpush1.bf16.msra.mxu0 %v5168
  %5271 = vmatprep.subr.bf16.mxu0 0
  %5272 = vmatpush1.bf16.msra.mxu0 %v5169
  %5273 = vmatprep.subr.bf16.mxu0 0
  %5274 = vmatpush1.bf16.msra.mxu0 %v5170
  %5275 = vmatprep.subr.bf16.mxu0 0
  %5276 = vmatpush1.bf16.msra.mxu0 %v5171
  %5277 = vmatprep.subr.bf16.mxu0 0
  %5278 = vmatpush1.bf16.msra.mxu0 %v5172
  %5279 = vmatprep.subr.bf16.mxu0 0
  %5280 = vmatpush1.bf16.msra.mxu0 %v5173
  %5281 = vmatprep.subr.bf16.mxu0 0
  %5282 = vmatpush1.bf16.msra.mxu0 %v5174
  %5283 = vmatprep.subr.bf16.mxu0 0
  %5284 = vmatpush1.bf16.msra.mxu0 %v5175
  %5285 = vmatprep.subr.bf16.mxu0 0
  %5286 = vmatpush1.bf16.msra.mxu0 %v5176
  %5287 = vmatprep.subr.bf16.mxu0 0
  %5288 = vmatpush1.bf16.msra.mxu0 %v5177
  %5289 = vmatprep.subr.bf16.mxu0 0
  %5290 = vmatpush1.bf16.msra.mxu0 %v5178
  %5291 = vmatprep.subr.bf16.mxu0 0
  %5292 = vmatpush1.bf16.msra.mxu0 %v5179
  %5293 = vmatprep.mubr.bf16.mxu0 %v4944
  %5294 = vmatmul.mubr.bf16.gmra.mrb[0].mxu0 %v4943
  %v5295 = vpop.f32.mrb[0].mxu0
  %v5296 = vadd.f32 %v5247, %v5295
  %v5297 = vpop.f32.mrb[0].mxu0
  %v5298 = vpop.f32.mrb[0].mxu0
  %v5299 = vadd.f32 %v5250, %v5298
  %v5300 = vpop.f32.mrb[0].mxu0
  %5301 = vmatprep.mubr.bf16.mxu0 %v4948
  %5302 = vmatmul.mubr.bf16.gmra.mrb[0].mxu0 %v4947
  %v5303 = vpop.f32.mrb[0].mxu0
  %v5304 = vadd.f32 %v5255, %v5303
  %v5305 = vpop.f32.mrb[0].mxu0
  %v5306 = vpop.f32.mrb[0].mxu0
  %v5307 = vadd.f32 %v5258, %v5306
  %v5308 = vpop.f32.mrb[0].mxu0
  %5309 = vdwg.mxu0
  %5310 = vst [vmem:[%s19] sm:$0xff] %v5296
  %5311 = vst [vmem:[%s19 + $0x8] sm:$0xff] %v5299
  %5312 = vst [vmem:[%s19 + $0x10] sm:$0xff] %v5304
  %5313 = vst [vmem:[%s19 + $0x18] sm:$0xff] %v5307
  // Predicated region
  $region78: #{forward.1} parent=0 // pred_check
    _
  $region79: #{forward.1} parent=0 // pred_check_branch
    %5315 = sbr.rel (0) target = $region81
  $region80: #{forward.1} parent=0 // pred_region
    _
  $region81: #{forward.1} parent=0 // pred_fallthru
    _
  // Predicated region
  $region82: #{forward.1} parent=0 // pred_check
    _
  $region83: #{forward.1} parent=0 // pred_check_branch
    %5317 = sbr.rel (0) target = $region85
  $region84: #{forward.1} parent=0 // pred_region
    _
  $region85: #{forward.1} parent=0 // pred_fallthru
    _

</llo_original>
